<compile_context>
chip_gen: v5e
topology: v5e:2x2
jax: 0.10.0
libtpu: 0.0.40
codegen_flags: <defaults>
</compile_context>

<pallas_src>
import jax
import jax.numpy as jnp
from jax import lax
from jax.experimental import pallas as pl
from jax.experimental.pallas import tpu as pltpu


# ----------------------------- config ---------------------------------------
B = 2          # batch
T = 8          # sequence length
D = 32         # hidden size (d_model)
H = 4          # attention heads
DH = D // H    # head dim
DFF = 4 * D    # MLP hidden
L = 2          # transformer layers
VOCAB = 256
MAX_POS = 64
LN_EPS = 1e-5
BT = B * T


# ----------------------------- kernel helpers --------------------------------
def _layernorm(x, g, b):
    mu = jnp.mean(x, axis=-1, keepdims=True)
    var = jnp.mean((x - mu) ** 2, axis=-1, keepdims=True)
    return (x - mu) * lax.rsqrt(var + LN_EPS) * g + b


def _gelu_new(x):
    # GPT-2 "gelu_new" (tanh approximation), f32 math (v5e has no bf16 VPU/EUP)
    c = 0.7978845608028654  # sqrt(2/pi)
    return 0.5 * x * (1.0 + jnp.tanh(c * (x + 0.044715 * x * x * x)))


# ----------------------------- kernel ----------------------------------------
def gpt2_forward_kernel(
    x_ref,        # (BT, D)            f32   token+pos embeddings
    watt_ref,     # (L*3*H, D, DH)     bf16  per-head q/k/v projection weights
    batt_ref,     # (L*3*H, 1, DH)     f32   per-head q/k/v biases
    wo_ref,       # (L*H, DH, D)       bf16  per-head output-projection rows
    w1_ref,       # (L, D, DFF)        bf16  MLP up
    w2_ref,       # (L, DFF, D)        bf16  MLP down
    b1_ref,       # (L, 1, DFF)        f32
    vec_ref,      # (L, 6, D)          f32   rows: bo, ln1_g, ln1_b, ln2_g, ln2_b, b2
    lnf_ref,      # (2, D)             f32   rows: lnf_g, lnf_b
    out_ref,      # (BT, D)            f32   last hidden states
):
    h = x_ref[...].astype(jnp.float32)

    # hoisted: causal additive mask + softmax scale (built once, reused by all layers)
    row = lax.broadcasted_iota(jnp.int32, (T, T), 0)
    col = lax.broadcasted_iota(jnp.int32, (T, T), 1)
    mask = jnp.where(row >= col, 0.0, -1e30).astype(jnp.float32)   # (T, T)
    scale = 1.0 / (DH ** 0.5)

    for l in range(L):                                   # L=2, unrolled statically
        vec = vec_ref[l]                                 # (6, D)
        bo,   ln1g = vec[0:1, :], vec[1:2, :]
        ln1b, ln2g = vec[2:3, :], vec[3:4, :]
        ln2b, b2   = vec[4:5, :], vec[5:6, :]

        # ---- attention sub-block --------------------------------------------
        x1 = _layernorm(h, ln1g, ln1b)
        x1b = x1.astype(jnp.bfloat16)

        attn = None
        for hh in range(H):                              # static; head weights pre-stacked
            iq = (l * 3 + 0) * H + hh
            ik = (l * 3 + 1) * H + hh
            iv = (l * 3 + 2) * H + hh
            q = jnp.dot(x1b, watt_ref[iq], preferred_element_type=jnp.float32) + batt_ref[iq]
            k = jnp.dot(x1b, watt_ref[ik], preferred_element_type=jnp.float32) + batt_ref[ik]
            v = jnp.dot(x1b, watt_ref[iv], preferred_element_type=jnp.float32) + batt_ref[iv]

            q3 = q.reshape(B, T, DH)                     # leading-axis split (no relayout)
            k3 = k.reshape(B, T, DH)
            v3 = v.reshape(B, T, DH)

            # batched over B, contracting DH (no explicit k.T)
            s = jnp.einsum('bqd,bkd->bqk', q3, k3,
                           preferred_element_type=jnp.float32) * scale + mask
            m = jnp.max(s, axis=-1, keepdims=True)
            p = jnp.exp(s - m)
            denom = jnp.sum(p, axis=-1, keepdims=True)
            p = p * pl.reciprocal(denom, approx=True)    # EUP recip instead of divide

            ctx = jnp.einsum('bqk,bkd->bqd', p, v3,
                             preferred_element_type=jnp.float32)
            ctx2 = ctx.reshape(BT, DH).astype(jnp.bfloat16)
            part = jnp.dot(ctx2, wo_ref[l * H + hh],
                           preferred_element_type=jnp.float32)
            attn = part if attn is None else attn + part   # accumulate, no concat

        h = h + attn + bo

        # ---- MLP sub-block ---------------------------------------------------
        x2 = _layernorm(h, ln2g, ln2b)
        mlp = jnp.dot(x2.astype(jnp.bfloat16), w1_ref[l],
                      preferred_element_type=jnp.float32) + b1_ref[l]
        mlp = _gelu_new(mlp)
        mlp = jnp.dot(mlp.astype(jnp.bfloat16), w2_ref[l],
                      preferred_element_type=jnp.float32) + b2
        h = h + mlp

    # ---- final LayerNorm ------------------------------------------------------
    lnf = lnf_ref[...]
    out_ref[...] = _layernorm(h, lnf[0:1, :], lnf[1:2, :]).astype(out_ref.dtype)


# ----------------------------- wrapper ---------------------------------------
def gpt2_last_hidden_states(params, input_ids):
    """input_ids: (B, T) int32  ->  (B, T, D) float32 (== hidden_states[-1])."""
    Bc, Tc = input_ids.shape
    # embedding gather + positional add is glue; stays in plain JAX
    # TODO(synk): could be moved in-kernel with scalar prefetch + pl.Element row gather.
    x = params["wte"][input_ids] + params["wpe"][jnp.arange(Tc)][None, :, :]
    x = x.reshape(Bc * Tc, D).astype(jnp.float32)

    vmem = lambda: pl.BlockSpec(memory_space=pltpu.MemorySpace.VMEM)

    out = pl.pallas_call(
        gpt2_forward_kernel,
        out_shape=jax.ShapeDtypeStruct((Bc * Tc, D), jnp.float32),
        in_specs=[vmem() for _ in range(9)],
        out_specs=vmem(),
        compiler_params=pltpu.CompilerParams(vmem_limit_bytes=64 * 1024 * 1024),
    )(
        x,
        params["w_att"], params["b_att"], params["wo"],
        params["w1"], params["w2"], params["b1"],
        params["vec_d"], params["lnf"],
    )
    return out.reshape(Bc, Tc, D)


# ----------------------------- params ----------------------------------------
def init_params(key):
    ks = jax.random.split(key, 6)
    std = 0.02
    nrm = lambda k, shape: std * jax.random.normal(k, shape, jnp.float32)
    ones = jnp.ones((L, 1, D), jnp.float32)
    zeros = jnp.zeros((L, 1, D), jnp.float32)
    return {
        "wte": nrm(ks[0], (VOCAB, D)),
        "wpe": nrm(ks[1], (MAX_POS, D)),
        # per-head stacked attention weights, index = ((layer*3 + {q,k,v})*H + head)
        "w_att": nrm(ks[2], (L * 3 * H, D, DH)).astype(jnp.bfloat16),
        "b_att": jnp.zeros((L * 3 * H, 1, DH), jnp.float32),
        # per-head output-projection rows, index = layer*H + head
        "wo": nrm(ks[3], (L * H, DH, D)).astype(jnp.bfloat16),
        "w1": nrm(ks[4], (L, D, DFF)).astype(jnp.bfloat16),
        "w2": nrm(ks[5], (L, DFF, D)).astype(jnp.bfloat16),
        "b1": jnp.zeros((L, 1, DFF), jnp.float32),
        # packed per-layer D-width vectors: bo, ln1_g, ln1_b, ln2_g, ln2_b, b2
        "vec_d": jnp.concatenate([zeros, ones, zeros, ones, zeros, zeros], axis=1),
        # final LayerNorm gain / bias
        "lnf": jnp.stack([jnp.ones((D,), jnp.float32), jnp.zeros((D,), jnp.float32)]),
    }


# ----------------------------- main -------------------------------------------
if __name__ == "__main__":
    key = jax.random.PRNGKey(0)
    pkey, dkey = jax.random.split(key)
    params = init_params(pkey)
    # "tokenized text": deterministic small batch of token ids
    input_ids = jax.random.randint(dkey, (B, T), 0, VOCAB, dtype=jnp.int32)

    hidden = gpt2_last_hidden_states(params, input_ids)
    hidden = jax.block_until_ready(hidden)
    assert hidden.shape == (B, T, D) and hidden.dtype == jnp.float32
    assert bool(jnp.all(jnp.isfinite(hidden)))
    print("KERNEL_OK")
</pallas_src>

<mosaic_0001>
module attributes {stable_mosaic.version = 11 : i64} {
  func.func @gpt2_forward_kernel(%arg0: memref<16x32xf32, #tpu.memory_space<vmem>>, %arg1: memref<24x32x8xbf16, #tpu.memory_space<vmem>>, %arg2: memref<24x1x8xf32, #tpu.memory_space<vmem>>, %arg3: memref<8x8x32xbf16, #tpu.memory_space<vmem>>, %arg4: memref<2x32x128xbf16, #tpu.memory_space<vmem>>, %arg5: memref<2x128x32xbf16, #tpu.memory_space<vmem>>, %arg6: memref<2x1x128xf32, #tpu.memory_space<vmem>>, %arg7: memref<2x6x32xf32, #tpu.memory_space<vmem>>, %arg8: memref<2x32xf32, #tpu.memory_space<vmem>>, %arg9: memref<16x32xf32, #tpu.memory_space<vmem>>) attributes {dimension_semantics = [], scalar_prefetch = 0 : i64, scratch_operands = 0 : i64, tpu.core_type = #tpu.core_type<tc>} {
    %c0 = arith.constant 0 : index
    %c0_0 = arith.constant 0 : index
    %0 = vector.load %arg0[%c0, %c0_0] : memref<16x32xf32, #tpu.memory_space<vmem>>, vector<16x32xf32>
    %1 = tpu.iota {dimensions = array<i32: 0>} : vector<8x8xi32>
    %2 = tpu.iota {dimensions = array<i32: 1>} : vector<8x8xi32>
    %3 = arith.cmpi sge, %1, %2 : vector<8x8xi32>
    %cst = arith.constant 0.000000e+00 : f32
    %cst_1 = arith.constant -1.000000e+30 : f32
    %4 = vector.broadcast %cst : f32 to vector<8x8xf32>
    %5 = vector.broadcast %cst_1 : f32 to vector<8x8xf32>
    %6 = arith.select %3, %4, %5 : vector<8x8xi1>, vector<8x8xf32>
    %c0_2 = arith.constant 0 : index
    %c0_3 = arith.constant 0 : index
    %c0_4 = arith.constant 0 : index
    %7 = vector.load %arg7[%c0_2, %c0_3, %c0_4] : memref<2x6x32xf32, #tpu.memory_space<vmem>>, vector<1x6x32xf32>
    %8 = vector.shape_cast %7 : vector<1x6x32xf32> to vector<6x32xf32>
    %9 = vector.extract_strided_slice %8 {offsets = [0, 0], sizes = [1, 32], strides = [1, 1]} : vector<6x32xf32> to vector<1x32xf32>
    %10 = vector.extract_strided_slice %8 {offsets = [1, 0], sizes = [1, 32], strides = [1, 1]} : vector<6x32xf32> to vector<1x32xf32>
    %11 = vector.extract_strided_slice %8 {offsets = [2, 0], sizes = [1, 32], strides = [1, 1]} : vector<6x32xf32> to vector<1x32xf32>
    %12 = vector.extract_strided_slice %8 {offsets = [3, 0], sizes = [1, 32], strides = [1, 1]} : vector<6x32xf32> to vector<1x32xf32>
    %13 = vector.extract_strided_slice %8 {offsets = [4, 0], sizes = [1, 32], strides = [1, 1]} : vector<6x32xf32> to vector<1x32xf32>
    %14 = vector.extract_strided_slice %8 {offsets = [5, 0], sizes = [1, 32], strides = [1, 1]} : vector<6x32xf32> to vector<1x32xf32>
    %cst_5 = arith.constant dense<0.000000e+00> : vector<16xf32>
    %15 = vector.multi_reduction <add>, %0, %cst_5 [1] : vector<16x32xf32> to vector<16xf32>
    %16 = vector.shape_cast %15 : vector<16xf32> to vector<16x1xf32>
    %cst_6 = arith.constant 3.200000e+01 : f32
    %17 = vector.broadcast %cst_6 : f32 to vector<16x1xf32>
    %18 = arith.divf %16, %17 : vector<16x1xf32>
    %19 = vector.broadcast %18 : vector<16x1xf32> to vector<16x32xf32>
    %20 = arith.subf %0, %19 : vector<16x32xf32>
    %21 = arith.mulf %20, %20 : vector<16x32xf32>
    %cst_7 = arith.constant dense<0.000000e+00> : vector<16xf32>
    %22 = vector.multi_reduction <add>, %21, %cst_7 [1] : vector<16x32xf32> to vector<16xf32>
    %23 = vector.shape_cast %22 : vector<16xf32> to vector<16x1xf32>
    %cst_8 = arith.constant 3.200000e+01 : f32
    %24 = vector.broadcast %cst_8 : f32 to vector<16x1xf32>
    %25 = arith.divf %23, %24 : vector<16x1xf32>
    %26 = vector.broadcast %18 : vector<16x1xf32> to vector<16x32xf32>
    %27 = arith.subf %0, %26 : vector<16x32xf32>
    %cst_9 = arith.constant 9.99999974E-6 : f32
    %28 = vector.broadcast %cst_9 : f32 to vector<16x1xf32>
    %29 = arith.addf %25, %28 : vector<16x1xf32>
    %30 = math.rsqrt %29 : vector<16x1xf32>
    %31 = vector.broadcast %30 : vector<16x1xf32> to vector<16x32xf32>
    %32 = arith.mulf %27, %31 : vector<16x32xf32>
    %33 = vector.broadcast %10 : vector<1x32xf32> to vector<16x32xf32>
    %34 = arith.mulf %32, %33 : vector<16x32xf32>
    %35 = vector.broadcast %11 : vector<1x32xf32> to vector<16x32xf32>
    %36 = arith.addf %34, %35 : vector<16x32xf32>
    %37 = arith.truncf %36 : vector<16x32xf32> to vector<16x32xbf16>
    %c0_10 = arith.constant 0 : index
    %c0_11 = arith.constant 0 : index
    %c0_12 = arith.constant 0 : index
    %38 = vector.load %arg1[%c0_10, %c0_11, %c0_12] : memref<24x32x8xbf16, #tpu.memory_space<vmem>>, vector<1x32x8xbf16>
    %39 = vector.shape_cast %38 : vector<1x32x8xbf16> to vector<32x8xbf16>
    %cst_13 = arith.constant dense<0.000000e+00> : vector<16x8xf32>
    %40 = tpu.matmul %37, %39, %cst_13 {dimension_numbers = #tpu.dot_dimension_numbers<[1], [0], [0], [1], [0, 0, 1, 1], [], []>} : vector<16x32xbf16>, vector<32x8xbf16>, vector<16x8xf32> -> vector<16x8xf32>
    %c0_14 = arith.constant 0 : index
    %c0_15 = arith.constant 0 : index
    %c0_16 = arith.constant 0 : index
    %41 = vector.load %arg2[%c0_14, %c0_15, %c0_16] : memref<24x1x8xf32, #tpu.memory_space<vmem>>, vector<1x1x8xf32>
    %42 = vector.shape_cast %41 : vector<1x1x8xf32> to vector<1x8xf32>
    %43 = vector.broadcast %42 : vector<1x8xf32> to vector<16x8xf32>
    %44 = arith.addf %40, %43 : vector<16x8xf32>
    %c4 = arith.constant 4 : index
    %c0_17 = arith.constant 0 : index
    %c0_18 = arith.constant 0 : index
    %45 = vector.load %arg1[%c4, %c0_17, %c0_18] : memref<24x32x8xbf16, #tpu.memory_space<vmem>>, vector<1x32x8xbf16>
    %46 = vector.shape_cast %45 : vector<1x32x8xbf16> to vector<32x8xbf16>
    %cst_19 = arith.constant dense<0.000000e+00> : vector<16x8xf32>
    %47 = tpu.matmul %37, %46, %cst_19 {dimension_numbers = #tpu.dot_dimension_numbers<[1], [0], [0], [1], [0, 0, 1, 1], [], []>} : vector<16x32xbf16>, vector<32x8xbf16>, vector<16x8xf32> -> vector<16x8xf32>
    %c4_20 = arith.constant 4 : index
    %c0_21 = arith.constant 0 : index
    %c0_22 = arith.constant 0 : index
    %48 = vector.load %arg2[%c4_20, %c0_21, %c0_22] : memref<24x1x8xf32, #tpu.memory_space<vmem>>, vector<1x1x8xf32>
    %49 = vector.shape_cast %48 : vector<1x1x8xf32> to vector<1x8xf32>
    %50 = vector.broadcast %49 : vector<1x8xf32> to vector<16x8xf32>
    %51 = arith.addf %47, %50 : vector<16x8xf32>
    %c8 = arith.constant 8 : index
    %c0_23 = arith.constant 0 : index
    %c0_24 = arith.constant 0 : index
    %52 = vector.load %arg1[%c8, %c0_23, %c0_24] : memref<24x32x8xbf16, #tpu.memory_space<vmem>>, vector<1x32x8xbf16>
    %53 = vector.shape_cast %52 : vector<1x32x8xbf16> to vector<32x8xbf16>
    %cst_25 = arith.constant dense<0.000000e+00> : vector<16x8xf32>
    %54 = tpu.matmul %37, %53, %cst_25 {dimension_numbers = #tpu.dot_dimension_numbers<[1], [0], [0], [1], [0, 0, 1, 1], [], []>} : vector<16x32xbf16>, vector<32x8xbf16>, vector<16x8xf32> -> vector<16x8xf32>
    %c8_26 = arith.constant 8 : index
    %c0_27 = arith.constant 0 : index
    %c0_28 = arith.constant 0 : index
    %55 = vector.load %arg2[%c8_26, %c0_27, %c0_28] : memref<24x1x8xf32, #tpu.memory_space<vmem>>, vector<1x1x8xf32>
    %56 = vector.shape_cast %55 : vector<1x1x8xf32> to vector<1x8xf32>
    %57 = vector.broadcast %56 : vector<1x8xf32> to vector<16x8xf32>
    %58 = arith.addf %54, %57 : vector<16x8xf32>
    %59 = vector.shape_cast %44 : vector<16x8xf32> to vector<2x8x8xf32>
    %60 = vector.shape_cast %51 : vector<16x8xf32> to vector<2x8x8xf32>
    %61 = vector.shape_cast %58 : vector<16x8xf32> to vector<2x8x8xf32>
    "tpu.trace_start"() <{level = 10 : i32, message = "bqd,bkd->bqk"}> : () -> ()
    %cst_29 = arith.constant dense<0.000000e+00> : vector<2x8x8xf32>
    %62 = tpu.matmul %59, %60, %cst_29 {dimension_numbers = #tpu.dot_dimension_numbers<[2], [2], [1], [1], [0, 0, 0, 1, 1, 1], [0], [0]>} : vector<2x8x8xf32>, vector<2x8x8xf32>, vector<2x8x8xf32> -> vector<2x8x8xf32>
    "tpu.trace_stop"() : () -> ()
    %cst_30 = arith.constant 0.353553385 : f32
    %63 = vector.broadcast %cst_30 : f32 to vector<2x8x8xf32>
    %64 = arith.mulf %62, %63 : vector<2x8x8xf32>
    %65 = vector.shape_cast %6 : vector<8x8xf32> to vector<1x8x8xf32>
    %66 = vector.broadcast %65 : vector<1x8x8xf32> to vector<2x8x8xf32>
    %67 = arith.addf %64, %66 : vector<2x8x8xf32>
    %cst_31 = arith.constant dense<0xFF800000> : vector<2x8xf32>
    %68 = vector.multi_reduction <maximumf>, %67, %cst_31 [2] : vector<2x8x8xf32> to vector<2x8xf32>
    %69 = vector.shape_cast %68 : vector<2x8xf32> to vector<2x8x1xf32>
    %70 = vector.broadcast %69 : vector<2x8x1xf32> to vector<2x8x8xf32>
    %71 = arith.subf %67, %70 : vector<2x8x8xf32>
    %72 = math.exp %71 : vector<2x8x8xf32>
    %cst_32 = arith.constant dense<0.000000e+00> : vector<2x8xf32>
    %73 = vector.multi_reduction <add>, %72, %cst_32 [2] : vector<2x8x8xf32> to vector<2x8xf32>
    %74 = vector.shape_cast %73 : vector<2x8xf32> to vector<2x8x1xf32>
    %75 = tpu.reciprocal %74 {approx = true} : vector<2x8x1xf32> -> vector<2x8x1xf32>
    %76 = vector.broadcast %75 : vector<2x8x1xf32> to vector<2x8x8xf32>
    %77 = arith.mulf %72, %76 : vector<2x8x8xf32>
    "tpu.trace_start"() <{level = 10 : i32, message = "bqk,bkd->bqd"}> : () -> ()
    %cst_33 = arith.constant dense<0.000000e+00> : vector<2x8x8xf32>
    %78 = tpu.matmul %77, %61, %cst_33 {dimension_numbers = #tpu.dot_dimension_numbers<[2], [1], [1], [2], [0, 0, 0, 1, 1, 2], [0], [0]>} : vector<2x8x8xf32>, vector<2x8x8xf32>, vector<2x8x8xf32> -> vector<2x8x8xf32>
    "tpu.trace_stop"() : () -> ()
    %79 = vector.shape_cast %78 : vector<2x8x8xf32> to vector<16x8xf32>
    %80 = arith.truncf %79 : vector<16x8xf32> to vector<16x8xbf16>
    %c0_34 = arith.constant 0 : index
    %c0_35 = arith.constant 0 : index
    %c0_36 = arith.constant 0 : index
    %81 = vector.load %arg3[%c0_34, %c0_35, %c0_36] : memref<8x8x32xbf16, #tpu.memory_space<vmem>>, vector<1x8x32xbf16>
    %82 = vector.shape_cast %81 : vector<1x8x32xbf16> to vector<8x32xbf16>
    %cst_37 = arith.constant dense<0.000000e+00> : vector<16x32xf32>
    %83 = tpu.matmul %80, %82, %cst_37 {dimension_numbers = #tpu.dot_dimension_numbers<[1], [0], [0], [1], [0, 0, 1, 1], [], []>} : vector<16x8xbf16>, vector<8x32xbf16>, vector<16x32xf32> -> vector<16x32xf32>
    %c1 = arith.constant 1 : index
    %c0_38 = arith.constant 0 : index
    %c0_39 = arith.constant 0 : index
    %84 = vector.load %arg1[%c1, %c0_38, %c0_39] : memref<24x32x8xbf16, #tpu.memory_space<vmem>>, vector<1x32x8xbf16>
    %85 = vector.shape_cast %84 : vector<1x32x8xbf16> to vector<32x8xbf16>
    %cst_40 = arith.constant dense<0.000000e+00> : vector<16x8xf32>
    %86 = tpu.matmul %37, %85, %cst_40 {dimension_numbers = #tpu.dot_dimension_numbers<[1], [0], [0], [1], [0, 0, 1, 1], [], []>} : vector<16x32xbf16>, vector<32x8xbf16>, vector<16x8xf32> -> vector<16x8xf32>
    %c1_41 = arith.constant 1 : index
    %c0_42 = arith.constant 0 : index
    %c0_43 = arith.constant 0 : index
    %87 = vector.load %arg2[%c1_41, %c0_42, %c0_43] : memref<24x1x8xf32, #tpu.memory_space<vmem>>, vector<1x1x8xf32>
    %88 = vector.shape_cast %87 : vector<1x1x8xf32> to vector<1x8xf32>
    %89 = vector.broadcast %88 : vector<1x8xf32> to vector<16x8xf32>
    %90 = arith.addf %86, %89 : vector<16x8xf32>
    %c5 = arith.constant 5 : index
    %c0_44 = arith.constant 0 : index
    %c0_45 = arith.constant 0 : index
    %91 = vector.load %arg1[%c5, %c0_44, %c0_45] : memref<24x32x8xbf16, #tpu.memory_space<vmem>>, vector<1x32x8xbf16>
    %92 = vector.shape_cast %91 : vector<1x32x8xbf16> to vector<32x8xbf16>
    %cst_46 = arith.constant dense<0.000000e+00> : vector<16x8xf32>
    %93 = tpu.matmul %37, %92, %cst_46 {dimension_numbers = #tpu.dot_dimension_numbers<[1], [0], [0], [1], [0, 0, 1, 1], [], []>} : vector<16x32xbf16>, vector<32x8xbf16>, vector<16x8xf32> -> vector<16x8xf32>
    %c5_47 = arith.constant 5 : index
    %c0_48 = arith.constant 0 : index
    %c0_49 = arith.constant 0 : index
    %94 = vector.load %arg2[%c5_47, %c0_48, %c0_49] : memref<24x1x8xf32, #tpu.memory_space<vmem>>, vector<1x1x8xf32>
    %95 = vector.shape_cast %94 : vector<1x1x8xf32> to vector<1x8xf32>
    %96 = vector.broadcast %95 : vector<1x8xf32> to vector<16x8xf32>
    %97 = arith.addf %93, %96 : vector<16x8xf32>
    %c9 = arith.constant 9 : index
    %c0_50 = arith.constant 0 : index
    %c0_51 = arith.constant 0 : index
    %98 = vector.load %arg1[%c9, %c0_50, %c0_51] : memref<24x32x8xbf16, #tpu.memory_space<vmem>>, vector<1x32x8xbf16>
    %99 = vector.shape_cast %98 : vector<1x32x8xbf16> to vector<32x8xbf16>
    %cst_52 = arith.constant dense<0.000000e+00> : vector<16x8xf32>
    %100 = tpu.matmul %37, %99, %cst_52 {dimension_numbers = #tpu.dot_dimension_numbers<[1], [0], [0], [1], [0, 0, 1, 1], [], []>} : vector<16x32xbf16>, vector<32x8xbf16>, vector<16x8xf32> -> vector<16x8xf32>
    %c9_53 = arith.constant 9 : index
    %c0_54 = arith.constant 0 : index
    %c0_55 = arith.constant 0 : index
    %101 = vector.load %arg2[%c9_53, %c0_54, %c0_55] : memref<24x1x8xf32, #tpu.memory_space<vmem>>, vector<1x1x8xf32>
    %102 = vector.shape_cast %101 : vector<1x1x8xf32> to vector<1x8xf32>
    %103 = vector.broadcast %102 : vector<1x8xf32> to vector<16x8xf32>
    %104 = arith.addf %100, %103 : vector<16x8xf32>
    %105 = vector.shape_cast %90 : vector<16x8xf32> to vector<2x8x8xf32>
    %106 = vector.shape_cast %97 : vector<16x8xf32> to vector<2x8x8xf32>
    %107 = vector.shape_cast %104 : vector<16x8xf32> to vector<2x8x8xf32>
    "tpu.trace_start"() <{level = 10 : i32, message = "bqd,bkd->bqk"}> : () -> ()
    %cst_56 = arith.constant dense<0.000000e+00> : vector<2x8x8xf32>
    %108 = tpu.matmul %105, %106, %cst_56 {dimension_numbers = #tpu.dot_dimension_numbers<[2], [2], [1], [1], [0, 0, 0, 1, 1, 1], [0], [0]>} : vector<2x8x8xf32>, vector<2x8x8xf32>, vector<2x8x8xf32> -> vector<2x8x8xf32>
    "tpu.trace_stop"() : () -> ()
    %cst_57 = arith.constant 0.353553385 : f32
    %109 = vector.broadcast %cst_57 : f32 to vector<2x8x8xf32>
    %110 = arith.mulf %108, %109 : vector<2x8x8xf32>
    %111 = vector.shape_cast %6 : vector<8x8xf32> to vector<1x8x8xf32>
    %112 = vector.broadcast %111 : vector<1x8x8xf32> to vector<2x8x8xf32>
    %113 = arith.addf %110, %112 : vector<2x8x8xf32>
    %cst_58 = arith.constant dense<0xFF800000> : vector<2x8xf32>
    %114 = vector.multi_reduction <maximumf>, %113, %cst_58 [2] : vector<2x8x8xf32> to vector<2x8xf32>
    %115 = vector.shape_cast %114 : vector<2x8xf32> to vector<2x8x1xf32>
    %116 = vector.broadcast %115 : vector<2x8x1xf32> to vector<2x8x8xf32>
    %117 = arith.subf %113, %116 : vector<2x8x8xf32>
    %118 = math.exp %117 : vector<2x8x8xf32>
    %cst_59 = arith.constant dense<0.000000e+00> : vector<2x8xf32>
    %119 = vector.multi_reduction <add>, %118, %cst_59 [2] : vector<2x8x8xf32> to vector<2x8xf32>
    %120 = vector.shape_cast %119 : vector<2x8xf32> to vector<2x8x1xf32>
    %121 = tpu.reciprocal %120 {approx = true} : vector<2x8x1xf32> -> vector<2x8x1xf32>
    %122 = vector.broadcast %121 : vector<2x8x1xf32> to vector<2x8x8xf32>
    %123 = arith.mulf %118, %122 : vector<2x8x8xf32>
    "tpu.trace_start"() <{level = 10 : i32, message = "bqk,bkd->bqd"}> : () -> ()
    %cst_60 = arith.constant dense<0.000000e+00> : vector<2x8x8xf32>
    %124 = tpu.matmul %123, %107, %cst_60 {dimension_numbers = #tpu.dot_dimension_numbers<[2], [1], [1], [2], [0, 0, 0, 1, 1, 2], [0], [0]>} : vector<2x8x8xf32>, vector<2x8x8xf32>, vector<2x8x8xf32> -> vector<2x8x8xf32>
    "tpu.trace_stop"() : () -> ()
    %125 = vector.shape_cast %124 : vector<2x8x8xf32> to vector<16x8xf32>
    %126 = arith.truncf %125 : vector<16x8xf32> to vector<16x8xbf16>
    %c1_61 = arith.constant 1 : index
    %c0_62 = arith.constant 0 : index
    %c0_63 = arith.constant 0 : index
    %127 = vector.load %arg3[%c1_61, %c0_62, %c0_63] : memref<8x8x32xbf16, #tpu.memory_space<vmem>>, vector<1x8x32xbf16>
    %128 = vector.shape_cast %127 : vector<1x8x32xbf16> to vector<8x32xbf16>
    %cst_64 = arith.constant dense<0.000000e+00> : vector<16x32xf32>
    %129 = tpu.matmul %126, %128, %cst_64 {dimension_numbers = #tpu.dot_dimension_numbers<[1], [0], [0], [1], [0, 0, 1, 1], [], []>} : vector<16x8xbf16>, vector<8x32xbf16>, vector<16x32xf32> -> vector<16x32xf32>
    %130 = arith.addf %83, %129 : vector<16x32xf32>
    %c2 = arith.constant 2 : index
    %c0_65 = arith.constant 0 : index
    %c0_66 = arith.constant 0 : index
    %131 = vector.load %arg1[%c2, %c0_65, %c0_66] : memref<24x32x8xbf16, #tpu.memory_space<vmem>>, vector<1x32x8xbf16>
    %132 = vector.shape_cast %131 : vector<1x32x8xbf16> to vector<32x8xbf16>
    %cst_67 = arith.constant dense<0.000000e+00> : vector<16x8xf32>
    %133 = tpu.matmul %37, %132, %cst_67 {dimension_numbers = #tpu.dot_dimension_numbers<[1], [0], [0], [1], [0, 0, 1, 1], [], []>} : vector<16x32xbf16>, vector<32x8xbf16>, vector<16x8xf32> -> vector<16x8xf32>
    %c2_68 = arith.constant 2 : index
    %c0_69 = arith.constant 0 : index
    %c0_70 = arith.constant 0 : index
    %134 = vector.load %arg2[%c2_68, %c0_69, %c0_70] : memref<24x1x8xf32, #tpu.memory_space<vmem>>, vector<1x1x8xf32>
    %135 = vector.shape_cast %134 : vector<1x1x8xf32> to vector<1x8xf32>
    %136 = vector.broadcast %135 : vector<1x8xf32> to vector<16x8xf32>
    %137 = arith.addf %133, %136 : vector<16x8xf32>
    %c6 = arith.constant 6 : index
    %c0_71 = arith.constant 0 : index
    %c0_72 = arith.constant 0 : index
    %138 = vector.load %arg1[%c6, %c0_71, %c0_72] : memref<24x32x8xbf16, #tpu.memory_space<vmem>>, vector<1x32x8xbf16>
    %139 = vector.shape_cast %138 : vector<1x32x8xbf16> to vector<32x8xbf16>
    %cst_73 = arith.constant dense<0.000000e+00> : vector<16x8xf32>
    %140 = tpu.matmul %37, %139, %cst_73 {dimension_numbers = #tpu.dot_dimension_numbers<[1], [0], [0], [1], [0, 0, 1, 1], [], []>} : vector<16x32xbf16>, vector<32x8xbf16>, vector<16x8xf32> -> vector<16x8xf32>
    %c6_74 = arith.constant 6 : index
    %c0_75 = arith.constant 0 : index
    %c0_76 = arith.constant 0 : index
    %141 = vector.load %arg2[%c6_74, %c0_75, %c0_76] : memref<24x1x8xf32, #tpu.memory_space<vmem>>, vector<1x1x8xf32>
    %142 = vector.shape_cast %141 : vector<1x1x8xf32> to vector<1x8xf32>
    %143 = vector.broadcast %142 : vector<1x8xf32> to vector<16x8xf32>
    %144 = arith.addf %140, %143 : vector<16x8xf32>
    %c10 = arith.constant 10 : index
    %c0_77 = arith.constant 0 : index
    %c0_78 = arith.constant 0 : index
    %145 = vector.load %arg1[%c10, %c0_77, %c0_78] : memref<24x32x8xbf16, #tpu.memory_space<vmem>>, vector<1x32x8xbf16>
    %146 = vector.shape_cast %145 : vector<1x32x8xbf16> to vector<32x8xbf16>
    %cst_79 = arith.constant dense<0.000000e+00> : vector<16x8xf32>
    %147 = tpu.matmul %37, %146, %cst_79 {dimension_numbers = #tpu.dot_dimension_numbers<[1], [0], [0], [1], [0, 0, 1, 1], [], []>} : vector<16x32xbf16>, vector<32x8xbf16>, vector<16x8xf32> -> vector<16x8xf32>
    %c10_80 = arith.constant 10 : index
    %c0_81 = arith.constant 0 : index
    %c0_82 = arith.constant 0 : index
    %148 = vector.load %arg2[%c10_80, %c0_81, %c0_82] : memref<24x1x8xf32, #tpu.memory_space<vmem>>, vector<1x1x8xf32>
    %149 = vector.shape_cast %148 : vector<1x1x8xf32> to vector<1x8xf32>
    %150 = vector.broadcast %149 : vector<1x8xf32> to vector<16x8xf32>
    %151 = arith.addf %147, %150 : vector<16x8xf32>
    %152 = vector.shape_cast %137 : vector<16x8xf32> to vector<2x8x8xf32>
    %153 = vector.shape_cast %144 : vector<16x8xf32> to vector<2x8x8xf32>
    %154 = vector.shape_cast %151 : vector<16x8xf32> to vector<2x8x8xf32>
    "tpu.trace_start"() <{level = 10 : i32, message = "bqd,bkd->bqk"}> : () -> ()
    %cst_83 = arith.constant dense<0.000000e+00> : vector<2x8x8xf32>
    %155 = tpu.matmul %152, %153, %cst_83 {dimension_numbers = #tpu.dot_dimension_numbers<[2], [2], [1], [1], [0, 0, 0, 1, 1, 1], [0], [0]>} : vector<2x8x8xf32>, vector<2x8x8xf32>, vector<2x8x8xf32> -> vector<2x8x8xf32>
    "tpu.trace_stop"() : () -> ()
    %cst_84 = arith.constant 0.353553385 : f32
    %156 = vector.broadcast %cst_84 : f32 to vector<2x8x8xf32>
    %157 = arith.mulf %155, %156 : vector<2x8x8xf32>
    %158 = vector.shape_cast %6 : vector<8x8xf32> to vector<1x8x8xf32>
    %159 = vector.broadcast %158 : vector<1x8x8xf32> to vector<2x8x8xf32>
    %160 = arith.addf %157, %159 : vector<2x8x8xf32>
    %cst_85 = arith.constant dense<0xFF800000> : vector<2x8xf32>
    %161 = vector.multi_reduction <maximumf>, %160, %cst_85 [2] : vector<2x8x8xf32> to vector<2x8xf32>
    %162 = vector.shape_cast %161 : vector<2x8xf32> to vector<2x8x1xf32>
    %163 = vector.broadcast %162 : vector<2x8x1xf32> to vector<2x8x8xf32>
    %164 = arith.subf %160, %163 : vector<2x8x8xf32>
    %165 = math.exp %164 : vector<2x8x8xf32>
    %cst_86 = arith.constant dense<0.000000e+00> : vector<2x8xf32>
    %166 = vector.multi_reduction <add>, %165, %cst_86 [2] : vector<2x8x8xf32> to vector<2x8xf32>
    %167 = vector.shape_cast %166 : vector<2x8xf32> to vector<2x8x1xf32>
    %168 = tpu.reciprocal %167 {approx = true} : vector<2x8x1xf32> -> vector<2x8x1xf32>
    %169 = vector.broadcast %168 : vector<2x8x1xf32> to vector<2x8x8xf32>
    %170 = arith.mulf %165, %169 : vector<2x8x8xf32>
    "tpu.trace_start"() <{level = 10 : i32, message = "bqk,bkd->bqd"}> : () -> ()
    %cst_87 = arith.constant dense<0.000000e+00> : vector<2x8x8xf32>
    %171 = tpu.matmul %170, %154, %cst_87 {dimension_numbers = #tpu.dot_dimension_numbers<[2], [1], [1], [2], [0, 0, 0, 1, 1, 2], [0], [0]>} : vector<2x8x8xf32>, vector<2x8x8xf32>, vector<2x8x8xf32> -> vector<2x8x8xf32>
    "tpu.trace_stop"() : () -> ()
    %172 = vector.shape_cast %171 : vector<2x8x8xf32> to vector<16x8xf32>
    %173 = arith.truncf %172 : vector<16x8xf32> to vector<16x8xbf16>
    %c2_88 = arith.constant 2 : index
    %c0_89 = arith.constant 0 : index
    %c0_90 = arith.constant 0 : index
    %174 = vector.load %arg3[%c2_88, %c0_89, %c0_90] : memref<8x8x32xbf16, #tpu.memory_space<vmem>>, vector<1x8x32xbf16>
    %175 = vector.shape_cast %174 : vector<1x8x32xbf16> to vector<8x32xbf16>
    %cst_91 = arith.constant dense<0.000000e+00> : vector<16x32xf32>
    %176 = tpu.matmul %173, %175, %cst_91 {dimension_numbers = #tpu.dot_dimension_numbers<[1], [0], [0], [1], [0, 0, 1, 1], [], []>} : vector<16x8xbf16>, vector<8x32xbf16>, vector<16x32xf32> -> vector<16x32xf32>
    %177 = arith.addf %130, %176 : vector<16x32xf32>
    %c3 = arith.constant 3 : index
    %c0_92 = arith.constant 0 : index
    %c0_93 = arith.constant 0 : index
    %178 = vector.load %arg1[%c3, %c0_92, %c0_93] : memref<24x32x8xbf16, #tpu.memory_space<vmem>>, vector<1x32x8xbf16>
    %179 = vector.shape_cast %178 : vector<1x32x8xbf16> to vector<32x8xbf16>
    %cst_94 = arith.constant dense<0.000000e+00> : vector<16x8xf32>
    %180 = tpu.matmul %37, %179, %cst_94 {dimension_numbers = #tpu.dot_dimension_numbers<[1], [0], [0], [1], [0, 0, 1, 1], [], []>} : vector<16x32xbf16>, vector<32x8xbf16>, vector<16x8xf32> -> vector<16x8xf32>
    %c3_95 = arith.constant 3 : index
    %c0_96 = arith.constant 0 : index
    %c0_97 = arith.constant 0 : index
    %181 = vector.load %arg2[%c3_95, %c0_96, %c0_97] : memref<24x1x8xf32, #tpu.memory_space<vmem>>, vector<1x1x8xf32>
    %182 = vector.shape_cast %181 : vector<1x1x8xf32> to vector<1x8xf32>
    %183 = vector.broadcast %182 : vector<1x8xf32> to vector<16x8xf32>
    %184 = arith.addf %180, %183 : vector<16x8xf32>
    %c7 = arith.constant 7 : index
    %c0_98 = arith.constant 0 : index
    %c0_99 = arith.constant 0 : index
    %185 = vector.load %arg1[%c7, %c0_98, %c0_99] : memref<24x32x8xbf16, #tpu.memory_space<vmem>>, vector<1x32x8xbf16>
    %186 = vector.shape_cast %185 : vector<1x32x8xbf16> to vector<32x8xbf16>
    %cst_100 = arith.constant dense<0.000000e+00> : vector<16x8xf32>
    %187 = tpu.matmul %37, %186, %cst_100 {dimension_numbers = #tpu.dot_dimension_numbers<[1], [0], [0], [1], [0, 0, 1, 1], [], []>} : vector<16x32xbf16>, vector<32x8xbf16>, vector<16x8xf32> -> vector<16x8xf32>
    %c7_101 = arith.constant 7 : index
    %c0_102 = arith.constant 0 : index
    %c0_103 = arith.constant 0 : index
    %188 = vector.load %arg2[%c7_101, %c0_102, %c0_103] : memref<24x1x8xf32, #tpu.memory_space<vmem>>, vector<1x1x8xf32>
    %189 = vector.shape_cast %188 : vector<1x1x8xf32> to vector<1x8xf32>
    %190 = vector.broadcast %189 : vector<1x8xf32> to vector<16x8xf32>
    %191 = arith.addf %187, %190 : vector<16x8xf32>
    %c11 = arith.constant 11 : index
    %c0_104 = arith.constant 0 : index
    %c0_105 = arith.constant 0 : index
    %192 = vector.load %arg1[%c11, %c0_104, %c0_105] : memref<24x32x8xbf16, #tpu.memory_space<vmem>>, vector<1x32x8xbf16>
    %193 = vector.shape_cast %192 : vector<1x32x8xbf16> to vector<32x8xbf16>
    %cst_106 = arith.constant dense<0.000000e+00> : vector<16x8xf32>
    %194 = tpu.matmul %37, %193, %cst_106 {dimension_numbers = #tpu.dot_dimension_numbers<[1], [0], [0], [1], [0, 0, 1, 1], [], []>} : vector<16x32xbf16>, vector<32x8xbf16>, vector<16x8xf32> -> vector<16x8xf32>
    %c11_107 = arith.constant 11 : index
    %c0_108 = arith.constant 0 : index
    %c0_109 = arith.constant 0 : index
    %195 = vector.load %arg2[%c11_107, %c0_108, %c0_109] : memref<24x1x8xf32, #tpu.memory_space<vmem>>, vector<1x1x8xf32>
    %196 = vector.shape_cast %195 : vector<1x1x8xf32> to vector<1x8xf32>
    %197 = vector.broadcast %196 : vector<1x8xf32> to vector<16x8xf32>
    %198 = arith.addf %194, %197 : vector<16x8xf32>
    %199 = vector.shape_cast %184 : vector<16x8xf32> to vector<2x8x8xf32>
    %200 = vector.shape_cast %191 : vector<16x8xf32> to vector<2x8x8xf32>
    %201 = vector.shape_cast %198 : vector<16x8xf32> to vector<2x8x8xf32>
    "tpu.trace_start"() <{level = 10 : i32, message = "bqd,bkd->bqk"}> : () -> ()
    %cst_110 = arith.constant dense<0.000000e+00> : vector<2x8x8xf32>
    %202 = tpu.matmul %199, %200, %cst_110 {dimension_numbers = #tpu.dot_dimension_numbers<[2], [2], [1], [1], [0, 0, 0, 1, 1, 1], [0], [0]>} : vector<2x8x8xf32>, vector<2x8x8xf32>, vector<2x8x8xf32> -> vector<2x8x8xf32>
    "tpu.trace_stop"() : () -> ()
    %cst_111 = arith.constant 0.353553385 : f32
    %203 = vector.broadcast %cst_111 : f32 to vector<2x8x8xf32>
    %204 = arith.mulf %202, %203 : vector<2x8x8xf32>
    %205 = vector.shape_cast %6 : vector<8x8xf32> to vector<1x8x8xf32>
    %206 = vector.broadcast %205 : vector<1x8x8xf32> to vector<2x8x8xf32>
    %207 = arith.addf %204, %206 : vector<2x8x8xf32>
    %cst_112 = arith.constant dense<0xFF800000> : vector<2x8xf32>
    %208 = vector.multi_reduction <maximumf>, %207, %cst_112 [2] : vector<2x8x8xf32> to vector<2x8xf32>
    %209 = vector.shape_cast %208 : vector<2x8xf32> to vector<2x8x1xf32>
    %210 = vector.broadcast %209 : vector<2x8x1xf32> to vector<2x8x8xf32>
    %211 = arith.subf %207, %210 : vector<2x8x8xf32>
    %212 = math.exp %211 : vector<2x8x8xf32>
    %cst_113 = arith.constant dense<0.000000e+00> : vector<2x8xf32>
    %213 = vector.multi_reduction <add>, %212, %cst_113 [2] : vector<2x8x8xf32> to vector<2x8xf32>
    %214 = vector.shape_cast %213 : vector<2x8xf32> to vector<2x8x1xf32>
    %215 = tpu.reciprocal %214 {approx = true} : vector<2x8x1xf32> -> vector<2x8x1xf32>
    %216 = vector.broadcast %215 : vector<2x8x1xf32> to vector<2x8x8xf32>
    %217 = arith.mulf %212, %216 : vector<2x8x8xf32>
    "tpu.trace_start"() <{level = 10 : i32, message = "bqk,bkd->bqd"}> : () -> ()
    %cst_114 = arith.constant dense<0.000000e+00> : vector<2x8x8xf32>
    %218 = tpu.matmul %217, %201, %cst_114 {dimension_numbers = #tpu.dot_dimension_numbers<[2], [1], [1], [2], [0, 0, 0, 1, 1, 2], [0], [0]>} : vector<2x8x8xf32>, vector<2x8x8xf32>, vector<2x8x8xf32> -> vector<2x8x8xf32>
    "tpu.trace_stop"() : () -> ()
    %219 = vector.shape_cast %218 : vector<2x8x8xf32> to vector<16x8xf32>
    %220 = arith.truncf %219 : vector<16x8xf32> to vector<16x8xbf16>
    %c3_115 = arith.constant 3 : index
    %c0_116 = arith.constant 0 : index
    %c0_117 = arith.constant 0 : index
    %221 = vector.load %arg3[%c3_115, %c0_116, %c0_117] : memref<8x8x32xbf16, #tpu.memory_space<vmem>>, vector<1x8x32xbf16>
    %222 = vector.shape_cast %221 : vector<1x8x32xbf16> to vector<8x32xbf16>
    %cst_118 = arith.constant dense<0.000000e+00> : vector<16x32xf32>
    %223 = tpu.matmul %220, %222, %cst_118 {dimension_numbers = #tpu.dot_dimension_numbers<[1], [0], [0], [1], [0, 0, 1, 1], [], []>} : vector<16x8xbf16>, vector<8x32xbf16>, vector<16x32xf32> -> vector<16x32xf32>
    %224 = arith.addf %177, %223 : vector<16x32xf32>
    %225 = arith.addf %0, %224 : vector<16x32xf32>
    %226 = vector.broadcast %9 : vector<1x32xf32> to vector<16x32xf32>
    %227 = arith.addf %225, %226 : vector<16x32xf32>
    %cst_119 = arith.constant dense<0.000000e+00> : vector<16xf32>
    %228 = vector.multi_reduction <add>, %227, %cst_119 [1] : vector<16x32xf32> to vector<16xf32>
    %229 = vector.shape_cast %228 : vector<16xf32> to vector<16x1xf32>
    %cst_120 = arith.constant 3.200000e+01 : f32
    %230 = vector.broadcast %cst_120 : f32 to vector<16x1xf32>
    %231 = arith.divf %229, %230 : vector<16x1xf32>
    %232 = vector.broadcast %231 : vector<16x1xf32> to vector<16x32xf32>
    %233 = arith.subf %227, %232 : vector<16x32xf32>
    %234 = arith.mulf %233, %233 : vector<16x32xf32>
    %cst_121 = arith.constant dense<0.000000e+00> : vector<16xf32>
    %235 = vector.multi_reduction <add>, %234, %cst_121 [1] : vector<16x32xf32> to vector<16xf32>
    %236 = vector.shape_cast %235 : vector<16xf32> to vector<16x1xf32>
    %cst_122 = arith.constant 3.200000e+01 : f32
    %237 = vector.broadcast %cst_122 : f32 to vector<16x1xf32>
    %238 = arith.divf %236, %237 : vector<16x1xf32>
    %239 = vector.broadcast %231 : vector<16x1xf32> to vector<16x32xf32>
    %240 = arith.subf %227, %239 : vector<16x32xf32>
    %cst_123 = arith.constant 9.99999974E-6 : f32
    %241 = vector.broadcast %cst_123 : f32 to vector<16x1xf32>
    %242 = arith.addf %238, %241 : vector<16x1xf32>
    %243 = math.rsqrt %242 : vector<16x1xf32>
    %244 = vector.broadcast %243 : vector<16x1xf32> to vector<16x32xf32>
    %245 = arith.mulf %240, %244 : vector<16x32xf32>
    %246 = vector.broadcast %12 : vector<1x32xf32> to vector<16x32xf32>
    %247 = arith.mulf %245, %246 : vector<16x32xf32>
    %248 = vector.broadcast %13 : vector<1x32xf32> to vector<16x32xf32>
    %249 = arith.addf %247, %248 : vector<16x32xf32>
    %250 = arith.truncf %249 : vector<16x32xf32> to vector<16x32xbf16>
    %c0_124 = arith.constant 0 : index
    %c0_125 = arith.constant 0 : index
    %c0_126 = arith.constant 0 : index
    %251 = vector.load %arg4[%c0_124, %c0_125, %c0_126] : memref<2x32x128xbf16, #tpu.memory_space<vmem>>, vector<1x32x128xbf16>
    %252 = vector.shape_cast %251 : vector<1x32x128xbf16> to vector<32x128xbf16>
    %cst_127 = arith.constant dense<0.000000e+00> : vector<16x128xf32>
    %253 = tpu.matmul %250, %252, %cst_127 {dimension_numbers = #tpu.dot_dimension_numbers<[1], [0], [0], [1], [0, 0, 1, 1], [], []>} : vector<16x32xbf16>, vector<32x128xbf16>, vector<16x128xf32> -> vector<16x128xf32>
    %c0_128 = arith.constant 0 : index
    %c0_129 = arith.constant 0 : index
    %c0_130 = arith.constant 0 : index
    %254 = vector.load %arg6[%c0_128, %c0_129, %c0_130] : memref<2x1x128xf32, #tpu.memory_space<vmem>>, vector<1x1x128xf32>
    %255 = vector.shape_cast %254 : vector<1x1x128xf32> to vector<1x128xf32>
    %256 = vector.broadcast %255 : vector<1x128xf32> to vector<16x128xf32>
    %257 = arith.addf %253, %256 : vector<16x128xf32>
    %cst_131 = arith.constant 5.000000e-01 : f32
    %258 = vector.broadcast %cst_131 : f32 to vector<16x128xf32>
    %259 = arith.mulf %258, %257 : vector<16x128xf32>
    %cst_132 = arith.constant 4.471500e-02 : f32
    %260 = vector.broadcast %cst_132 : f32 to vector<16x128xf32>
    %261 = arith.mulf %260, %257 : vector<16x128xf32>
    %262 = arith.mulf %261, %257 : vector<16x128xf32>
    %263 = arith.mulf %262, %257 : vector<16x128xf32>
    %264 = arith.addf %257, %263 : vector<16x128xf32>
    %cst_133 = arith.constant 0.797884583 : f32
    %265 = vector.broadcast %cst_133 : f32 to vector<16x128xf32>
    %266 = arith.mulf %265, %264 : vector<16x128xf32>
    %267 = math.tanh %266 : vector<16x128xf32>
    %cst_134 = arith.constant 1.000000e+00 : f32
    %268 = vector.broadcast %cst_134 : f32 to vector<16x128xf32>
    %269 = arith.addf %268, %267 : vector<16x128xf32>
    %270 = arith.mulf %259, %269 : vector<16x128xf32>
    %271 = arith.truncf %270 : vector<16x128xf32> to vector<16x128xbf16>
    %c0_135 = arith.constant 0 : index
    %c0_136 = arith.constant 0 : index
    %c0_137 = arith.constant 0 : index
    %272 = vector.load %arg5[%c0_135, %c0_136, %c0_137] : memref<2x128x32xbf16, #tpu.memory_space<vmem>>, vector<1x128x32xbf16>
    %273 = vector.shape_cast %272 : vector<1x128x32xbf16> to vector<128x32xbf16>
    %cst_138 = arith.constant dense<0.000000e+00> : vector<16x32xf32>
    %274 = tpu.matmul %271, %273, %cst_138 {dimension_numbers = #tpu.dot_dimension_numbers<[1], [0], [0], [1], [0, 0, 1, 1], [], []>} : vector<16x128xbf16>, vector<128x32xbf16>, vector<16x32xf32> -> vector<16x32xf32>
    %275 = vector.broadcast %14 : vector<1x32xf32> to vector<16x32xf32>
    %276 = arith.addf %274, %275 : vector<16x32xf32>
    %277 = arith.addf %227, %276 : vector<16x32xf32>
    %c1_139 = arith.constant 1 : index
    %c0_140 = arith.constant 0 : index
    %c0_141 = arith.constant 0 : index
    %278 = vector.load %arg7[%c1_139, %c0_140, %c0_141] : memref<2x6x32xf32, #tpu.memory_space<vmem>>, vector<1x6x32xf32>
    %279 = vector.shape_cast %278 : vector<1x6x32xf32> to vector<6x32xf32>
    %280 = vector.extract_strided_slice %279 {offsets = [0, 0], sizes = [1, 32], strides = [1, 1]} : vector<6x32xf32> to vector<1x32xf32>
    %281 = vector.extract_strided_slice %279 {offsets = [1, 0], sizes = [1, 32], strides = [1, 1]} : vector<6x32xf32> to vector<1x32xf32>
    %282 = vector.extract_strided_slice %279 {offsets = [2, 0], sizes = [1, 32], strides = [1, 1]} : vector<6x32xf32> to vector<1x32xf32>
    %283 = vector.extract_strided_slice %279 {offsets = [3, 0], sizes = [1, 32], strides = [1, 1]} : vector<6x32xf32> to vector<1x32xf32>
    %284 = vector.extract_strided_slice %279 {offsets = [4, 0], sizes = [1, 32], strides = [1, 1]} : vector<6x32xf32> to vector<1x32xf32>
    %285 = vector.extract_strided_slice %279 {offsets = [5, 0], sizes = [1, 32], strides = [1, 1]} : vector<6x32xf32> to vector<1x32xf32>
    %cst_142 = arith.constant dense<0.000000e+00> : vector<16xf32>
    %286 = vector.multi_reduction <add>, %277, %cst_142 [1] : vector<16x32xf32> to vector<16xf32>
    %287 = vector.shape_cast %286 : vector<16xf32> to vector<16x1xf32>
    %cst_143 = arith.constant 3.200000e+01 : f32
    %288 = vector.broadcast %cst_143 : f32 to vector<16x1xf32>
    %289 = arith.divf %287, %288 : vector<16x1xf32>
    %290 = vector.broadcast %289 : vector<16x1xf32> to vector<16x32xf32>
    %291 = arith.subf %277, %290 : vector<16x32xf32>
    %292 = arith.mulf %291, %291 : vector<16x32xf32>
    %cst_144 = arith.constant dense<0.000000e+00> : vector<16xf32>
    %293 = vector.multi_reduction <add>, %292, %cst_144 [1] : vector<16x32xf32> to vector<16xf32>
    %294 = vector.shape_cast %293 : vector<16xf32> to vector<16x1xf32>
    %cst_145 = arith.constant 3.200000e+01 : f32
    %295 = vector.broadcast %cst_145 : f32 to vector<16x1xf32>
    %296 = arith.divf %294, %295 : vector<16x1xf32>
    %297 = vector.broadcast %289 : vector<16x1xf32> to vector<16x32xf32>
    %298 = arith.subf %277, %297 : vector<16x32xf32>
    %cst_146 = arith.constant 9.99999974E-6 : f32
    %299 = vector.broadcast %cst_146 : f32 to vector<16x1xf32>
    %300 = arith.addf %296, %299 : vector<16x1xf32>
    %301 = math.rsqrt %300 : vector<16x1xf32>
    %302 = vector.broadcast %301 : vector<16x1xf32> to vector<16x32xf32>
    %303 = arith.mulf %298, %302 : vector<16x32xf32>
    %304 = vector.broadcast %281 : vector<1x32xf32> to vector<16x32xf32>
    %305 = arith.mulf %303, %304 : vector<16x32xf32>
    %306 = vector.broadcast %282 : vector<1x32xf32> to vector<16x32xf32>
    %307 = arith.addf %305, %306 : vector<16x32xf32>
    %308 = arith.truncf %307 : vector<16x32xf32> to vector<16x32xbf16>
    %c12 = arith.constant 12 : index
    %c0_147 = arith.constant 0 : index
    %c0_148 = arith.constant 0 : index
    %309 = vector.load %arg1[%c12, %c0_147, %c0_148] : memref<24x32x8xbf16, #tpu.memory_space<vmem>>, vector<1x32x8xbf16>
    %310 = vector.shape_cast %309 : vector<1x32x8xbf16> to vector<32x8xbf16>
    %cst_149 = arith.constant dense<0.000000e+00> : vector<16x8xf32>
    %311 = tpu.matmul %308, %310, %cst_149 {dimension_numbers = #tpu.dot_dimension_numbers<[1], [0], [0], [1], [0, 0, 1, 1], [], []>} : vector<16x32xbf16>, vector<32x8xbf16>, vector<16x8xf32> -> vector<16x8xf32>
    %c12_150 = arith.constant 12 : index
    %c0_151 = arith.constant 0 : index
    %c0_152 = arith.constant 0 : index
    %312 = vector.load %arg2[%c12_150, %c0_151, %c0_152] : memref<24x1x8xf32, #tpu.memory_space<vmem>>, vector<1x1x8xf32>
    %313 = vector.shape_cast %312 : vector<1x1x8xf32> to vector<1x8xf32>
    %314 = vector.broadcast %313 : vector<1x8xf32> to vector<16x8xf32>
    %315 = arith.addf %311, %314 : vector<16x8xf32>
    %c16 = arith.constant 16 : index
    %c0_153 = arith.constant 0 : index
    %c0_154 = arith.constant 0 : index
    %316 = vector.load %arg1[%c16, %c0_153, %c0_154] : memref<24x32x8xbf16, #tpu.memory_space<vmem>>, vector<1x32x8xbf16>
    %317 = vector.shape_cast %316 : vector<1x32x8xbf16> to vector<32x8xbf16>
    %cst_155 = arith.constant dense<0.000000e+00> : vector<16x8xf32>
    %318 = tpu.matmul %308, %317, %cst_155 {dimension_numbers = #tpu.dot_dimension_numbers<[1], [0], [0], [1], [0, 0, 1, 1], [], []>} : vector<16x32xbf16>, vector<32x8xbf16>, vector<16x8xf32> -> vector<16x8xf32>
    %c16_156 = arith.constant 16 : index
    %c0_157 = arith.constant 0 : index
    %c0_158 = arith.constant 0 : index
    %319 = vector.load %arg2[%c16_156, %c0_157, %c0_158] : memref<24x1x8xf32, #tpu.memory_space<vmem>>, vector<1x1x8xf32>
    %320 = vector.shape_cast %319 : vector<1x1x8xf32> to vector<1x8xf32>
    %321 = vector.broadcast %320 : vector<1x8xf32> to vector<16x8xf32>
    %322 = arith.addf %318, %321 : vector<16x8xf32>
    %c20 = arith.constant 20 : index
    %c0_159 = arith.constant 0 : index
    %c0_160 = arith.constant 0 : index
    %323 = vector.load %arg1[%c20, %c0_159, %c0_160] : memref<24x32x8xbf16, #tpu.memory_space<vmem>>, vector<1x32x8xbf16>
    %324 = vector.shape_cast %323 : vector<1x32x8xbf16> to vector<32x8xbf16>
    %cst_161 = arith.constant dense<0.000000e+00> : vector<16x8xf32>
    %325 = tpu.matmul %308, %324, %cst_161 {dimension_numbers = #tpu.dot_dimension_numbers<[1], [0], [0], [1], [0, 0, 1, 1], [], []>} : vector<16x32xbf16>, vector<32x8xbf16>, vector<16x8xf32> -> vector<16x8xf32>
    %c20_162 = arith.constant 20 : index
    %c0_163 = arith.constant 0 : index
    %c0_164 = arith.constant 0 : index
    %326 = vector.load %arg2[%c20_162, %c0_163, %c0_164] : memref<24x1x8xf32, #tpu.memory_space<vmem>>, vector<1x1x8xf32>
    %327 = vector.shape_cast %326 : vector<1x1x8xf32> to vector<1x8xf32>
    %328 = vector.broadcast %327 : vector<1x8xf32> to vector<16x8xf32>
    %329 = arith.addf %325, %328 : vector<16x8xf32>
    %330 = vector.shape_cast %315 : vector<16x8xf32> to vector<2x8x8xf32>
    %331 = vector.shape_cast %322 : vector<16x8xf32> to vector<2x8x8xf32>
    %332 = vector.shape_cast %329 : vector<16x8xf32> to vector<2x8x8xf32>
    "tpu.trace_start"() <{level = 10 : i32, message = "bqd,bkd->bqk"}> : () -> ()
    %cst_165 = arith.constant dense<0.000000e+00> : vector<2x8x8xf32>
    %333 = tpu.matmul %330, %331, %cst_165 {dimension_numbers = #tpu.dot_dimension_numbers<[2], [2], [1], [1], [0, 0, 0, 1, 1, 1], [0], [0]>} : vector<2x8x8xf32>, vector<2x8x8xf32>, vector<2x8x8xf32> -> vector<2x8x8xf32>
    "tpu.trace_stop"() : () -> ()
    %cst_166 = arith.constant 0.353553385 : f32
    %334 = vector.broadcast %cst_166 : f32 to vector<2x8x8xf32>
    %335 = arith.mulf %333, %334 : vector<2x8x8xf32>
    %336 = vector.shape_cast %6 : vector<8x8xf32> to vector<1x8x8xf32>
    %337 = vector.broadcast %336 : vector<1x8x8xf32> to vector<2x8x8xf32>
    %338 = arith.addf %335, %337 : vector<2x8x8xf32>
    %cst_167 = arith.constant dense<0xFF800000> : vector<2x8xf32>
    %339 = vector.multi_reduction <maximumf>, %338, %cst_167 [2] : vector<2x8x8xf32> to vector<2x8xf32>
    %340 = vector.shape_cast %339 : vector<2x8xf32> to vector<2x8x1xf32>
    %341 = vector.broadcast %340 : vector<2x8x1xf32> to vector<2x8x8xf32>
    %342 = arith.subf %338, %341 : vector<2x8x8xf32>
    %343 = math.exp %342 : vector<2x8x8xf32>
    %cst_168 = arith.constant dense<0.000000e+00> : vector<2x8xf32>
    %344 = vector.multi_reduction <add>, %343, %cst_168 [2] : vector<2x8x8xf32> to vector<2x8xf32>
    %345 = vector.shape_cast %344 : vector<2x8xf32> to vector<2x8x1xf32>
    %346 = tpu.reciprocal %345 {approx = true} : vector<2x8x1xf32> -> vector<2x8x1xf32>
    %347 = vector.broadcast %346 : vector<2x8x1xf32> to vector<2x8x8xf32>
    %348 = arith.mulf %343, %347 : vector<2x8x8xf32>
    "tpu.trace_start"() <{level = 10 : i32, message = "bqk,bkd->bqd"}> : () -> ()
    %cst_169 = arith.constant dense<0.000000e+00> : vector<2x8x8xf32>
    %349 = tpu.matmul %348, %332, %cst_169 {dimension_numbers = #tpu.dot_dimension_numbers<[2], [1], [1], [2], [0, 0, 0, 1, 1, 2], [0], [0]>} : vector<2x8x8xf32>, vector<2x8x8xf32>, vector<2x8x8xf32> -> vector<2x8x8xf32>
    "tpu.trace_stop"() : () -> ()
    %350 = vector.shape_cast %349 : vector<2x8x8xf32> to vector<16x8xf32>
    %351 = arith.truncf %350 : vector<16x8xf32> to vector<16x8xbf16>
    %c4_170 = arith.constant 4 : index
    %c0_171 = arith.constant 0 : index
    %c0_172 = arith.constant 0 : index
    %352 = vector.load %arg3[%c4_170, %c0_171, %c0_172] : memref<8x8x32xbf16, #tpu.memory_space<vmem>>, vector<1x8x32xbf16>
    %353 = vector.shape_cast %352 : vector<1x8x32xbf16> to vector<8x32xbf16>
    %cst_173 = arith.constant dense<0.000000e+00> : vector<16x32xf32>
    %354 = tpu.matmul %351, %353, %cst_173 {dimension_numbers = #tpu.dot_dimension_numbers<[1], [0], [0], [1], [0, 0, 1, 1], [], []>} : vector<16x8xbf16>, vector<8x32xbf16>, vector<16x32xf32> -> vector<16x32xf32>
    %c13 = arith.constant 13 : index
    %c0_174 = arith.constant 0 : index
    %c0_175 = arith.constant 0 : index
    %355 = vector.load %arg1[%c13, %c0_174, %c0_175] : memref<24x32x8xbf16, #tpu.memory_space<vmem>>, vector<1x32x8xbf16>
    %356 = vector.shape_cast %355 : vector<1x32x8xbf16> to vector<32x8xbf16>
    %cst_176 = arith.constant dense<0.000000e+00> : vector<16x8xf32>
    %357 = tpu.matmul %308, %356, %cst_176 {dimension_numbers = #tpu.dot_dimension_numbers<[1], [0], [0], [1], [0, 0, 1, 1], [], []>} : vector<16x32xbf16>, vector<32x8xbf16>, vector<16x8xf32> -> vector<16x8xf32>
    %c13_177 = arith.constant 13 : index
    %c0_178 = arith.constant 0 : index
    %c0_179 = arith.constant 0 : index
    %358 = vector.load %arg2[%c13_177, %c0_178, %c0_179] : memref<24x1x8xf32, #tpu.memory_space<vmem>>, vector<1x1x8xf32>
    %359 = vector.shape_cast %358 : vector<1x1x8xf32> to vector<1x8xf32>
    %360 = vector.broadcast %359 : vector<1x8xf32> to vector<16x8xf32>
    %361 = arith.addf %357, %360 : vector<16x8xf32>
    %c17 = arith.constant 17 : index
    %c0_180 = arith.constant 0 : index
    %c0_181 = arith.constant 0 : index
    %362 = vector.load %arg1[%c17, %c0_180, %c0_181] : memref<24x32x8xbf16, #tpu.memory_space<vmem>>, vector<1x32x8xbf16>
    %363 = vector.shape_cast %362 : vector<1x32x8xbf16> to vector<32x8xbf16>
    %cst_182 = arith.constant dense<0.000000e+00> : vector<16x8xf32>
    %364 = tpu.matmul %308, %363, %cst_182 {dimension_numbers = #tpu.dot_dimension_numbers<[1], [0], [0], [1], [0, 0, 1, 1], [], []>} : vector<16x32xbf16>, vector<32x8xbf16>, vector<16x8xf32> -> vector<16x8xf32>
    %c17_183 = arith.constant 17 : index
    %c0_184 = arith.constant 0 : index
    %c0_185 = arith.constant 0 : index
    %365 = vector.load %arg2[%c17_183, %c0_184, %c0_185] : memref<24x1x8xf32, #tpu.memory_space<vmem>>, vector<1x1x8xf32>
    %366 = vector.shape_cast %365 : vector<1x1x8xf32> to vector<1x8xf32>
    %367 = vector.broadcast %366 : vector<1x8xf32> to vector<16x8xf32>
    %368 = arith.addf %364, %367 : vector<16x8xf32>
    %c21 = arith.constant 21 : index
    %c0_186 = arith.constant 0 : index
    %c0_187 = arith.constant 0 : index
    %369 = vector.load %arg1[%c21, %c0_186, %c0_187] : memref<24x32x8xbf16, #tpu.memory_space<vmem>>, vector<1x32x8xbf16>
    %370 = vector.shape_cast %369 : vector<1x32x8xbf16> to vector<32x8xbf16>
    %cst_188 = arith.constant dense<0.000000e+00> : vector<16x8xf32>
    %371 = tpu.matmul %308, %370, %cst_188 {dimension_numbers = #tpu.dot_dimension_numbers<[1], [0], [0], [1], [0, 0, 1, 1], [], []>} : vector<16x32xbf16>, vector<32x8xbf16>, vector<16x8xf32> -> vector<16x8xf32>
    %c21_189 = arith.constant 21 : index
    %c0_190 = arith.constant 0 : index
    %c0_191 = arith.constant 0 : index
    %372 = vector.load %arg2[%c21_189, %c0_190, %c0_191] : memref<24x1x8xf32, #tpu.memory_space<vmem>>, vector<1x1x8xf32>
    %373 = vector.shape_cast %372 : vector<1x1x8xf32> to vector<1x8xf32>
    %374 = vector.broadcast %373 : vector<1x8xf32> to vector<16x8xf32>
    %375 = arith.addf %371, %374 : vector<16x8xf32>
    %376 = vector.shape_cast %361 : vector<16x8xf32> to vector<2x8x8xf32>
    %377 = vector.shape_cast %368 : vector<16x8xf32> to vector<2x8x8xf32>
    %378 = vector.shape_cast %375 : vector<16x8xf32> to vector<2x8x8xf32>
    "tpu.trace_start"() <{level = 10 : i32, message = "bqd,bkd->bqk"}> : () -> ()
    %cst_192 = arith.constant dense<0.000000e+00> : vector<2x8x8xf32>
    %379 = tpu.matmul %376, %377, %cst_192 {dimension_numbers = #tpu.dot_dimension_numbers<[2], [2], [1], [1], [0, 0, 0, 1, 1, 1], [0], [0]>} : vector<2x8x8xf32>, vector<2x8x8xf32>, vector<2x8x8xf32> -> vector<2x8x8xf32>
    "tpu.trace_stop"() : () -> ()
    %cst_193 = arith.constant 0.353553385 : f32
    %380 = vector.broadcast %cst_193 : f32 to vector<2x8x8xf32>
    %381 = arith.mulf %379, %380 : vector<2x8x8xf32>
    %382 = vector.shape_cast %6 : vector<8x8xf32> to vector<1x8x8xf32>
    %383 = vector.broadcast %382 : vector<1x8x8xf32> to vector<2x8x8xf32>
    %384 = arith.addf %381, %383 : vector<2x8x8xf32>
    %cst_194 = arith.constant dense<0xFF800000> : vector<2x8xf32>
    %385 = vector.multi_reduction <maximumf>, %384, %cst_194 [2] : vector<2x8x8xf32> to vector<2x8xf32>
    %386 = vector.shape_cast %385 : vector<2x8xf32> to vector<2x8x1xf32>
    %387 = vector.broadcast %386 : vector<2x8x1xf32> to vector<2x8x8xf32>
    %388 = arith.subf %384, %387 : vector<2x8x8xf32>
    %389 = math.exp %388 : vector<2x8x8xf32>
    %cst_195 = arith.constant dense<0.000000e+00> : vector<2x8xf32>
    %390 = vector.multi_reduction <add>, %389, %cst_195 [2] : vector<2x8x8xf32> to vector<2x8xf32>
    %391 = vector.shape_cast %390 : vector<2x8xf32> to vector<2x8x1xf32>
    %392 = tpu.reciprocal %391 {approx = true} : vector<2x8x1xf32> -> vector<2x8x1xf32>
    %393 = vector.broadcast %392 : vector<2x8x1xf32> to vector<2x8x8xf32>
    %394 = arith.mulf %389, %393 : vector<2x8x8xf32>
    "tpu.trace_start"() <{level = 10 : i32, message = "bqk,bkd->bqd"}> : () -> ()
    %cst_196 = arith.constant dense<0.000000e+00> : vector<2x8x8xf32>
    %395 = tpu.matmul %394, %378, %cst_196 {dimension_numbers = #tpu.dot_dimension_numbers<[2], [1], [1], [2], [0, 0, 0, 1, 1, 2], [0], [0]>} : vector<2x8x8xf32>, vector<2x8x8xf32>, vector<2x8x8xf32> -> vector<2x8x8xf32>
    "tpu.trace_stop"() : () -> ()
    %396 = vector.shape_cast %395 : vector<2x8x8xf32> to vector<16x8xf32>
    %397 = arith.truncf %396 : vector<16x8xf32> to vector<16x8xbf16>
    %c5_197 = arith.constant 5 : index
    %c0_198 = arith.constant 0 : index
    %c0_199 = arith.constant 0 : index
    %398 = vector.load %arg3[%c5_197, %c0_198, %c0_199] : memref<8x8x32xbf16, #tpu.memory_space<vmem>>, vector<1x8x32xbf16>
    %399 = vector.shape_cast %398 : vector<1x8x32xbf16> to vector<8x32xbf16>
    %cst_200 = arith.constant dense<0.000000e+00> : vector<16x32xf32>
    %400 = tpu.matmul %397, %399, %cst_200 {dimension_numbers = #tpu.dot_dimension_numbers<[1], [0], [0], [1], [0, 0, 1, 1], [], []>} : vector<16x8xbf16>, vector<8x32xbf16>, vector<16x32xf32> -> vector<16x32xf32>
    %401 = arith.addf %354, %400 : vector<16x32xf32>
    %c14 = arith.constant 14 : index
    %c0_201 = arith.constant 0 : index
    %c0_202 = arith.constant 0 : index
    %402 = vector.load %arg1[%c14, %c0_201, %c0_202] : memref<24x32x8xbf16, #tpu.memory_space<vmem>>, vector<1x32x8xbf16>
    %403 = vector.shape_cast %402 : vector<1x32x8xbf16> to vector<32x8xbf16>
    %cst_203 = arith.constant dense<0.000000e+00> : vector<16x8xf32>
    %404 = tpu.matmul %308, %403, %cst_203 {dimension_numbers = #tpu.dot_dimension_numbers<[1], [0], [0], [1], [0, 0, 1, 1], [], []>} : vector<16x32xbf16>, vector<32x8xbf16>, vector<16x8xf32> -> vector<16x8xf32>
    %c14_204 = arith.constant 14 : index
    %c0_205 = arith.constant 0 : index
    %c0_206 = arith.constant 0 : index
    %405 = vector.load %arg2[%c14_204, %c0_205, %c0_206] : memref<24x1x8xf32, #tpu.memory_space<vmem>>, vector<1x1x8xf32>
    %406 = vector.shape_cast %405 : vector<1x1x8xf32> to vector<1x8xf32>
    %407 = vector.broadcast %406 : vector<1x8xf32> to vector<16x8xf32>
    %408 = arith.addf %404, %407 : vector<16x8xf32>
    %c18 = arith.constant 18 : index
    %c0_207 = arith.constant 0 : index
    %c0_208 = arith.constant 0 : index
    %409 = vector.load %arg1[%c18, %c0_207, %c0_208] : memref<24x32x8xbf16, #tpu.memory_space<vmem>>, vector<1x32x8xbf16>
    %410 = vector.shape_cast %409 : vector<1x32x8xbf16> to vector<32x8xbf16>
    %cst_209 = arith.constant dense<0.000000e+00> : vector<16x8xf32>
    %411 = tpu.matmul %308, %410, %cst_209 {dimension_numbers = #tpu.dot_dimension_numbers<[1], [0], [0], [1], [0, 0, 1, 1], [], []>} : vector<16x32xbf16>, vector<32x8xbf16>, vector<16x8xf32> -> vector<16x8xf32>
    %c18_210 = arith.constant 18 : index
    %c0_211 = arith.constant 0 : index
    %c0_212 = arith.constant 0 : index
    %412 = vector.load %arg2[%c18_210, %c0_211, %c0_212] : memref<24x1x8xf32, #tpu.memory_space<vmem>>, vector<1x1x8xf32>
    %413 = vector.shape_cast %412 : vector<1x1x8xf32> to vector<1x8xf32>
    %414 = vector.broadcast %413 : vector<1x8xf32> to vector<16x8xf32>
    %415 = arith.addf %411, %414 : vector<16x8xf32>
    %c22 = arith.constant 22 : index
    %c0_213 = arith.constant 0 : index
    %c0_214 = arith.constant 0 : index
    %416 = vector.load %arg1[%c22, %c0_213, %c0_214] : memref<24x32x8xbf16, #tpu.memory_space<vmem>>, vector<1x32x8xbf16>
    %417 = vector.shape_cast %416 : vector<1x32x8xbf16> to vector<32x8xbf16>
    %cst_215 = arith.constant dense<0.000000e+00> : vector<16x8xf32>
    %418 = tpu.matmul %308, %417, %cst_215 {dimension_numbers = #tpu.dot_dimension_numbers<[1], [0], [0], [1], [0, 0, 1, 1], [], []>} : vector<16x32xbf16>, vector<32x8xbf16>, vector<16x8xf32> -> vector<16x8xf32>
    %c22_216 = arith.constant 22 : index
    %c0_217 = arith.constant 0 : index
    %c0_218 = arith.constant 0 : index
    %419 = vector.load %arg2[%c22_216, %c0_217, %c0_218] : memref<24x1x8xf32, #tpu.memory_space<vmem>>, vector<1x1x8xf32>
    %420 = vector.shape_cast %419 : vector<1x1x8xf32> to vector<1x8xf32>
    %421 = vector.broadcast %420 : vector<1x8xf32> to vector<16x8xf32>
    %422 = arith.addf %418, %421 : vector<16x8xf32>
    %423 = vector.shape_cast %408 : vector<16x8xf32> to vector<2x8x8xf32>
    %424 = vector.shape_cast %415 : vector<16x8xf32> to vector<2x8x8xf32>
    %425 = vector.shape_cast %422 : vector<16x8xf32> to vector<2x8x8xf32>
    "tpu.trace_start"() <{level = 10 : i32, message = "bqd,bkd->bqk"}> : () -> ()
    %cst_219 = arith.constant dense<0.000000e+00> : vector<2x8x8xf32>
    %426 = tpu.matmul %423, %424, %cst_219 {dimension_numbers = #tpu.dot_dimension_numbers<[2], [2], [1], [1], [0, 0, 0, 1, 1, 1], [0], [0]>} : vector<2x8x8xf32>, vector<2x8x8xf32>, vector<2x8x8xf32> -> vector<2x8x8xf32>
    "tpu.trace_stop"() : () -> ()
    %cst_220 = arith.constant 0.353553385 : f32
    %427 = vector.broadcast %cst_220 : f32 to vector<2x8x8xf32>
    %428 = arith.mulf %426, %427 : vector<2x8x8xf32>
    %429 = vector.shape_cast %6 : vector<8x8xf32> to vector<1x8x8xf32>
    %430 = vector.broadcast %429 : vector<1x8x8xf32> to vector<2x8x8xf32>
    %431 = arith.addf %428, %430 : vector<2x8x8xf32>
    %cst_221 = arith.constant dense<0xFF800000> : vector<2x8xf32>
    %432 = vector.multi_reduction <maximumf>, %431, %cst_221 [2] : vector<2x8x8xf32> to vector<2x8xf32>
    %433 = vector.shape_cast %432 : vector<2x8xf32> to vector<2x8x1xf32>
    %434 = vector.broadcast %433 : vector<2x8x1xf32> to vector<2x8x8xf32>
    %435 = arith.subf %431, %434 : vector<2x8x8xf32>
    %436 = math.exp %435 : vector<2x8x8xf32>
    %cst_222 = arith.constant dense<0.000000e+00> : vector<2x8xf32>
    %437 = vector.multi_reduction <add>, %436, %cst_222 [2] : vector<2x8x8xf32> to vector<2x8xf32>
    %438 = vector.shape_cast %437 : vector<2x8xf32> to vector<2x8x1xf32>
    %439 = tpu.reciprocal %438 {approx = true} : vector<2x8x1xf32> -> vector<2x8x1xf32>
    %440 = vector.broadcast %439 : vector<2x8x1xf32> to vector<2x8x8xf32>
    %441 = arith.mulf %436, %440 : vector<2x8x8xf32>
    "tpu.trace_start"() <{level = 10 : i32, message = "bqk,bkd->bqd"}> : () -> ()
    %cst_223 = arith.constant dense<0.000000e+00> : vector<2x8x8xf32>
    %442 = tpu.matmul %441, %425, %cst_223 {dimension_numbers = #tpu.dot_dimension_numbers<[2], [1], [1], [2], [0, 0, 0, 1, 1, 2], [0], [0]>} : vector<2x8x8xf32>, vector<2x8x8xf32>, vector<2x8x8xf32> -> vector<2x8x8xf32>
    "tpu.trace_stop"() : () -> ()
    %443 = vector.shape_cast %442 : vector<2x8x8xf32> to vector<16x8xf32>
    %444 = arith.truncf %443 : vector<16x8xf32> to vector<16x8xbf16>
    %c6_224 = arith.constant 6 : index
    %c0_225 = arith.constant 0 : index
    %c0_226 = arith.constant 0 : index
    %445 = vector.load %arg3[%c6_224, %c0_225, %c0_226] : memref<8x8x32xbf16, #tpu.memory_space<vmem>>, vector<1x8x32xbf16>
    %446 = vector.shape_cast %445 : vector<1x8x32xbf16> to vector<8x32xbf16>
    %cst_227 = arith.constant dense<0.000000e+00> : vector<16x32xf32>
    %447 = tpu.matmul %444, %446, %cst_227 {dimension_numbers = #tpu.dot_dimension_numbers<[1], [0], [0], [1], [0, 0, 1, 1], [], []>} : vector<16x8xbf16>, vector<8x32xbf16>, vector<16x32xf32> -> vector<16x32xf32>
    %448 = arith.addf %401, %447 : vector<16x32xf32>
    %c15 = arith.constant 15 : index
    %c0_228 = arith.constant 0 : index
    %c0_229 = arith.constant 0 : index
    %449 = vector.load %arg1[%c15, %c0_228, %c0_229] : memref<24x32x8xbf16, #tpu.memory_space<vmem>>, vector<1x32x8xbf16>
    %450 = vector.shape_cast %449 : vector<1x32x8xbf16> to vector<32x8xbf16>
    %cst_230 = arith.constant dense<0.000000e+00> : vector<16x8xf32>
    %451 = tpu.matmul %308, %450, %cst_230 {dimension_numbers = #tpu.dot_dimension_numbers<[1], [0], [0], [1], [0, 0, 1, 1], [], []>} : vector<16x32xbf16>, vector<32x8xbf16>, vector<16x8xf32> -> vector<16x8xf32>
    %c15_231 = arith.constant 15 : index
    %c0_232 = arith.constant 0 : index
    %c0_233 = arith.constant 0 : index
    %452 = vector.load %arg2[%c15_231, %c0_232, %c0_233] : memref<24x1x8xf32, #tpu.memory_space<vmem>>, vector<1x1x8xf32>
    %453 = vector.shape_cast %452 : vector<1x1x8xf32> to vector<1x8xf32>
    %454 = vector.broadcast %453 : vector<1x8xf32> to vector<16x8xf32>
    %455 = arith.addf %451, %454 : vector<16x8xf32>
    %c19 = arith.constant 19 : index
    %c0_234 = arith.constant 0 : index
    %c0_235 = arith.constant 0 : index
    %456 = vector.load %arg1[%c19, %c0_234, %c0_235] : memref<24x32x8xbf16, #tpu.memory_space<vmem>>, vector<1x32x8xbf16>
    %457 = vector.shape_cast %456 : vector<1x32x8xbf16> to vector<32x8xbf16>
    %cst_236 = arith.constant dense<0.000000e+00> : vector<16x8xf32>
    %458 = tpu.matmul %308, %457, %cst_236 {dimension_numbers = #tpu.dot_dimension_numbers<[1], [0], [0], [1], [0, 0, 1, 1], [], []>} : vector<16x32xbf16>, vector<32x8xbf16>, vector<16x8xf32> -> vector<16x8xf32>
    %c19_237 = arith.constant 19 : index
    %c0_238 = arith.constant 0 : index
    %c0_239 = arith.constant 0 : index
    %459 = vector.load %arg2[%c19_237, %c0_238, %c0_239] : memref<24x1x8xf32, #tpu.memory_space<vmem>>, vector<1x1x8xf32>
    %460 = vector.shape_cast %459 : vector<1x1x8xf32> to vector<1x8xf32>
    %461 = vector.broadcast %460 : vector<1x8xf32> to vector<16x8xf32>
    %462 = arith.addf %458, %461 : vector<16x8xf32>
    %c23 = arith.constant 23 : index
    %c0_240 = arith.constant 0 : index
    %c0_241 = arith.constant 0 : index
    %463 = vector.load %arg1[%c23, %c0_240, %c0_241] : memref<24x32x8xbf16, #tpu.memory_space<vmem>>, vector<1x32x8xbf16>
    %464 = vector.shape_cast %463 : vector<1x32x8xbf16> to vector<32x8xbf16>
    %cst_242 = arith.constant dense<0.000000e+00> : vector<16x8xf32>
    %465 = tpu.matmul %308, %464, %cst_242 {dimension_numbers = #tpu.dot_dimension_numbers<[1], [0], [0], [1], [0, 0, 1, 1], [], []>} : vector<16x32xbf16>, vector<32x8xbf16>, vector<16x8xf32> -> vector<16x8xf32>
    %c23_243 = arith.constant 23 : index
    %c0_244 = arith.constant 0 : index
    %c0_245 = arith.constant 0 : index
    %466 = vector.load %arg2[%c23_243, %c0_244, %c0_245] : memref<24x1x8xf32, #tpu.memory_space<vmem>>, vector<1x1x8xf32>
    %467 = vector.shape_cast %466 : vector<1x1x8xf32> to vector<1x8xf32>
    %468 = vector.broadcast %467 : vector<1x8xf32> to vector<16x8xf32>
    %469 = arith.addf %465, %468 : vector<16x8xf32>
    %470 = vector.shape_cast %455 : vector<16x8xf32> to vector<2x8x8xf32>
    %471 = vector.shape_cast %462 : vector<16x8xf32> to vector<2x8x8xf32>
    %472 = vector.shape_cast %469 : vector<16x8xf32> to vector<2x8x8xf32>
    "tpu.trace_start"() <{level = 10 : i32, message = "bqd,bkd->bqk"}> : () -> ()
    %cst_246 = arith.constant dense<0.000000e+00> : vector<2x8x8xf32>
    %473 = tpu.matmul %470, %471, %cst_246 {dimension_numbers = #tpu.dot_dimension_numbers<[2], [2], [1], [1], [0, 0, 0, 1, 1, 1], [0], [0]>} : vector<2x8x8xf32>, vector<2x8x8xf32>, vector<2x8x8xf32> -> vector<2x8x8xf32>
    "tpu.trace_stop"() : () -> ()
    %cst_247 = arith.constant 0.353553385 : f32
    %474 = vector.broadcast %cst_247 : f32 to vector<2x8x8xf32>
    %475 = arith.mulf %473, %474 : vector<2x8x8xf32>
    %476 = vector.shape_cast %6 : vector<8x8xf32> to vector<1x8x8xf32>
    %477 = vector.broadcast %476 : vector<1x8x8xf32> to vector<2x8x8xf32>
    %478 = arith.addf %475, %477 : vector<2x8x8xf32>
    %cst_248 = arith.constant dense<0xFF800000> : vector<2x8xf32>
    %479 = vector.multi_reduction <maximumf>, %478, %cst_248 [2] : vector<2x8x8xf32> to vector<2x8xf32>
    %480 = vector.shape_cast %479 : vector<2x8xf32> to vector<2x8x1xf32>
    %481 = vector.broadcast %480 : vector<2x8x1xf32> to vector<2x8x8xf32>
    %482 = arith.subf %478, %481 : vector<2x8x8xf32>
    %483 = math.exp %482 : vector<2x8x8xf32>
    %cst_249 = arith.constant dense<0.000000e+00> : vector<2x8xf32>
    %484 = vector.multi_reduction <add>, %483, %cst_249 [2] : vector<2x8x8xf32> to vector<2x8xf32>
    %485 = vector.shape_cast %484 : vector<2x8xf32> to vector<2x8x1xf32>
    %486 = tpu.reciprocal %485 {approx = true} : vector<2x8x1xf32> -> vector<2x8x1xf32>
    %487 = vector.broadcast %486 : vector<2x8x1xf32> to vector<2x8x8xf32>
    %488 = arith.mulf %483, %487 : vector<2x8x8xf32>
    "tpu.trace_start"() <{level = 10 : i32, message = "bqk,bkd->bqd"}> : () -> ()
    %cst_250 = arith.constant dense<0.000000e+00> : vector<2x8x8xf32>
    %489 = tpu.matmul %488, %472, %cst_250 {dimension_numbers = #tpu.dot_dimension_numbers<[2], [1], [1], [2], [0, 0, 0, 1, 1, 2], [0], [0]>} : vector<2x8x8xf32>, vector<2x8x8xf32>, vector<2x8x8xf32> -> vector<2x8x8xf32>
    "tpu.trace_stop"() : () -> ()
    %490 = vector.shape_cast %489 : vector<2x8x8xf32> to vector<16x8xf32>
    %491 = arith.truncf %490 : vector<16x8xf32> to vector<16x8xbf16>
    %c7_251 = arith.constant 7 : index
    %c0_252 = arith.constant 0 : index
    %c0_253 = arith.constant 0 : index
    %492 = vector.load %arg3[%c7_251, %c0_252, %c0_253] : memref<8x8x32xbf16, #tpu.memory_space<vmem>>, vector<1x8x32xbf16>
    %493 = vector.shape_cast %492 : vector<1x8x32xbf16> to vector<8x32xbf16>
    %cst_254 = arith.constant dense<0.000000e+00> : vector<16x32xf32>
    %494 = tpu.matmul %491, %493, %cst_254 {dimension_numbers = #tpu.dot_dimension_numbers<[1], [0], [0], [1], [0, 0, 1, 1], [], []>} : vector<16x8xbf16>, vector<8x32xbf16>, vector<16x32xf32> -> vector<16x32xf32>
    %495 = arith.addf %448, %494 : vector<16x32xf32>
    %496 = arith.addf %277, %495 : vector<16x32xf32>
    %497 = vector.broadcast %280 : vector<1x32xf32> to vector<16x32xf32>
    %498 = arith.addf %496, %497 : vector<16x32xf32>
    %cst_255 = arith.constant dense<0.000000e+00> : vector<16xf32>
    %499 = vector.multi_reduction <add>, %498, %cst_255 [1] : vector<16x32xf32> to vector<16xf32>
    %500 = vector.shape_cast %499 : vector<16xf32> to vector<16x1xf32>
    %cst_256 = arith.constant 3.200000e+01 : f32
    %501 = vector.broadcast %cst_256 : f32 to vector<16x1xf32>
    %502 = arith.divf %500, %501 : vector<16x1xf32>
    %503 = vector.broadcast %502 : vector<16x1xf32> to vector<16x32xf32>
    %504 = arith.subf %498, %503 : vector<16x32xf32>
    %505 = arith.mulf %504, %504 : vector<16x32xf32>
    %cst_257 = arith.constant dense<0.000000e+00> : vector<16xf32>
    %506 = vector.multi_reduction <add>, %505, %cst_257 [1] : vector<16x32xf32> to vector<16xf32>
    %507 = vector.shape_cast %506 : vector<16xf32> to vector<16x1xf32>
    %cst_258 = arith.constant 3.200000e+01 : f32
    %508 = vector.broadcast %cst_258 : f32 to vector<16x1xf32>
    %509 = arith.divf %507, %508 : vector<16x1xf32>
    %510 = vector.broadcast %502 : vector<16x1xf32> to vector<16x32xf32>
    %511 = arith.subf %498, %510 : vector<16x32xf32>
    %cst_259 = arith.constant 9.99999974E-6 : f32
    %512 = vector.broadcast %cst_259 : f32 to vector<16x1xf32>
    %513 = arith.addf %509, %512 : vector<16x1xf32>
    %514 = math.rsqrt %513 : vector<16x1xf32>
    %515 = vector.broadcast %514 : vector<16x1xf32> to vector<16x32xf32>
    %516 = arith.mulf %511, %515 : vector<16x32xf32>
    %517 = vector.broadcast %283 : vector<1x32xf32> to vector<16x32xf32>
    %518 = arith.mulf %516, %517 : vector<16x32xf32>
    %519 = vector.broadcast %284 : vector<1x32xf32> to vector<16x32xf32>
    %520 = arith.addf %518, %519 : vector<16x32xf32>
    %521 = arith.truncf %520 : vector<16x32xf32> to vector<16x32xbf16>
    %c1_260 = arith.constant 1 : index
    %c0_261 = arith.constant 0 : index
    %c0_262 = arith.constant 0 : index
    %522 = vector.load %arg4[%c1_260, %c0_261, %c0_262] : memref<2x32x128xbf16, #tpu.memory_space<vmem>>, vector<1x32x128xbf16>
    %523 = vector.shape_cast %522 : vector<1x32x128xbf16> to vector<32x128xbf16>
    %cst_263 = arith.constant dense<0.000000e+00> : vector<16x128xf32>
    %524 = tpu.matmul %521, %523, %cst_263 {dimension_numbers = #tpu.dot_dimension_numbers<[1], [0], [0], [1], [0, 0, 1, 1], [], []>} : vector<16x32xbf16>, vector<32x128xbf16>, vector<16x128xf32> -> vector<16x128xf32>
    %c1_264 = arith.constant 1 : index
    %c0_265 = arith.constant 0 : index
    %c0_266 = arith.constant 0 : index
    %525 = vector.load %arg6[%c1_264, %c0_265, %c0_266] : memref<2x1x128xf32, #tpu.memory_space<vmem>>, vector<1x1x128xf32>
    %526 = vector.shape_cast %525 : vector<1x1x128xf32> to vector<1x128xf32>
    %527 = vector.broadcast %526 : vector<1x128xf32> to vector<16x128xf32>
    %528 = arith.addf %524, %527 : vector<16x128xf32>
    %cst_267 = arith.constant 5.000000e-01 : f32
    %529 = vector.broadcast %cst_267 : f32 to vector<16x128xf32>
    %530 = arith.mulf %529, %528 : vector<16x128xf32>
    %cst_268 = arith.constant 4.471500e-02 : f32
    %531 = vector.broadcast %cst_268 : f32 to vector<16x128xf32>
    %532 = arith.mulf %531, %528 : vector<16x128xf32>
    %533 = arith.mulf %532, %528 : vector<16x128xf32>
    %534 = arith.mulf %533, %528 : vector<16x128xf32>
    %535 = arith.addf %528, %534 : vector<16x128xf32>
    %cst_269 = arith.constant 0.797884583 : f32
    %536 = vector.broadcast %cst_269 : f32 to vector<16x128xf32>
    %537 = arith.mulf %536, %535 : vector<16x128xf32>
    %538 = math.tanh %537 : vector<16x128xf32>
    %cst_270 = arith.constant 1.000000e+00 : f32
    %539 = vector.broadcast %cst_270 : f32 to vector<16x128xf32>
    %540 = arith.addf %539, %538 : vector<16x128xf32>
    %541 = arith.mulf %530, %540 : vector<16x128xf32>
    %542 = arith.truncf %541 : vector<16x128xf32> to vector<16x128xbf16>
    %c1_271 = arith.constant 1 : index
    %c0_272 = arith.constant 0 : index
    %c0_273 = arith.constant 0 : index
    %543 = vector.load %arg5[%c1_271, %c0_272, %c0_273] : memref<2x128x32xbf16, #tpu.memory_space<vmem>>, vector<1x128x32xbf16>
    %544 = vector.shape_cast %543 : vector<1x128x32xbf16> to vector<128x32xbf16>
    %cst_274 = arith.constant dense<0.000000e+00> : vector<16x32xf32>
    %545 = tpu.matmul %542, %544, %cst_274 {dimension_numbers = #tpu.dot_dimension_numbers<[1], [0], [0], [1], [0, 0, 1, 1], [], []>} : vector<16x128xbf16>, vector<128x32xbf16>, vector<16x32xf32> -> vector<16x32xf32>
    %546 = vector.broadcast %285 : vector<1x32xf32> to vector<16x32xf32>
    %547 = arith.addf %545, %546 : vector<16x32xf32>
    %548 = arith.addf %498, %547 : vector<16x32xf32>
    %c0_275 = arith.constant 0 : index
    %c0_276 = arith.constant 0 : index
    %549 = vector.load %arg8[%c0_275, %c0_276] : memref<2x32xf32, #tpu.memory_space<vmem>>, vector<2x32xf32>
    %550 = vector.extract_strided_slice %549 {offsets = [0, 0], sizes = [1, 32], strides = [1, 1]} : vector<2x32xf32> to vector<1x32xf32>
    %551 = vector.extract_strided_slice %549 {offsets = [1, 0], sizes = [1, 32], strides = [1, 1]} : vector<2x32xf32> to vector<1x32xf32>
    %cst_277 = arith.constant dense<0.000000e+00> : vector<16xf32>
    %552 = vector.multi_reduction <add>, %548, %cst_277 [1] : vector<16x32xf32> to vector<16xf32>
    %553 = vector.shape_cast %552 : vector<16xf32> to vector<16x1xf32>
    %cst_278 = arith.constant 3.200000e+01 : f32
    %554 = vector.broadcast %cst_278 : f32 to vector<16x1xf32>
    %555 = arith.divf %553, %554 : vector<16x1xf32>
    %556 = vector.broadcast %555 : vector<16x1xf32> to vector<16x32xf32>
    %557 = arith.subf %548, %556 : vector<16x32xf32>
    %558 = arith.mulf %557, %557 : vector<16x32xf32>
    %cst_279 = arith.constant dense<0.000000e+00> : vector<16xf32>
    %559 = vector.multi_reduction <add>, %558, %cst_279 [1] : vector<16x32xf32> to vector<16xf32>
    %560 = vector.shape_cast %559 : vector<16xf32> to vector<16x1xf32>
    %cst_280 = arith.constant 3.200000e+01 : f32
    %561 = vector.broadcast %cst_280 : f32 to vector<16x1xf32>
    %562 = arith.divf %560, %561 : vector<16x1xf32>
    %563 = vector.broadcast %555 : vector<16x1xf32> to vector<16x32xf32>
    %564 = arith.subf %548, %563 : vector<16x32xf32>
    %cst_281 = arith.constant 9.99999974E-6 : f32
    %565 = vector.broadcast %cst_281 : f32 to vector<16x1xf32>
    %566 = arith.addf %562, %565 : vector<16x1xf32>
    %567 = math.rsqrt %566 : vector<16x1xf32>
    %568 = vector.broadcast %567 : vector<16x1xf32> to vector<16x32xf32>
    %569 = arith.mulf %564, %568 : vector<16x32xf32>
    %570 = vector.broadcast %550 : vector<1x32xf32> to vector<16x32xf32>
    %571 = arith.mulf %569, %570 : vector<16x32xf32>
    %572 = vector.broadcast %551 : vector<1x32xf32> to vector<16x32xf32>
    %573 = arith.addf %571, %572 : vector<16x32xf32>
    %c0_282 = arith.constant 0 : index
    %c0_283 = arith.constant 0 : index
    %574 = vector.load %arg9[%c0_282, %c0_283] : memref<16x32xf32, #tpu.memory_space<vmem>>, vector<16x32xf32>
    tpu.vector_store %arg9[%c0_282, %c0_283], %573 {strides = array<i32>} : memref<16x32xf32, #tpu.memory_space<vmem>>, vector<16x32xf32>,
    return
  }
}

</mosaic_0001>

<llo_original>
// kernel: tpu_custom_call.1
$region0: #{tpu_custom_call.1}
  #allocation0 [shape = 'u32[]', space=smem, size = 0x4, offset = 0x4, fixed_abs, tag = 'smem constant byte address 0x4 - core index']
  #allocation1 [shape = 'u32[72,128]{1,0:T(1,128)}', space=vmem, size = 0x9000, scoped, tag = 'internal scratch']
  %s0 = inlined_call_operand.vmem [shape: f32[16,32], index: 0, kind: input, shape index: {}]
  %s1 = inlined_call_operand.vmem [shape: bf16[24,32,8], index: 1, kind: input, shape index: {}]
  %s2 = inlined_call_operand.vmem [shape: f32[24,1,8], index: 2, kind: input, shape index: {}]
  %s3 = inlined_call_operand.vmem [shape: bf16[8,8,32], index: 3, kind: input, shape index: {}]
  %s4 = inlined_call_operand.vmem [shape: bf16[2,32,128], index: 4, kind: input, shape index: {}]
  %s5 = inlined_call_operand.vmem [shape: bf16[2,128,32], index: 5, kind: input, shape index: {}]
  %s6 = inlined_call_operand.vmem [shape: f32[2,1,128], index: 6, kind: input, shape index: {}]
  %s7 = inlined_call_operand.vmem [shape: f32[2,6,32], index: 7, kind: input, shape index: {}]
  %s8 = inlined_call_operand.vmem [shape: f32[2,32], index: 8, kind: input, shape index: {}]
  %s9 = inlined_call_operand.hbm [shape: f32[16,32], index: 9, kind: output, shape index: {}]
  %s10 = sld [smem:[#allocation0]]
  $region46: #{tpu_custom_call.1} parent=0
    _
  %s12 = ssub.s32 1, %s10
  %s13 = scalar_select 0, %s12, %s10
  $region1: #{tpu_custom_call.1} parent=0
    #allocation2 [shape = 'u8[8192]{0}', space=vmem, size = 0x2000, scoped, tag = 'output window, operand 0, single buffered']
    #allocation3 [shape = 's32[1]{0}', space=sflag, size = 0x4, scoped, tag = 'scoped memory for tpu_custom_call.1']
    %14 = vsyncpa [#allocation3], 0
    // Predicated region
    $region2: #{tpu_custom_call.1} parent=1 // pred_check
      _
    $region3: #{tpu_custom_call.1} parent=1 // pred_check_branch
      %16 = sbr.rel (0) target = $region5
    $region4: #{tpu_custom_call.1} parent=1 // pred_region
      _
    $region5: #{tpu_custom_call.1} parent=1 // pred_fallthru
      _
    // Predicated region
    $region6: #{tpu_custom_call.1} parent=1 // pred_check
      _
    $region7: #{tpu_custom_call.1} parent=1 // pred_check_branch
      %18 = sbr.rel (0) target = $region9
    $region8: #{tpu_custom_call.1} parent=1 // pred_region
      _
    $region9: #{tpu_custom_call.1} parent=1 // pred_fallthru
      _
    // Predicated region
    $region10: #{tpu_custom_call.1} parent=1 // pred_check
      _
    $region11: #{tpu_custom_call.1} parent=1 // pred_check_branch
      %20 = sbr.rel (0) target = $region13
    $region12: #{tpu_custom_call.1} parent=1 // pred_region
      _
    $region13: #{tpu_custom_call.1} parent=1 // pred_fallthru
      _
    // Predicated region
    $region14: #{tpu_custom_call.1} parent=1 // pred_check
      _
    $region15: #{tpu_custom_call.1} parent=1 // pred_check_branch
      %22 = sbr.rel (0) target = $region17
    $region16: #{tpu_custom_call.1} parent=1 // pred_region
      _
    $region17: #{tpu_custom_call.1} parent=1 // pred_fallthru
      _
    // Predicated region
    $region18: #{tpu_custom_call.1} parent=1 // pred_check
      _
    $region19: #{tpu_custom_call.1} parent=1 // pred_check_branch
      %24 = sbr.rel (0) target = $region21
    $region20: #{tpu_custom_call.1} parent=1 // pred_region
      _
    $region21: #{tpu_custom_call.1} parent=1 // pred_fallthru
      _
    // Predicated region
    $region22: #{tpu_custom_call.1} parent=1 // pred_check
      _
    $region23: #{tpu_custom_call.1} parent=1 // pred_check_branch
      %26 = sbr.rel (0) target = $region25
    $region24: #{tpu_custom_call.1} parent=1 // pred_region
      _
    $region25: #{tpu_custom_call.1} parent=1 // pred_fallthru
      _
    // Predicated region
    $region26: #{tpu_custom_call.1} parent=1 // pred_check
      _
    $region27: #{tpu_custom_call.1} parent=1 // pred_check_branch
      %28 = sbr.rel (0) target = $region29
    $region28: #{tpu_custom_call.1} parent=1 // pred_region
      _
    $region29: #{tpu_custom_call.1} parent=1 // pred_fallthru
      _
    // Predicated region
    $region30: #{tpu_custom_call.1} parent=1 // pred_check
      _
    $region31: #{tpu_custom_call.1} parent=1 // pred_check_branch
      %30 = sbr.rel (0) target = $region33
    $region32: #{tpu_custom_call.1} parent=1 // pred_region
      _
    $region33: #{tpu_custom_call.1} parent=1 // pred_fallthru
      _
    // Predicated region
    $region34: #{tpu_custom_call.1} parent=1 // pred_check
      _
    $region35: #{tpu_custom_call.1} parent=1 // pred_check_branch
      %32 = sbr.rel (0) target = $region37
    $region36: #{tpu_custom_call.1} parent=1 // pred_region
      _
    $region37: #{tpu_custom_call.1} parent=1 // pred_fallthru
      _
    %v34 = vld [vmem:[%s0] sm:$0xff]
    %v35 = vld [vmem:[%s0 + $0x8] sm:$0xff]
    %v36 = vlaneseq
    %v37 = vshrl.u32 %v36, 7
    %v38 = vlaneseq
    %v39 = vand.u32 %v38, 127
    %vm40 = vcmp.ge.s32.totalorder %v37, %v39
    %v41 = vsel %vm40, 0.0, -1e+30
    %v42 = vld [vmem:[%s7] sm:$0x3f]
    %vm43 = vcmask 261120
    %v44 = vsel %vm43, %v34, 0.0
    %45 = vadd.xlane.f32.xlu0 %v44
    %v46 = vpop.xlane.xlu0 %45
    %v47 = vsel %vm43, %v35, 0.0
    %48 = vadd.xlane.f32.xlu0 %v47
    %v49 = vpop.xlane.xlu0 %48
    %v50 = vrcp.pop 32.0
    %v51 = vmul.f32 32.0, %v50
    %v52 = vsub.f32 1.0, %v51
    %v53 = vmul.f32 %v50, %v52
    %v54 = vadd.f32 %v50, %v53
    %vm55 = vweird.f32 %v50
    %v56 = vsel %vm55, %v50, %v54
    %v57 = vmul.f32 %v46, %v56
    %v58 = vmul.f32 %v49, %v56
    %v59 = vsub.f32 %v34, %v57
    %v60 = vsub.f32 %v35, %v58
    %v61 = vmul.f32 %v59, %v59
    %v62 = vmul.f32 %v60, %v60
    %v63 = vsel %vm43, %v61, 0.0
    %64 = vadd.xlane.f32.xlu0 %v63
    %v65 = vpop.xlane.xlu0 %64
    %v66 = vsel %vm43, %v62, 0.0
    %67 = vadd.xlane.f32.xlu0 %v66
    %v68 = vpop.xlane.xlu0 %67
    %v69 = vmul.f32 %v65, %v56
    %v70 = vmul.f32 %v68, %v56
    %v71 = vadd.f32 %v69, 1e-05
    %v72 = vadd.f32 %v70, 1e-05
    %v73 = vrsqrt.pop %v71
    %v74 = vmul.f32 %v73, %v71
    %v75 = vmul.f32 %v74, %v73
    %v76 = vmul.f32 0.5, %v75
    %v77 = vsub.f32 1.5, %v76
    %v78 = vmul.f32 %v73, %v77
    %vm79 = vweird.f32 %v71
    %vm80 = vweird.f32 %v73
    %vm81 = vmor %vm79, %vm80
    %v82 = vsel %vm81, %v73, %v78
    %v83 = vrsqrt.pop %v72
    %v84 = vmul.f32 %v83, %v72
    %v85 = vmul.f32 %v84, %v83
    %v86 = vmul.f32 0.5, %v85
    %v87 = vsub.f32 1.5, %v86
    %v88 = vmul.f32 %v83, %v87
    %vm89 = vweird.f32 %v72
    %vm90 = vweird.f32 %v83
    %vm91 = vmor %vm89, %vm90
    %v92 = vsel %vm91, %v83, %v88
    %v93 = vmul.f32 %v59, %v82
    %v94 = vmul.f32 %v60, %v92
    %v95 = vperm.slane %v42, 1
    %v96 = vmul.f32 %v93, %v95
    %v97 = vmul.f32 %v94, %v95
    %v98 = vperm.slane %v42, 2
    %v99 = vadd.f32 %v96, %v98
    %v100 = vadd.f32 %v97, %v98
    %v101 = vpack.c.bf16 %v100, %v99
    %v102 = vld [vmem:[%s1] sm:$0xf]
    %v103 = vld [vmem:[%s1 + $0x4] sm:$0xf]
    %v104 = vld [vmem:[%s1 + $0x8] sm:$0xf]
    %v105 = vld [vmem:[%s1 + $0xc] sm:$0xf]
    %v106 = vld [vmem:[%s2] sm:$0x1]
    %v108 = vperm.slane %v106, 0
    %v114 = vunpack.c.l.b16 %v102
    %v115 = vunpack.c.l.b16 %v103
    %v116 = vunpack.c.l.b16 %v104
    %v117 = vunpack.c.l.b16 %v105
    %v118 = vpack.c.b16 %v115, %v114
    %v119 = vpack.c.b16 %v117, %v116
    %v123 = vsel %vm43, %v101, 0
    %125 = vmatpush.bf16.msra.mxu0 0
    %126 = vmatpush.bf16.msra.mxu0 0
    %127 = vmatpush.bf16.msra.mxu0 0
    %128 = vmatpush.bf16.msra.mxu0 0
    %129 = vmatpush.bf16.msra.mxu0 0
    %130 = vmatpush.bf16.msra.mxu0 0
    %131 = vmatpush.bf16.msra.mxu0 %v119
    %132 = vmatpush.bf16.msra.mxu0 %v118
    %133 = vmatmul.bf16.gmra.mxu0 %v123
    %v134 = vpop.f32.mrf.mxu0
    %v135 = vadd.f32 %v108, %v134
    %v136 = vpop.f32.mrf.mxu0
    %v137 = vadd.f32 %v108, %v136
    %138 = vdwg.mxu0
    %s139 = scalar_lea.vmem %s1, 64
    %v140 = vld [vmem:[%s139] sm:$0xf]
    %v141 = vld [vmem:[%s139 + $0x4] sm:$0xf]
    %v142 = vld [vmem:[%s139 + $0x8] sm:$0xf]
    %v143 = vld [vmem:[%s139 + $0xc] sm:$0xf]
    %s144 = scalar_lea.vmem %s2, 4
    %v145 = vld [vmem:[%s144] sm:$0x1]
    %v147 = vperm.slane %v145, 0
    %v153 = vunpack.c.l.b16 %v140
    %v154 = vunpack.c.l.b16 %v141
    %v155 = vunpack.c.l.b16 %v142
    %v156 = vunpack.c.l.b16 %v143
    %v157 = vpack.c.b16 %v154, %v153
    %v158 = vpack.c.b16 %v156, %v155
    %161 = vmatpush.bf16.msra.mxu0 0
    %162 = vmatpush.bf16.msra.mxu0 0
    %163 = vmatpush.bf16.msra.mxu0 0
    %164 = vmatpush.bf16.msra.mxu0 0
    %165 = vmatpush.bf16.msra.mxu0 0
    %166 = vmatpush.bf16.msra.mxu0 0
    %167 = vmatpush.bf16.msra.mxu0 %v158
    %168 = vmatpush.bf16.msra.mxu0 %v157
    %169 = vmatmul.bf16.gmra.mxu0 %v123
    %v170 = vpop.f32.mrf.mxu0
    %v171 = vadd.f32 %v147, %v170
    %v172 = vpop.f32.mrf.mxu0
    %v173 = vadd.f32 %v147, %v172
    %174 = vdwg.mxu0
    %s175 = scalar_lea.vmem %s1, 128
    %v176 = vld [vmem:[%s175] sm:$0xf]
    %v177 = vld [vmem:[%s175 + $0x4] sm:$0xf]
    %v178 = vld [vmem:[%s175 + $0x8] sm:$0xf]
    %v179 = vld [vmem:[%s175 + $0xc] sm:$0xf]
    %s180 = scalar_lea.vmem %s2, 8
    %v181 = vld [vmem:[%s180] sm:$0x1]
    %v183 = vperm.slane %v181, 0
    %v189 = vunpack.c.l.b16 %v176
    %v190 = vunpack.c.l.b16 %v177
    %v191 = vunpack.c.l.b16 %v178
    %v192 = vunpack.c.l.b16 %v179
    %v193 = vpack.c.b16 %v190, %v189
    %v194 = vpack.c.b16 %v192, %v191
    %197 = vmatpush.bf16.msra.mxu0 0
    %198 = vmatpush.bf16.msra.mxu0 0
    %199 = vmatpush.bf16.msra.mxu0 0
    %200 = vmatpush.bf16.msra.mxu0 0
    %201 = vmatpush.bf16.msra.mxu0 0
    %202 = vmatpush.bf16.msra.mxu0 0
    %203 = vmatpush.bf16.msra.mxu0 %v194
    %204 = vmatpush.bf16.msra.mxu0 %v193
    %205 = vmatmul.bf16.gmra.mxu0 %v123
    %v206 = vpop.f32.mrf.mxu0
    %v207 = vadd.f32 %v183, %v206
    %v208 = vpop.f32.mrf.mxu0
    %v209 = vadd.f32 %v183, %v208
    %210 = vdwg.mxu0
    %vm211 = vcmask 64512
    %v213 = vsel %vm211, %v135, 0
    %v216 = vsel %vm211, %v171, 0
    %218 = vmatpush.xpose.msra.mxu0 0.0
    %219 = vmatpush.xpose.msra.mxu0 0.0
    %220 = vmatpush.xpose.msra.mxu0 0.0
    %221 = vmatpush.xpose.msra.mxu0 0.0
    %222 = vmatpush.xpose.msra.mxu0 0.0
    %223 = vmatpush.xpose.msra.mxu0 0.0
    %224 = vmatpush.xpose.msra.mxu0 0.0
    %225 = vmatpush.xpose.msra.mxu0 0.0
    %226 = vmatpush.xpose.msra.mxu0 0.0
    %227 = vmatpush.xpose.msra.mxu0 0.0
    %228 = vmatpush.xpose.msra.mxu0 0.0
    %229 = vmatpush.xpose.msra.mxu0 0.0
    %230 = vmatpush.xpose.msra.mxu0 0.0
    %231 = vmatpush.xpose.msra.mxu0 0.0
    %232 = vmatpush.xpose.msra.mxu0 0.0
    %233 = vmatpush.xpose.msra.mxu0 %v216
    %234 = vmatmul.f32.gmra.mxu0 %v213
    %v235 = vpop.f32.mrf.mxu0
    %v236 = vadd.f32 0.0, %v235
    %237 = vdwg.mxu0
    %v239 = vsel %vm211, %v137, 0
    %v242 = vsel %vm211, %v173, 0
    %244 = vmatpush.xpose.msra.mxu0 0.0
    %245 = vmatpush.xpose.msra.mxu0 0.0
    %246 = vmatpush.xpose.msra.mxu0 0.0
    %247 = vmatpush.xpose.msra.mxu0 0.0
    %248 = vmatpush.xpose.msra.mxu0 0.0
    %249 = vmatpush.xpose.msra.mxu0 0.0
    %250 = vmatpush.xpose.msra.mxu0 0.0
    %251 = vmatpush.xpose.msra.mxu0 0.0
    %252 = vmatpush.xpose.msra.mxu0 0.0
    %253 = vmatpush.xpose.msra.mxu0 0.0
    %254 = vmatpush.xpose.msra.mxu0 0.0
    %255 = vmatpush.xpose.msra.mxu0 0.0
    %256 = vmatpush.xpose.msra.mxu0 0.0
    %257 = vmatpush.xpose.msra.mxu0 0.0
    %258 = vmatpush.xpose.msra.mxu0 0.0
    %259 = vmatpush.xpose.msra.mxu0 %v242
    %260 = vmatmul.f32.gmra.mxu0 %v239
    %v261 = vpop.f32.mrf.mxu0
    %v262 = vadd.f32 0.0, %v261
    %263 = vdwg.mxu0
    %v264 = vmul.f32 %v236, 0.35355338
    %v265 = vmul.f32 %v262, 0.35355338
    %v266 = vadd.f32 %v264, %v41
    %v267 = vadd.f32 %v265, %v41
    %v268 = vsel %vm211, %v266, -inf
    %269 = vmax.xlane.f32.xlu0 %v268
    %v270 = vpop.xlane.xlu0 %269
    %v271 = vsel %vm211, %v267, -inf
    %272 = vmax.xlane.f32.xlu0 %v271
    %v273 = vpop.xlane.xlu0 %272
    %v274 = vsub.f32 %v266, %v270
    %v275 = vsub.f32 %v267, %v273
    %v276 = vmul.f32 %v274, 1.442695
    %v277 = vpow.pop %v276
    %v278 = vmul.f32 %v275, 1.442695
    %v279 = vpow.pop %v278
    %v280 = vsel %vm211, %v277, 0.0
    %281 = vadd.xlane.f32.xlu0 %v280
    %v282 = vpop.xlane.xlu0 %281
    %v283 = vsel %vm211, %v279, 0.0
    %284 = vadd.xlane.f32.xlu0 %v283
    %v285 = vpop.xlane.xlu0 %284
    %v286 = vrcp.pop %v282
    %v287 = vrcp.pop %v285
    %v288 = vmul.f32 %v277, %v286
    %v289 = vmul.f32 %v279, %v287
    %v291 = vsel %vm211, %v288, 0
    %293 = vmatpush.msra.mxu0 0.0
    %294 = vmatpush.msra.mxu0 0.0
    %295 = vmatpush.msra.mxu0 0.0
    %296 = vmatpush.msra.mxu0 0.0
    %297 = vmatpush.msra.mxu0 0.0
    %298 = vmatpush.msra.mxu0 0.0
    %299 = vmatpush.msra.mxu0 0.0
    %300 = vmatpush.msra.mxu0 0.0
    %301 = vmatpush.msra.mxu0 0.0
    %302 = vmatpush.msra.mxu0 0.0
    %303 = vmatpush.msra.mxu0 0.0
    %304 = vmatpush.msra.mxu0 0.0
    %305 = vmatpush.msra.mxu0 0.0
    %306 = vmatpush.msra.mxu0 0.0
    %307 = vmatpush.msra.mxu0 0.0
    %308 = vmatpush.msra.mxu0 %v207
    %309 = vmatmul.f32.gmra.mxu0 %v291
    %v310 = vpop.f32.mrf.mxu0
    %v311 = vadd.f32 0.0, %v310
    %312 = vdwg.mxu0
    %v314 = vsel %vm211, %v289, 0
    %316 = vmatpush.msra.mxu0 0.0
    %317 = vmatpush.msra.mxu0 0.0
    %318 = vmatpush.msra.mxu0 0.0
    %319 = vmatpush.msra.mxu0 0.0
    %320 = vmatpush.msra.mxu0 0.0
    %321 = vmatpush.msra.mxu0 0.0
    %322 = vmatpush.msra.mxu0 0.0
    %323 = vmatpush.msra.mxu0 0.0
    %324 = vmatpush.msra.mxu0 0.0
    %325 = vmatpush.msra.mxu0 0.0
    %326 = vmatpush.msra.mxu0 0.0
    %327 = vmatpush.msra.mxu0 0.0
    %328 = vmatpush.msra.mxu0 0.0
    %329 = vmatpush.msra.mxu0 0.0
    %330 = vmatpush.msra.mxu0 0.0
    %331 = vmatpush.msra.mxu0 %v209
    %332 = vmatmul.f32.gmra.mxu0 %v314
    %v333 = vpop.f32.mrf.mxu0
    %v334 = vadd.f32 0.0, %v333
    %335 = vdwg.mxu0
    %v336 = vpack.c.bf16 %v334, %v311
    %v337 = vld [vmem:[%s3] sm:$0xf]
    %s338 = scalar_lea.vmem %s1, 16
    %v339 = vld [vmem:[%s338] sm:$0xf]
    %v340 = vld [vmem:[%s338 + $0x4] sm:$0xf]
    %v341 = vld [vmem:[%s338 + $0x8] sm:$0xf]
    %v342 = vld [vmem:[%s338 + $0xc] sm:$0xf]
    %s343 = scalar_lea.vmem %s2, 1
    %v344 = vld [vmem:[%s343] sm:$0x1]
    %v346 = vperm.slane %v344, 0
    %v352 = vunpack.c.l.b16 %v339
    %v353 = vunpack.c.l.b16 %v340
    %v354 = vunpack.c.l.b16 %v341
    %v355 = vunpack.c.l.b16 %v342
    %v356 = vpack.c.b16 %v353, %v352
    %v357 = vpack.c.b16 %v355, %v354
    %360 = vmatpush.bf16.msra.mxu0 0
    %361 = vmatpush.bf16.msra.mxu0 0
    %362 = vmatpush.bf16.msra.mxu0 0
    %363 = vmatpush.bf16.msra.mxu0 0
    %364 = vmatpush.bf16.msra.mxu0 0
    %365 = vmatpush.bf16.msra.mxu0 0
    %366 = vmatpush.bf16.msra.mxu0 %v357
    %367 = vmatpush.bf16.msra.mxu0 %v356
    %368 = vmatmul.bf16.gmra.mxu0 %v123
    %v369 = vpop.f32.mrf.mxu0
    %v370 = vadd.f32 %v346, %v369
    %v371 = vpop.f32.mrf.mxu0
    %v372 = vadd.f32 %v346, %v371
    %373 = vdwg.mxu0
    %s374 = scalar_lea.vmem %s1, 80
    %v375 = vld [vmem:[%s374] sm:$0xf]
    %v376 = vld [vmem:[%s374 + $0x4] sm:$0xf]
    %v377 = vld [vmem:[%s374 + $0x8] sm:$0xf]
    %v378 = vld [vmem:[%s374 + $0xc] sm:$0xf]
    %s379 = scalar_lea.vmem %s2, 5
    %v380 = vld [vmem:[%s379] sm:$0x1]
    %v382 = vperm.slane %v380, 0
    %v388 = vunpack.c.l.b16 %v375
    %v389 = vunpack.c.l.b16 %v376
    %v390 = vunpack.c.l.b16 %v377
    %v391 = vunpack.c.l.b16 %v378
    %v392 = vpack.c.b16 %v389, %v388
    %v393 = vpack.c.b16 %v391, %v390
    %396 = vmatpush.bf16.msra.mxu0 0
    %397 = vmatpush.bf16.msra.mxu0 0
    %398 = vmatpush.bf16.msra.mxu0 0
    %399 = vmatpush.bf16.msra.mxu0 0
    %400 = vmatpush.bf16.msra.mxu0 0
    %401 = vmatpush.bf16.msra.mxu0 0
    %402 = vmatpush.bf16.msra.mxu0 %v393
    %403 = vmatpush.bf16.msra.mxu0 %v392
    %404 = vmatmul.bf16.gmra.mxu0 %v123
    %v405 = vpop.f32.mrf.mxu0
    %v406 = vadd.f32 %v382, %v405
    %v407 = vpop.f32.mrf.mxu0
    %v408 = vadd.f32 %v382, %v407
    %409 = vdwg.mxu0
    %s410 = scalar_lea.vmem %s1, 144
    %v411 = vld [vmem:[%s410] sm:$0xf]
    %v412 = vld [vmem:[%s410 + $0x4] sm:$0xf]
    %v413 = vld [vmem:[%s410 + $0x8] sm:$0xf]
    %v414 = vld [vmem:[%s410 + $0xc] sm:$0xf]
    %s415 = scalar_lea.vmem %s2, 9
    %v416 = vld [vmem:[%s415] sm:$0x1]
    %v418 = vperm.slane %v416, 0
    %v424 = vunpack.c.l.b16 %v411
    %v425 = vunpack.c.l.b16 %v412
    %v426 = vunpack.c.l.b16 %v413
    %v427 = vunpack.c.l.b16 %v414
    %v428 = vpack.c.b16 %v425, %v424
    %v429 = vpack.c.b16 %v427, %v426
    %432 = vmatpush.bf16.msra.mxu0 0
    %433 = vmatpush.bf16.msra.mxu0 0
    %434 = vmatpush.bf16.msra.mxu0 0
    %435 = vmatpush.bf16.msra.mxu0 0
    %436 = vmatpush.bf16.msra.mxu0 0
    %437 = vmatpush.bf16.msra.mxu0 0
    %438 = vmatpush.bf16.msra.mxu0 %v429
    %439 = vmatpush.bf16.msra.mxu0 %v428
    %440 = vmatmul.bf16.gmra.mxu0 %v123
    %v441 = vpop.f32.mrf.mxu0
    %v442 = vadd.f32 %v418, %v441
    %v443 = vpop.f32.mrf.mxu0
    %v444 = vadd.f32 %v418, %v443
    %445 = vdwg.mxu0
    %v447 = vsel %vm211, %v370, 0
    %v450 = vsel %vm211, %v406, 0
    %452 = vmatpush.xpose.msra.mxu0 0.0
    %453 = vmatpush.xpose.msra.mxu0 0.0
    %454 = vmatpush.xpose.msra.mxu0 0.0
    %455 = vmatpush.xpose.msra.mxu0 0.0
    %456 = vmatpush.xpose.msra.mxu0 0.0
    %457 = vmatpush.xpose.msra.mxu0 0.0
    %458 = vmatpush.xpose.msra.mxu0 0.0
    %459 = vmatpush.xpose.msra.mxu0 0.0
    %460 = vmatpush.xpose.msra.mxu0 0.0
    %461 = vmatpush.xpose.msra.mxu0 0.0
    %462 = vmatpush.xpose.msra.mxu0 0.0
    %463 = vmatpush.xpose.msra.mxu0 0.0
    %464 = vmatpush.xpose.msra.mxu0 0.0
    %465 = vmatpush.xpose.msra.mxu0 0.0
    %466 = vmatpush.xpose.msra.mxu0 0.0
    %467 = vmatpush.xpose.msra.mxu0 %v450
    %468 = vmatmul.f32.gmra.mxu0 %v447
    %v469 = vpop.f32.mrf.mxu0
    %v470 = vadd.f32 0.0, %v469
    %471 = vdwg.mxu0
    %v473 = vsel %vm211, %v372, 0
    %v476 = vsel %vm211, %v408, 0
    %478 = vmatpush.xpose.msra.mxu0 0.0
    %479 = vmatpush.xpose.msra.mxu0 0.0
    %480 = vmatpush.xpose.msra.mxu0 0.0
    %481 = vmatpush.xpose.msra.mxu0 0.0
    %482 = vmatpush.xpose.msra.mxu0 0.0
    %483 = vmatpush.xpose.msra.mxu0 0.0
    %484 = vmatpush.xpose.msra.mxu0 0.0
    %485 = vmatpush.xpose.msra.mxu0 0.0
    %486 = vmatpush.xpose.msra.mxu0 0.0
    %487 = vmatpush.xpose.msra.mxu0 0.0
    %488 = vmatpush.xpose.msra.mxu0 0.0
    %489 = vmatpush.xpose.msra.mxu0 0.0
    %490 = vmatpush.xpose.msra.mxu0 0.0
    %491 = vmatpush.xpose.msra.mxu0 0.0
    %492 = vmatpush.xpose.msra.mxu0 0.0
    %493 = vmatpush.xpose.msra.mxu0 %v476
    %494 = vmatmul.f32.gmra.mxu0 %v473
    %v495 = vpop.f32.mrf.mxu0
    %v496 = vadd.f32 0.0, %v495
    %497 = vdwg.mxu0
    %v498 = vmul.f32 %v470, 0.35355338
    %v499 = vmul.f32 %v496, 0.35355338
    %v500 = vadd.f32 %v498, %v41
    %v501 = vadd.f32 %v499, %v41
    %v502 = vsel %vm211, %v500, -inf
    %503 = vmax.xlane.f32.xlu0 %v502
    %v504 = vpop.xlane.xlu0 %503
    %v505 = vsel %vm211, %v501, -inf
    %506 = vmax.xlane.f32.xlu0 %v505
    %v507 = vpop.xlane.xlu0 %506
    %v508 = vsub.f32 %v500, %v504
    %v509 = vsub.f32 %v501, %v507
    %v510 = vmul.f32 %v508, 1.442695
    %v511 = vpow.pop %v510
    %v512 = vmul.f32 %v509, 1.442695
    %v513 = vpow.pop %v512
    %v514 = vsel %vm211, %v511, 0.0
    %515 = vadd.xlane.f32.xlu0 %v514
    %v516 = vpop.xlane.xlu0 %515
    %v517 = vsel %vm211, %v513, 0.0
    %518 = vadd.xlane.f32.xlu0 %v517
    %v519 = vpop.xlane.xlu0 %518
    %v520 = vrcp.pop %v516
    %v521 = vrcp.pop %v519
    %v522 = vmul.f32 %v511, %v520
    %v523 = vmul.f32 %v513, %v521
    %v525 = vsel %vm211, %v522, 0
    %527 = vmatpush.msra.mxu0 0.0
    %528 = vmatpush.msra.mxu0 0.0
    %529 = vmatpush.msra.mxu0 0.0
    %530 = vmatpush.msra.mxu0 0.0
    %531 = vmatpush.msra.mxu0 0.0
    %532 = vmatpush.msra.mxu0 0.0
    %533 = vmatpush.msra.mxu0 0.0
    %534 = vmatpush.msra.mxu0 0.0
    %535 = vmatpush.msra.mxu0 0.0
    %536 = vmatpush.msra.mxu0 0.0
    %537 = vmatpush.msra.mxu0 0.0
    %538 = vmatpush.msra.mxu0 0.0
    %539 = vmatpush.msra.mxu0 0.0
    %540 = vmatpush.msra.mxu0 0.0
    %541 = vmatpush.msra.mxu0 0.0
    %542 = vmatpush.msra.mxu0 %v442
    %543 = vmatmul.f32.gmra.mxu0 %v525
    %v544 = vpop.f32.mrf.mxu0
    %v545 = vadd.f32 0.0, %v544
    %546 = vdwg.mxu0
    %v548 = vsel %vm211, %v523, 0
    %550 = vmatpush.msra.mxu0 0.0
    %551 = vmatpush.msra.mxu0 0.0
    %552 = vmatpush.msra.mxu0 0.0
    %553 = vmatpush.msra.mxu0 0.0
    %554 = vmatpush.msra.mxu0 0.0
    %555 = vmatpush.msra.mxu0 0.0
    %556 = vmatpush.msra.mxu0 0.0
    %557 = vmatpush.msra.mxu0 0.0
    %558 = vmatpush.msra.mxu0 0.0
    %559 = vmatpush.msra.mxu0 0.0
    %560 = vmatpush.msra.mxu0 0.0
    %561 = vmatpush.msra.mxu0 0.0
    %562 = vmatpush.msra.mxu0 0.0
    %563 = vmatpush.msra.mxu0 0.0
    %564 = vmatpush.msra.mxu0 0.0
    %565 = vmatpush.msra.mxu0 %v444
    %566 = vmatmul.f32.gmra.mxu0 %v548
    %v567 = vpop.f32.mrf.mxu0
    %v568 = vadd.f32 0.0, %v567
    %569 = vdwg.mxu0
    %v570 = vpack.c.bf16 %v568, %v545
    %s571 = scalar_lea.vmem %s3, 4
    %v572 = vld [vmem:[%s571] sm:$0xf]
    %v574 = vsel %vm211, %v570, 0
    %vm576 = vcmask 1043456
    %v578 = vsel %vm576, %v572, 0
    %580 = vmatpush.bf16.msra.mxu0 0
    %581 = vmatpush.bf16.msra.mxu0 0
    %582 = vmatpush.bf16.msra.mxu0 0
    %583 = vmatpush.bf16.msra.mxu0 0
    %584 = vmatpush.bf16.msra.mxu0 0
    %585 = vmatpush.bf16.msra.mxu0 0
    %586 = vmatpush.bf16.msra.mxu0 0
    %587 = vmatpush.bf16.msra.mxu0 %v578
    %588 = vmatmul.bf16.gmra.mxu0 %v574
    %v589 = vpop.f32.mrf.mxu0
    %v590 = vadd.f32 0.0, %v589
    %v591 = vpop.f32.mrf.mxu0
    %v592 = vadd.f32 0.0, %v591
    %593 = vdwg.mxu0
    %v595 = vsel %vm211, %v336, 0
    %v598 = vsel %vm576, %v337, 0
    %600 = vmatpush.bf16.msra.mxu0 0
    %601 = vmatpush.bf16.msra.mxu0 0
    %602 = vmatpush.bf16.msra.mxu0 0
    %603 = vmatpush.bf16.msra.mxu0 0
    %604 = vmatpush.bf16.msra.mxu0 0
    %605 = vmatpush.bf16.msra.mxu0 0
    %606 = vmatpush.bf16.msra.mxu0 0
    %607 = vmatpush.bf16.msra.mxu0 %v598
    %608 = vmatmul.bf16.gmra.mxu0 %v595
    %v609 = vpop.f32.mrf.mxu0
    %v610 = vadd.f32 %v590, %v609
    %v611 = vpop.f32.mrf.mxu0
    %v612 = vadd.f32 %v592, %v611
    %613 = vdwg.mxu0
    %s614 = scalar_lea.vmem %s1, 32
    %v615 = vld [vmem:[%s614] sm:$0xf]
    %v616 = vld [vmem:[%s614 + $0x4] sm:$0xf]
    %v617 = vld [vmem:[%s614 + $0x8] sm:$0xf]
    %v618 = vld [vmem:[%s614 + $0xc] sm:$0xf]
    %s619 = scalar_lea.vmem %s2, 2
    %v620 = vld [vmem:[%s619] sm:$0x1]
    %v622 = vperm.slane %v620, 0
    %v628 = vunpack.c.l.b16 %v615
    %v629 = vunpack.c.l.b16 %v616
    %v630 = vunpack.c.l.b16 %v617
    %v631 = vunpack.c.l.b16 %v618
    %v632 = vpack.c.b16 %v629, %v628
    %v633 = vpack.c.b16 %v631, %v630
    %636 = vmatpush.bf16.msra.mxu0 0
    %637 = vmatpush.bf16.msra.mxu0 0
    %638 = vmatpush.bf16.msra.mxu0 0
    %639 = vmatpush.bf16.msra.mxu0 0
    %640 = vmatpush.bf16.msra.mxu0 0
    %641 = vmatpush.bf16.msra.mxu0 0
    %642 = vmatpush.bf16.msra.mxu0 %v633
    %643 = vmatpush.bf16.msra.mxu0 %v632
    %644 = vmatmul.bf16.gmra.mxu0 %v123
    %v645 = vpop.f32.mrf.mxu0
    %v646 = vadd.f32 %v622, %v645
    %v647 = vpop.f32.mrf.mxu0
    %v648 = vadd.f32 %v622, %v647
    %649 = vdwg.mxu0
    %s650 = scalar_lea.vmem %s1, 96
    %v651 = vld [vmem:[%s650] sm:$0xf]
    %v652 = vld [vmem:[%s650 + $0x4] sm:$0xf]
    %v653 = vld [vmem:[%s650 + $0x8] sm:$0xf]
    %v654 = vld [vmem:[%s650 + $0xc] sm:$0xf]
    %s655 = scalar_lea.vmem %s2, 6
    %v656 = vld [vmem:[%s655] sm:$0x1]
    %v658 = vperm.slane %v656, 0
    %v664 = vunpack.c.l.b16 %v651
    %v665 = vunpack.c.l.b16 %v652
    %v666 = vunpack.c.l.b16 %v653
    %v667 = vunpack.c.l.b16 %v654
    %v668 = vpack.c.b16 %v665, %v664
    %v669 = vpack.c.b16 %v667, %v666
    %672 = vmatpush.bf16.msra.mxu0 0
    %673 = vmatpush.bf16.msra.mxu0 0
    %674 = vmatpush.bf16.msra.mxu0 0
    %675 = vmatpush.bf16.msra.mxu0 0
    %676 = vmatpush.bf16.msra.mxu0 0
    %677 = vmatpush.bf16.msra.mxu0 0
    %678 = vmatpush.bf16.msra.mxu0 %v669
    %679 = vmatpush.bf16.msra.mxu0 %v668
    %680 = vmatmul.bf16.gmra.mxu0 %v123
    %v681 = vpop.f32.mrf.mxu0
    %v682 = vadd.f32 %v658, %v681
    %v683 = vpop.f32.mrf.mxu0
    %v684 = vadd.f32 %v658, %v683
    %685 = vdwg.mxu0
    %s686 = scalar_lea.vmem %s1, 160
    %v687 = vld [vmem:[%s686] sm:$0xf]
    %v688 = vld [vmem:[%s686 + $0x4] sm:$0xf]
    %v689 = vld [vmem:[%s686 + $0x8] sm:$0xf]
    %v690 = vld [vmem:[%s686 + $0xc] sm:$0xf]
    %s691 = scalar_lea.vmem %s2, 10
    %v692 = vld [vmem:[%s691] sm:$0x1]
    %v694 = vperm.slane %v692, 0
    %v700 = vunpack.c.l.b16 %v687
    %v701 = vunpack.c.l.b16 %v688
    %v702 = vunpack.c.l.b16 %v689
    %v703 = vunpack.c.l.b16 %v690
    %v704 = vpack.c.b16 %v701, %v700
    %v705 = vpack.c.b16 %v703, %v702
    %708 = vmatpush.bf16.msra.mxu0 0
    %709 = vmatpush.bf16.msra.mxu0 0
    %710 = vmatpush.bf16.msra.mxu0 0
    %711 = vmatpush.bf16.msra.mxu0 0
    %712 = vmatpush.bf16.msra.mxu0 0
    %713 = vmatpush.bf16.msra.mxu0 0
    %714 = vmatpush.bf16.msra.mxu0 %v705
    %715 = vmatpush.bf16.msra.mxu0 %v704
    %716 = vmatmul.bf16.gmra.mxu0 %v123
    %v717 = vpop.f32.mrf.mxu0
    %v718 = vadd.f32 %v694, %v717
    %v719 = vpop.f32.mrf.mxu0
    %v720 = vadd.f32 %v694, %v719
    %721 = vdwg.mxu0
    %v723 = vsel %vm211, %v646, 0
    %v726 = vsel %vm211, %v682, 0
    %728 = vmatpush.xpose.msra.mxu0 0.0
    %729 = vmatpush.xpose.msra.mxu0 0.0
    %730 = vmatpush.xpose.msra.mxu0 0.0
    %731 = vmatpush.xpose.msra.mxu0 0.0
    %732 = vmatpush.xpose.msra.mxu0 0.0
    %733 = vmatpush.xpose.msra.mxu0 0.0
    %734 = vmatpush.xpose.msra.mxu0 0.0
    %735 = vmatpush.xpose.msra.mxu0 0.0
    %736 = vmatpush.xpose.msra.mxu0 0.0
    %737 = vmatpush.xpose.msra.mxu0 0.0
    %738 = vmatpush.xpose.msra.mxu0 0.0
    %739 = vmatpush.xpose.msra.mxu0 0.0
    %740 = vmatpush.xpose.msra.mxu0 0.0
    %741 = vmatpush.xpose.msra.mxu0 0.0
    %742 = vmatpush.xpose.msra.mxu0 0.0
    %743 = vmatpush.xpose.msra.mxu0 %v726
    %744 = vmatmul.f32.gmra.mxu0 %v723
    %v745 = vpop.f32.mrf.mxu0
    %v746 = vadd.f32 0.0, %v745
    %747 = vdwg.mxu0
    %v749 = vsel %vm211, %v648, 0
    %v752 = vsel %vm211, %v684, 0
    %754 = vmatpush.xpose.msra.mxu0 0.0
    %755 = vmatpush.xpose.msra.mxu0 0.0
    %756 = vmatpush.xpose.msra.mxu0 0.0
    %757 = vmatpush.xpose.msra.mxu0 0.0
    %758 = vmatpush.xpose.msra.mxu0 0.0
    %759 = vmatpush.xpose.msra.mxu0 0.0
    %760 = vmatpush.xpose.msra.mxu0 0.0
    %761 = vmatpush.xpose.msra.mxu0 0.0
    %762 = vmatpush.xpose.msra.mxu0 0.0
    %763 = vmatpush.xpose.msra.mxu0 0.0
    %764 = vmatpush.xpose.msra.mxu0 0.0
    %765 = vmatpush.xpose.msra.mxu0 0.0
    %766 = vmatpush.xpose.msra.mxu0 0.0
    %767 = vmatpush.xpose.msra.mxu0 0.0
    %768 = vmatpush.xpose.msra.mxu0 0.0
    %769 = vmatpush.xpose.msra.mxu0 %v752
    %770 = vmatmul.f32.gmra.mxu0 %v749
    %v771 = vpop.f32.mrf.mxu0
    %v772 = vadd.f32 0.0, %v771
    %773 = vdwg.mxu0
    %v774 = vmul.f32 %v746, 0.35355338
    %v775 = vmul.f32 %v772, 0.35355338
    %v776 = vadd.f32 %v774, %v41
    %v777 = vadd.f32 %v775, %v41
    %v778 = vsel %vm211, %v776, -inf
    %779 = vmax.xlane.f32.xlu0 %v778
    %v780 = vpop.xlane.xlu0 %779
    %v781 = vsel %vm211, %v777, -inf
    %782 = vmax.xlane.f32.xlu0 %v781
    %v783 = vpop.xlane.xlu0 %782
    %v784 = vsub.f32 %v776, %v780
    %v785 = vsub.f32 %v777, %v783
    %v786 = vmul.f32 %v784, 1.442695
    %v787 = vpow.pop %v786
    %v788 = vmul.f32 %v785, 1.442695
    %v789 = vpow.pop %v788
    %v790 = vsel %vm211, %v787, 0.0
    %791 = vadd.xlane.f32.xlu0 %v790
    %v792 = vpop.xlane.xlu0 %791
    %v793 = vsel %vm211, %v789, 0.0
    %794 = vadd.xlane.f32.xlu0 %v793
    %v795 = vpop.xlane.xlu0 %794
    %v796 = vrcp.pop %v792
    %v797 = vrcp.pop %v795
    %v798 = vmul.f32 %v787, %v796
    %v799 = vmul.f32 %v789, %v797
    %v801 = vsel %vm211, %v798, 0
    %803 = vmatpush.msra.mxu0 0.0
    %804 = vmatpush.msra.mxu0 0.0
    %805 = vmatpush.msra.mxu0 0.0
    %806 = vmatpush.msra.mxu0 0.0
    %807 = vmatpush.msra.mxu0 0.0
    %808 = vmatpush.msra.mxu0 0.0
    %809 = vmatpush.msra.mxu0 0.0
    %810 = vmatpush.msra.mxu0 0.0
    %811 = vmatpush.msra.mxu0 0.0
    %812 = vmatpush.msra.mxu0 0.0
    %813 = vmatpush.msra.mxu0 0.0
    %814 = vmatpush.msra.mxu0 0.0
    %815 = vmatpush.msra.mxu0 0.0
    %816 = vmatpush.msra.mxu0 0.0
    %817 = vmatpush.msra.mxu0 0.0
    %818 = vmatpush.msra.mxu0 %v718
    %819 = vmatmul.f32.gmra.mxu0 %v801
    %v820 = vpop.f32.mrf.mxu0
    %v821 = vadd.f32 0.0, %v820
    %822 = vdwg.mxu0
    %v824 = vsel %vm211, %v799, 0
    %826 = vmatpush.msra.mxu0 0.0
    %827 = vmatpush.msra.mxu0 0.0
    %828 = vmatpush.msra.mxu0 0.0
    %829 = vmatpush.msra.mxu0 0.0
    %830 = vmatpush.msra.mxu0 0.0
    %831 = vmatpush.msra.mxu0 0.0
    %832 = vmatpush.msra.mxu0 0.0
    %833 = vmatpush.msra.mxu0 0.0
    %834 = vmatpush.msra.mxu0 0.0
    %835 = vmatpush.msra.mxu0 0.0
    %836 = vmatpush.msra.mxu0 0.0
    %837 = vmatpush.msra.mxu0 0.0
    %838 = vmatpush.msra.mxu0 0.0
    %839 = vmatpush.msra.mxu0 0.0
    %840 = vmatpush.msra.mxu0 0.0
    %841 = vmatpush.msra.mxu0 %v720
    %842 = vmatmul.f32.gmra.mxu0 %v824
    %v843 = vpop.f32.mrf.mxu0
    %v844 = vadd.f32 0.0, %v843
    %845 = vdwg.mxu0
    %v846 = vpack.c.bf16 %v844, %v821
    %s847 = scalar_lea.vmem %s3, 8
    %v848 = vld [vmem:[%s847] sm:$0xf]
    %v850 = vsel %vm211, %v846, 0
    %v853 = vsel %vm576, %v848, 0
    %855 = vmatpush.bf16.msra.mxu0 0
    %856 = vmatpush.bf16.msra.mxu0 0
    %857 = vmatpush.bf16.msra.mxu0 0
    %858 = vmatpush.bf16.msra.mxu0 0
    %859 = vmatpush.bf16.msra.mxu0 0
    %860 = vmatpush.bf16.msra.mxu0 0
    %861 = vmatpush.bf16.msra.mxu0 0
    %862 = vmatpush.bf16.msra.mxu0 %v853
    %863 = vmatmul.bf16.gmra.mxu0 %v850
    %v864 = vpop.f32.mrf.mxu0
    %v865 = vadd.f32 0.0, %v864
    %v866 = vpop.f32.mrf.mxu0
    %v867 = vadd.f32 0.0, %v866
    %868 = vdwg.mxu0
    %v869 = vadd.f32 %v610, %v865
    %v870 = vadd.f32 %v612, %v867
    %s871 = scalar_lea.vmem %s1, 48
    %v872 = vld [vmem:[%s871] sm:$0xf]
    %v873 = vld [vmem:[%s871 + $0x4] sm:$0xf]
    %v874 = vld [vmem:[%s871 + $0x8] sm:$0xf]
    %v875 = vld [vmem:[%s871 + $0xc] sm:$0xf]
    %s876 = scalar_lea.vmem %s2, 3
    %v877 = vld [vmem:[%s876] sm:$0x1]
    %v879 = vperm.slane %v877, 0
    %v885 = vunpack.c.l.b16 %v872
    %v886 = vunpack.c.l.b16 %v873
    %v887 = vunpack.c.l.b16 %v874
    %v888 = vunpack.c.l.b16 %v875
    %v889 = vpack.c.b16 %v886, %v885
    %v890 = vpack.c.b16 %v888, %v887
    %893 = vmatpush.bf16.msra.mxu0 0
    %894 = vmatpush.bf16.msra.mxu0 0
    %895 = vmatpush.bf16.msra.mxu0 0
    %896 = vmatpush.bf16.msra.mxu0 0
    %897 = vmatpush.bf16.msra.mxu0 0
    %898 = vmatpush.bf16.msra.mxu0 0
    %899 = vmatpush.bf16.msra.mxu0 %v890
    %900 = vmatpush.bf16.msra.mxu0 %v889
    %901 = vmatmul.bf16.gmra.mxu0 %v123
    %v902 = vpop.f32.mrf.mxu0
    %v903 = vadd.f32 %v879, %v902
    %v904 = vpop.f32.mrf.mxu0
    %v905 = vadd.f32 %v879, %v904
    %906 = vdwg.mxu0
    %s907 = scalar_lea.vmem %s1, 112
    %v908 = vld [vmem:[%s907] sm:$0xf]
    %v909 = vld [vmem:[%s907 + $0x4] sm:$0xf]
    %v910 = vld [vmem:[%s907 + $0x8] sm:$0xf]
    %v911 = vld [vmem:[%s907 + $0xc] sm:$0xf]
    %s912 = scalar_lea.vmem %s2, 7
    %v913 = vld [vmem:[%s912] sm:$0x1]
    %v915 = vperm.slane %v913, 0
    %v921 = vunpack.c.l.b16 %v908
    %v922 = vunpack.c.l.b16 %v909
    %v923 = vunpack.c.l.b16 %v910
    %v924 = vunpack.c.l.b16 %v911
    %v925 = vpack.c.b16 %v922, %v921
    %v926 = vpack.c.b16 %v924, %v923
    %929 = vmatpush.bf16.msra.mxu0 0
    %930 = vmatpush.bf16.msra.mxu0 0
    %931 = vmatpush.bf16.msra.mxu0 0
    %932 = vmatpush.bf16.msra.mxu0 0
    %933 = vmatpush.bf16.msra.mxu0 0
    %934 = vmatpush.bf16.msra.mxu0 0
    %935 = vmatpush.bf16.msra.mxu0 %v926
    %936 = vmatpush.bf16.msra.mxu0 %v925
    %937 = vmatmul.bf16.gmra.mxu0 %v123
    %v938 = vpop.f32.mrf.mxu0
    %v939 = vadd.f32 %v915, %v938
    %v940 = vpop.f32.mrf.mxu0
    %v941 = vadd.f32 %v915, %v940
    %942 = vdwg.mxu0
    %s943 = scalar_lea.vmem %s1, 176
    %v944 = vld [vmem:[%s943] sm:$0xf]
    %v945 = vld [vmem:[%s943 + $0x4] sm:$0xf]
    %v946 = vld [vmem:[%s943 + $0x8] sm:$0xf]
    %v947 = vld [vmem:[%s943 + $0xc] sm:$0xf]
    %s948 = scalar_lea.vmem %s2, 11
    %v949 = vld [vmem:[%s948] sm:$0x1]
    %v951 = vperm.slane %v949, 0
    %v957 = vunpack.c.l.b16 %v944
    %v958 = vunpack.c.l.b16 %v945
    %v959 = vunpack.c.l.b16 %v946
    %v960 = vunpack.c.l.b16 %v947
    %v961 = vpack.c.b16 %v958, %v957
    %v962 = vpack.c.b16 %v960, %v959
    %965 = vmatpush.bf16.msra.mxu0 0
    %966 = vmatpush.bf16.msra.mxu0 0
    %967 = vmatpush.bf16.msra.mxu0 0
    %968 = vmatpush.bf16.msra.mxu0 0
    %969 = vmatpush.bf16.msra.mxu0 0
    %970 = vmatpush.bf16.msra.mxu0 0
    %971 = vmatpush.bf16.msra.mxu0 %v962
    %972 = vmatpush.bf16.msra.mxu0 %v961
    %973 = vmatmul.bf16.gmra.mxu0 %v123
    %v974 = vpop.f32.mrf.mxu0
    %v975 = vadd.f32 %v951, %v974
    %v976 = vpop.f32.mrf.mxu0
    %v977 = vadd.f32 %v951, %v976
    %978 = vdwg.mxu0
    %v980 = vsel %vm211, %v903, 0
    %v983 = vsel %vm211, %v939, 0
    %985 = vmatpush.xpose.msra.mxu0 0.0
    %986 = vmatpush.xpose.msra.mxu0 0.0
    %987 = vmatpush.xpose.msra.mxu0 0.0
    %988 = vmatpush.xpose.msra.mxu0 0.0
    %989 = vmatpush.xpose.msra.mxu0 0.0
    %990 = vmatpush.xpose.msra.mxu0 0.0
    %991 = vmatpush.xpose.msra.mxu0 0.0
    %992 = vmatpush.xpose.msra.mxu0 0.0
    %993 = vmatpush.xpose.msra.mxu0 0.0
    %994 = vmatpush.xpose.msra.mxu0 0.0
    %995 = vmatpush.xpose.msra.mxu0 0.0
    %996 = vmatpush.xpose.msra.mxu0 0.0
    %997 = vmatpush.xpose.msra.mxu0 0.0
    %998 = vmatpush.xpose.msra.mxu0 0.0
    %999 = vmatpush.xpose.msra.mxu0 0.0
    %1000 = vmatpush.xpose.msra.mxu0 %v983
    %1001 = vmatmul.f32.gmra.mxu0 %v980
    %v1002 = vpop.f32.mrf.mxu0
    %v1003 = vadd.f32 0.0, %v1002
    %1004 = vdwg.mxu0
    %v1006 = vsel %vm211, %v905, 0
    %v1009 = vsel %vm211, %v941, 0
    %1011 = vmatpush.xpose.msra.mxu0 0.0
    %1012 = vmatpush.xpose.msra.mxu0 0.0
    %1013 = vmatpush.xpose.msra.mxu0 0.0
    %1014 = vmatpush.xpose.msra.mxu0 0.0
    %1015 = vmatpush.xpose.msra.mxu0 0.0
    %1016 = vmatpush.xpose.msra.mxu0 0.0
    %1017 = vmatpush.xpose.msra.mxu0 0.0
    %1018 = vmatpush.xpose.msra.mxu0 0.0
    %1019 = vmatpush.xpose.msra.mxu0 0.0
    %1020 = vmatpush.xpose.msra.mxu0 0.0
    %1021 = vmatpush.xpose.msra.mxu0 0.0
    %1022 = vmatpush.xpose.msra.mxu0 0.0
    %1023 = vmatpush.xpose.msra.mxu0 0.0
    %1024 = vmatpush.xpose.msra.mxu0 0.0
    %1025 = vmatpush.xpose.msra.mxu0 0.0
    %1026 = vmatpush.xpose.msra.mxu0 %v1009
    %1027 = vmatmul.f32.gmra.mxu0 %v1006
    %v1028 = vpop.f32.mrf.mxu0
    %v1029 = vadd.f32 0.0, %v1028
    %1030 = vdwg.mxu0
    %v1031 = vmul.f32 %v1003, 0.35355338
    %v1032 = vmul.f32 %v1029, 0.35355338
    %v1033 = vadd.f32 %v1031, %v41
    %v1034 = vadd.f32 %v1032, %v41
    %v1035 = vsel %vm211, %v1033, -inf
    %1036 = vmax.xlane.f32.xlu0 %v1035
    %v1037 = vpop.xlane.xlu0 %1036
    %v1038 = vsel %vm211, %v1034, -inf
    %1039 = vmax.xlane.f32.xlu0 %v1038
    %v1040 = vpop.xlane.xlu0 %1039
    %v1041 = vsub.f32 %v1033, %v1037
    %v1042 = vsub.f32 %v1034, %v1040
    %v1043 = vmul.f32 %v1041, 1.442695
    %v1044 = vpow.pop %v1043
    %v1045 = vmul.f32 %v1042, 1.442695
    %v1046 = vpow.pop %v1045
    %v1047 = vsel %vm211, %v1044, 0.0
    %1048 = vadd.xlane.f32.xlu0 %v1047
    %v1049 = vpop.xlane.xlu0 %1048
    %v1050 = vsel %vm211, %v1046, 0.0
    %1051 = vadd.xlane.f32.xlu0 %v1050
    %v1052 = vpop.xlane.xlu0 %1051
    %v1053 = vrcp.pop %v1049
    %v1054 = vrcp.pop %v1052
    %v1055 = vmul.f32 %v1044, %v1053
    %v1056 = vmul.f32 %v1046, %v1054
    %v1058 = vsel %vm211, %v1055, 0
    %1060 = vmatpush.msra.mxu0 0.0
    %1061 = vmatpush.msra.mxu0 0.0
    %1062 = vmatpush.msra.mxu0 0.0
    %1063 = vmatpush.msra.mxu0 0.0
    %1064 = vmatpush.msra.mxu0 0.0
    %1065 = vmatpush.msra.mxu0 0.0
    %1066 = vmatpush.msra.mxu0 0.0
    %1067 = vmatpush.msra.mxu0 0.0
    %1068 = vmatpush.msra.mxu0 0.0
    %1069 = vmatpush.msra.mxu0 0.0
    %1070 = vmatpush.msra.mxu0 0.0
    %1071 = vmatpush.msra.mxu0 0.0
    %1072 = vmatpush.msra.mxu0 0.0
    %1073 = vmatpush.msra.mxu0 0.0
    %1074 = vmatpush.msra.mxu0 0.0
    %1075 = vmatpush.msra.mxu0 %v975
    %1076 = vmatmul.f32.gmra.mxu0 %v1058
    %v1077 = vpop.f32.mrf.mxu0
    %v1078 = vadd.f32 0.0, %v1077
    %1079 = vdwg.mxu0
    %v1081 = vsel %vm211, %v1056, 0
    %1083 = vmatpush.msra.mxu0 0.0
    %1084 = vmatpush.msra.mxu0 0.0
    %1085 = vmatpush.msra.mxu0 0.0
    %1086 = vmatpush.msra.mxu0 0.0
    %1087 = vmatpush.msra.mxu0 0.0
    %1088 = vmatpush.msra.mxu0 0.0
    %1089 = vmatpush.msra.mxu0 0.0
    %1090 = vmatpush.msra.mxu0 0.0
    %1091 = vmatpush.msra.mxu0 0.0
    %1092 = vmatpush.msra.mxu0 0.0
    %1093 = vmatpush.msra.mxu0 0.0
    %1094 = vmatpush.msra.mxu0 0.0
    %1095 = vmatpush.msra.mxu0 0.0
    %1096 = vmatpush.msra.mxu0 0.0
    %1097 = vmatpush.msra.mxu0 0.0
    %1098 = vmatpush.msra.mxu0 %v977
    %1099 = vmatmul.f32.gmra.mxu0 %v1081
    %v1100 = vpop.f32.mrf.mxu0
    %v1101 = vadd.f32 0.0, %v1100
    %1102 = vdwg.mxu0
    %v1103 = vpack.c.bf16 %v1101, %v1078
    %s1104 = scalar_lea.vmem %s3, 12
    %v1105 = vld [vmem:[%s1104] sm:$0xf]
    %v1107 = vsel %vm211, %v1103, 0
    %v1110 = vsel %vm576, %v1105, 0
    %1112 = vmatpush.bf16.msra.mxu0 0
    %1113 = vmatpush.bf16.msra.mxu0 0
    %1114 = vmatpush.bf16.msra.mxu0 0
    %1115 = vmatpush.bf16.msra.mxu0 0
    %1116 = vmatpush.bf16.msra.mxu0 0
    %1117 = vmatpush.bf16.msra.mxu0 0
    %1118 = vmatpush.bf16.msra.mxu0 0
    %1119 = vmatpush.bf16.msra.mxu0 %v1110
    %1120 = vmatmul.bf16.gmra.mxu0 %v1107
    %v1121 = vpop.f32.mrf.mxu0
    %v1122 = vadd.f32 0.0, %v1121
    %v1123 = vpop.f32.mrf.mxu0
    %v1124 = vadd.f32 0.0, %v1123
    %1125 = vdwg.mxu0
    %v1126 = vadd.f32 %v869, %v1122
    %v1127 = vadd.f32 %v870, %v1124
    %v1128 = vadd.f32 %v34, %v1126
    %v1129 = vadd.f32 %v35, %v1127
    %v1130 = vperm.slane %v42, 0
    %v1131 = vadd.f32 %v1128, %v1130
    %v1132 = vadd.f32 %v1129, %v1130
    %v1133 = vsel %vm43, %v1131, 0.0
    %1134 = vadd.xlane.f32.xlu0 %v1133
    %v1135 = vpop.xlane.xlu0 %1134
    %v1136 = vsel %vm43, %v1132, 0.0
    %1137 = vadd.xlane.f32.xlu0 %v1136
    %v1138 = vpop.xlane.xlu0 %1137
    %v1139 = vmul.f32 %v1135, %v56
    %v1140 = vmul.f32 %v1138, %v56
    %v1141 = vsub.f32 %v1131, %v1139
    %v1142 = vsub.f32 %v1132, %v1140
    %v1143 = vmul.f32 %v1141, %v1141
    %v1144 = vmul.f32 %v1142, %v1142
    %v1145 = vsel %vm43, %v1143, 0.0
    %1146 = vadd.xlane.f32.xlu0 %v1145
    %v1147 = vpop.xlane.xlu0 %1146
    %v1148 = vsel %vm43, %v1144, 0.0
    %1149 = vadd.xlane.f32.xlu0 %v1148
    %v1150 = vpop.xlane.xlu0 %1149
    %v1151 = vmul.f32 %v1147, %v56
    %v1152 = vmul.f32 %v1150, %v56
    %v1153 = vadd.f32 %v1151, 1e-05
    %v1154 = vadd.f32 %v1152, 1e-05
    %v1155 = vrsqrt.pop %v1153
    %v1156 = vmul.f32 %v1155, %v1153
    %v1157 = vmul.f32 %v1156, %v1155
    %v1158 = vmul.f32 0.5, %v1157
    %v1159 = vsub.f32 1.5, %v1158
    %v1160 = vmul.f32 %v1155, %v1159
    %vm1161 = vweird.f32 %v1153
    %vm1162 = vweird.f32 %v1155
    %vm1163 = vmor %vm1161, %vm1162
    %v1164 = vsel %vm1163, %v1155, %v1160
    %v1165 = vrsqrt.pop %v1154
    %v1166 = vmul.f32 %v1165, %v1154
    %v1167 = vmul.f32 %v1166, %v1165
    %v1168 = vmul.f32 0.5, %v1167
    %v1169 = vsub.f32 1.5, %v1168
    %v1170 = vmul.f32 %v1165, %v1169
    %vm1171 = vweird.f32 %v1154
    %vm1172 = vweird.f32 %v1165
    %vm1173 = vmor %vm1171, %vm1172
    %v1174 = vsel %vm1173, %v1165, %v1170
    %v1175 = vmul.f32 %v1141, %v1164
    %v1176 = vmul.f32 %v1142, %v1174
    %v1177 = vperm.slane %v42, 3
    %v1178 = vmul.f32 %v1175, %v1177
    %v1179 = vmul.f32 %v1176, %v1177
    %v1180 = vperm.slane %v42, 4
    %v1181 = vadd.f32 %v1178, %v1180
    %v1182 = vadd.f32 %v1179, %v1180
    %v1183 = vpack.c.bf16 %v1182, %v1181
    %v1184 = vld [vmem:[%s4] sm:$0xf]
    %v1185 = vld [vmem:[%s4 + $0x4] sm:$0xf]
    %v1186 = vld [vmem:[%s4 + $0x8] sm:$0xf]
    %v1187 = vld [vmem:[%s4 + $0xc] sm:$0xf]
    %v1188 = vld [vmem:[%s6] sm:$0x1]
    %v1190 = vperm.slane %v1188, 0
    %v1196 = vunpack.c.l.b16 %v1184
    %v1197 = vunpack.c.l.b16 %v1185
    %v1198 = vunpack.c.l.b16 %v1186
    %v1199 = vunpack.c.l.b16 %v1187
    %v1200 = vpack.c.b16 %v1197, %v1196
    %v1201 = vpack.c.b16 %v1199, %v1198
    %v1205 = vsel %vm43, %v1183, 0
    %1207 = vmatpush.bf16.msra.mxu0 0
    %1208 = vmatpush.bf16.msra.mxu0 0
    %1209 = vmatpush.bf16.msra.mxu0 0
    %1210 = vmatpush.bf16.msra.mxu0 0
    %1211 = vmatpush.bf16.msra.mxu0 0
    %1212 = vmatpush.bf16.msra.mxu0 0
    %1213 = vmatpush.bf16.msra.mxu0 %v1201
    %1214 = vmatpush.bf16.msra.mxu0 %v1200
    %1215 = vmatmul.bf16.gmra.mxu0 %v1205
    %v1216 = vpop.f32.mrf.mxu0
    %v1217 = vadd.f32 %v1190, %v1216
    %v1218 = vpop.f32.mrf.mxu0
    %v1219 = vadd.f32 %v1190, %v1218
    %1220 = vdwg.mxu0
    %v1221 = vmul.f32 %v1217, 0.5
    %v1222 = vmul.f32 %v1219, 0.5
    %v1223 = vmul.f32 %v1217, 0.044715
    %v1224 = vmul.f32 %v1219, 0.044715
    %v1225 = vmul.f32 %v1223, %v1217
    %v1226 = vmul.f32 %v1224, %v1219
    %v1227 = vmul.f32 %v1225, %v1217
    %v1228 = vmul.f32 %v1226, %v1219
    %v1229 = vadd.f32 %v1217, %v1227
    %v1230 = vadd.f32 %v1219, %v1228
    %v1231 = vmul.f32 %v1229, 0.7978846
    %v1232 = vmul.f32 %v1230, 0.7978846
    %v1233 = vtanh.pop %v1231
    %v1234 = vtanh.pop %v1232
    %v1235 = vadd.f32 %v1233, 1.0
    %v1236 = vadd.f32 %v1234, 1.0
    %v1237 = vmul.f32 %v1221, %v1235
    %v1238 = vmul.f32 %v1222, %v1236
    %v1239 = vpack.c.bf16 %v1238, %v1237
    %v1240 = vld [vmem:[%s5] sm:$0xf]
    %v1241 = vld [vmem:[%s5 + $0x4] sm:$0xf]
    %v1242 = vld [vmem:[%s5 + $0x8] sm:$0xf]
    %v1243 = vld [vmem:[%s5 + $0xc] sm:$0xf]
    %v1244 = vld [vmem:[%s5 + $0x10] sm:$0xf]
    %v1245 = vld [vmem:[%s5 + $0x14] sm:$0xf]
    %v1246 = vld [vmem:[%s5 + $0x18] sm:$0xf]
    %v1247 = vld [vmem:[%s5 + $0x1c] sm:$0xf]
    %v1248 = vld [vmem:[%s5 + $0x20] sm:$0xf]
    %v1249 = vld [vmem:[%s5 + $0x24] sm:$0xf]
    %v1250 = vld [vmem:[%s5 + $0x28] sm:$0xf]
    %v1251 = vld [vmem:[%s5 + $0x2c] sm:$0xf]
    %v1252 = vld [vmem:[%s5 + $0x30] sm:$0xf]
    %v1253 = vld [vmem:[%s5 + $0x34] sm:$0xf]
    %v1254 = vld [vmem:[%s5 + $0x38] sm:$0xf]
    %v1255 = vld [vmem:[%s5 + $0x3c] sm:$0xf]
    %v1256 = vperm.slane %v42, 5
    %v1273 = vunpack.c.l.b16 %v1240
    %v1274 = vunpack.c.l.b16 %v1241
    %v1275 = vunpack.c.l.b16 %v1242
    %v1276 = vunpack.c.l.b16 %v1243
    %v1277 = vunpack.c.l.b16 %v1244
    %v1278 = vunpack.c.l.b16 %v1245
    %v1279 = vunpack.c.l.b16 %v1246
    %v1280 = vunpack.c.l.b16 %v1247
    %v1281 = vunpack.c.l.b16 %v1248
    %v1282 = vunpack.c.l.b16 %v1249
    %v1283 = vunpack.c.l.b16 %v1250
    %v1284 = vunpack.c.l.b16 %v1251
    %v1285 = vunpack.c.l.b16 %v1252
    %v1286 = vunpack.c.l.b16 %v1253
    %v1287 = vunpack.c.l.b16 %v1254
    %v1288 = vunpack.c.l.b16 %v1255
    %v1289 = vpack.c.b16 %v1274, %v1273
    %v1290 = vpack.c.b16 %v1276, %v1275
    %v1291 = vpack.c.b16 %v1278, %v1277
    %v1292 = vpack.c.b16 %v1280, %v1279
    %v1293 = vpack.c.b16 %v1282, %v1281
    %v1294 = vpack.c.b16 %v1284, %v1283
    %v1295 = vpack.c.b16 %v1286, %v1285
    %v1296 = vpack.c.b16 %v1288, %v1287
    %1305 = vmatpush.bf16.msra.mxu0 %v1296
    %1306 = vmatpush.bf16.msra.mxu0 %v1295
    %1307 = vmatpush.bf16.msra.mxu0 %v1294
    %1308 = vmatpush.bf16.msra.mxu0 %v1293
    %1309 = vmatpush.bf16.msra.mxu0 %v1292
    %1310 = vmatpush.bf16.msra.mxu0 %v1291
    %1311 = vmatpush.bf16.msra.mxu0 %v1290
    %1312 = vmatpush.bf16.msra.mxu0 %v1289
    %1313 = vmatmul.bf16.gmra.mxu0 %v1239
    %v1314 = vpop.f32.mrf.mxu0
    %v1315 = vadd.f32 %v1256, %v1314
    %v1316 = vpop.f32.mrf.mxu0
    %v1317 = vadd.f32 %v1256, %v1316
    %1318 = vdwg.mxu0
    %v1319 = vadd.f32 %v1131, %v1315
    %v1320 = vadd.f32 %v1132, %v1317
    %s1321 = scalar_lea.vmem %s7, 8
    %v1322 = vld [vmem:[%s1321] sm:$0x3f]
    %v1323 = vsel %vm43, %v1319, 0.0
    %1324 = vadd.xlane.f32.xlu0 %v1323
    %v1325 = vpop.xlane.xlu0 %1324
    %v1326 = vsel %vm43, %v1320, 0.0
    %1327 = vadd.xlane.f32.xlu0 %v1326
    %v1328 = vpop.xlane.xlu0 %1327
    %v1329 = vmul.f32 %v1325, %v56
    %v1330 = vmul.f32 %v1328, %v56
    %v1331 = vsub.f32 %v1319, %v1329
    %v1332 = vsub.f32 %v1320, %v1330
    %v1333 = vmul.f32 %v1331, %v1331
    %v1334 = vmul.f32 %v1332, %v1332
    %v1335 = vsel %vm43, %v1333, 0.0
    %1336 = vadd.xlane.f32.xlu0 %v1335
    %v1337 = vpop.xlane.xlu0 %1336
    %v1338 = vsel %vm43, %v1334, 0.0
    %1339 = vadd.xlane.f32.xlu0 %v1338
    %v1340 = vpop.xlane.xlu0 %1339
    %v1341 = vmul.f32 %v1337, %v56
    %v1342 = vmul.f32 %v1340, %v56
    %v1343 = vadd.f32 %v1341, 1e-05
    %v1344 = vadd.f32 %v1342, 1e-05
    %v1345 = vrsqrt.pop %v1343
    %v1346 = vmul.f32 %v1345, %v1343
    %v1347 = vmul.f32 %v1346, %v1345
    %v1348 = vmul.f32 0.5, %v1347
    %v1349 = vsub.f32 1.5, %v1348
    %v1350 = vmul.f32 %v1345, %v1349
    %vm1351 = vweird.f32 %v1343
    %vm1352 = vweird.f32 %v1345
    %vm1353 = vmor %vm1351, %vm1352
    %v1354 = vsel %vm1353, %v1345, %v1350
    %v1355 = vrsqrt.pop %v1344
    %v1356 = vmul.f32 %v1355, %v1344
    %v1357 = vmul.f32 %v1356, %v1355
    %v1358 = vmul.f32 0.5, %v1357
    %v1359 = vsub.f32 1.5, %v1358
    %v1360 = vmul.f32 %v1355, %v1359
    %vm1361 = vweird.f32 %v1344
    %vm1362 = vweird.f32 %v1355
    %vm1363 = vmor %vm1361, %vm1362
    %v1364 = vsel %vm1363, %v1355, %v1360
    %v1365 = vmul.f32 %v1331, %v1354
    %v1366 = vmul.f32 %v1332, %v1364
    %v1367 = vperm.slane %v1322, 1
    %v1368 = vmul.f32 %v1365, %v1367
    %v1369 = vmul.f32 %v1366, %v1367
    %v1370 = vperm.slane %v1322, 2
    %v1371 = vadd.f32 %v1368, %v1370
    %v1372 = vadd.f32 %v1369, %v1370
    %v1373 = vpack.c.bf16 %v1372, %v1371
    %s1374 = scalar_lea.vmem %s1, 192
    %v1375 = vld [vmem:[%s1374] sm:$0xf]
    %v1376 = vld [vmem:[%s1374 + $0x4] sm:$0xf]
    %v1377 = vld [vmem:[%s1374 + $0x8] sm:$0xf]
    %v1378 = vld [vmem:[%s1374 + $0xc] sm:$0xf]
    %s1379 = scalar_lea.vmem %s2, 12
    %v1380 = vld [vmem:[%s1379] sm:$0x1]
    %v1382 = vperm.slane %v1380, 0
    %v1388 = vunpack.c.l.b16 %v1375
    %v1389 = vunpack.c.l.b16 %v1376
    %v1390 = vunpack.c.l.b16 %v1377
    %v1391 = vunpack.c.l.b16 %v1378
    %v1392 = vpack.c.b16 %v1389, %v1388
    %v1393 = vpack.c.b16 %v1391, %v1390
    %v1397 = vsel %vm43, %v1373, 0
    %1399 = vmatpush.bf16.msra.mxu0 0
    %1400 = vmatpush.bf16.msra.mxu0 0
    %1401 = vmatpush.bf16.msra.mxu0 0
    %1402 = vmatpush.bf16.msra.mxu0 0
    %1403 = vmatpush.bf16.msra.mxu0 0
    %1404 = vmatpush.bf16.msra.mxu0 0
    %1405 = vmatpush.bf16.msra.mxu0 %v1393
    %1406 = vmatpush.bf16.msra.mxu0 %v1392
    %1407 = vmatmul.bf16.gmra.mxu0 %v1397
    %v1408 = vpop.f32.mrf.mxu0
    %v1409 = vadd.f32 %v1382, %v1408
    %v1410 = vpop.f32.mrf.mxu0
    %v1411 = vadd.f32 %v1382, %v1410
    %1412 = vdwg.mxu0
    %s1413 = scalar_lea.vmem %s1, 256
    %v1414 = vld [vmem:[%s1413] sm:$0xf]
    %v1415 = vld [vmem:[%s1413 + $0x4] sm:$0xf]
    %v1416 = vld [vmem:[%s1413 + $0x8] sm:$0xf]
    %v1417 = vld [vmem:[%s1413 + $0xc] sm:$0xf]
    %s1418 = scalar_lea.vmem %s2, 16
    %v1419 = vld [vmem:[%s1418] sm:$0x1]
    %v1421 = vperm.slane %v1419, 0
    %v1427 = vunpack.c.l.b16 %v1414
    %v1428 = vunpack.c.l.b16 %v1415
    %v1429 = vunpack.c.l.b16 %v1416
    %v1430 = vunpack.c.l.b16 %v1417
    %v1431 = vpack.c.b16 %v1428, %v1427
    %v1432 = vpack.c.b16 %v1430, %v1429
    %1435 = vmatpush.bf16.msra.mxu0 0
    %1436 = vmatpush.bf16.msra.mxu0 0
    %1437 = vmatpush.bf16.msra.mxu0 0
    %1438 = vmatpush.bf16.msra.mxu0 0
    %1439 = vmatpush.bf16.msra.mxu0 0
    %1440 = vmatpush.bf16.msra.mxu0 0
    %1441 = vmatpush.bf16.msra.mxu0 %v1432
    %1442 = vmatpush.bf16.msra.mxu0 %v1431
    %1443 = vmatmul.bf16.gmra.mxu0 %v1397
    %v1444 = vpop.f32.mrf.mxu0
    %v1445 = vadd.f32 %v1421, %v1444
    %v1446 = vpop.f32.mrf.mxu0
    %v1447 = vadd.f32 %v1421, %v1446
    %1448 = vdwg.mxu0
    %s1449 = scalar_lea.vmem %s1, 320
    %v1450 = vld [vmem:[%s1449] sm:$0xf]
    %v1451 = vld [vmem:[%s1449 + $0x4] sm:$0xf]
    %v1452 = vld [vmem:[%s1449 + $0x8] sm:$0xf]
    %v1453 = vld [vmem:[%s1449 + $0xc] sm:$0xf]
    %s1454 = scalar_lea.vmem %s2, 20
    %v1455 = vld [vmem:[%s1454] sm:$0x1]
    %v1457 = vperm.slane %v1455, 0
    %v1463 = vunpack.c.l.b16 %v1450
    %v1464 = vunpack.c.l.b16 %v1451
    %v1465 = vunpack.c.l.b16 %v1452
    %v1466 = vunpack.c.l.b16 %v1453
    %v1467 = vpack.c.b16 %v1464, %v1463
    %v1468 = vpack.c.b16 %v1466, %v1465
    %1471 = vmatpush.bf16.msra.mxu0 0
    %1472 = vmatpush.bf16.msra.mxu0 0
    %1473 = vmatpush.bf16.msra.mxu0 0
    %1474 = vmatpush.bf16.msra.mxu0 0
    %1475 = vmatpush.bf16.msra.mxu0 0
    %1476 = vmatpush.bf16.msra.mxu0 0
    %1477 = vmatpush.bf16.msra.mxu0 %v1468
    %1478 = vmatpush.bf16.msra.mxu0 %v1467
    %1479 = vmatmul.bf16.gmra.mxu0 %v1397
    %v1480 = vpop.f32.mrf.mxu0
    %v1481 = vadd.f32 %v1457, %v1480
    %v1482 = vpop.f32.mrf.mxu0
    %v1483 = vadd.f32 %v1457, %v1482
    %1484 = vdwg.mxu0
    %v1486 = vsel %vm211, %v1409, 0
    %v1489 = vsel %vm211, %v1445, 0
    %1491 = vmatpush.xpose.msra.mxu0 0.0
    %1492 = vmatpush.xpose.msra.mxu0 0.0
    %1493 = vmatpush.xpose.msra.mxu0 0.0
    %1494 = vmatpush.xpose.msra.mxu0 0.0
    %1495 = vmatpush.xpose.msra.mxu0 0.0
    %1496 = vmatpush.xpose.msra.mxu0 0.0
    %1497 = vmatpush.xpose.msra.mxu0 0.0
    %1498 = vmatpush.xpose.msra.mxu0 0.0
    %1499 = vmatpush.xpose.msra.mxu0 0.0
    %1500 = vmatpush.xpose.msra.mxu0 0.0
    %1501 = vmatpush.xpose.msra.mxu0 0.0
    %1502 = vmatpush.xpose.msra.mxu0 0.0
    %1503 = vmatpush.xpose.msra.mxu0 0.0
    %1504 = vmatpush.xpose.msra.mxu0 0.0
    %1505 = vmatpush.xpose.msra.mxu0 0.0
    %1506 = vmatpush.xpose.msra.mxu0 %v1489
    %1507 = vmatmul.f32.gmra.mxu0 %v1486
    %v1508 = vpop.f32.mrf.mxu0
    %v1509 = vadd.f32 0.0, %v1508
    %1510 = vdwg.mxu0
    %v1512 = vsel %vm211, %v1411, 0
    %v1515 = vsel %vm211, %v1447, 0
    %1517 = vmatpush.xpose.msra.mxu0 0.0
    %1518 = vmatpush.xpose.msra.mxu0 0.0
    %1519 = vmatpush.xpose.msra.mxu0 0.0
    %1520 = vmatpush.xpose.msra.mxu0 0.0
    %1521 = vmatpush.xpose.msra.mxu0 0.0
    %1522 = vmatpush.xpose.msra.mxu0 0.0
    %1523 = vmatpush.xpose.msra.mxu0 0.0
    %1524 = vmatpush.xpose.msra.mxu0 0.0
    %1525 = vmatpush.xpose.msra.mxu0 0.0
    %1526 = vmatpush.xpose.msra.mxu0 0.0
    %1527 = vmatpush.xpose.msra.mxu0 0.0
    %1528 = vmatpush.xpose.msra.mxu0 0.0
    %1529 = vmatpush.xpose.msra.mxu0 0.0
    %1530 = vmatpush.xpose.msra.mxu0 0.0
    %1531 = vmatpush.xpose.msra.mxu0 0.0
    %1532 = vmatpush.xpose.msra.mxu0 %v1515
    %1533 = vmatmul.f32.gmra.mxu0 %v1512
    %v1534 = vpop.f32.mrf.mxu0
    %v1535 = vadd.f32 0.0, %v1534
    %1536 = vdwg.mxu0
    %v1537 = vmul.f32 %v1509, 0.35355338
    %v1538 = vmul.f32 %v1535, 0.35355338
    %v1539 = vadd.f32 %v1537, %v41
    %v1540 = vadd.f32 %v1538, %v41
    %v1541 = vsel %vm211, %v1539, -inf
    %1542 = vmax.xlane.f32.xlu0 %v1541
    %v1543 = vpop.xlane.xlu0 %1542
    %v1544 = vsel %vm211, %v1540, -inf
    %1545 = vmax.xlane.f32.xlu0 %v1544
    %v1546 = vpop.xlane.xlu0 %1545
    %v1547 = vsub.f32 %v1539, %v1543
    %v1548 = vsub.f32 %v1540, %v1546
    %v1549 = vmul.f32 %v1547, 1.442695
    %v1550 = vpow.pop %v1549
    %v1551 = vmul.f32 %v1548, 1.442695
    %v1552 = vpow.pop %v1551
    %v1553 = vsel %vm211, %v1550, 0.0
    %1554 = vadd.xlane.f32.xlu0 %v1553
    %v1555 = vpop.xlane.xlu0 %1554
    %v1556 = vsel %vm211, %v1552, 0.0
    %1557 = vadd.xlane.f32.xlu0 %v1556
    %v1558 = vpop.xlane.xlu0 %1557
    %v1559 = vrcp.pop %v1555
    %v1560 = vrcp.pop %v1558
    %v1561 = vmul.f32 %v1550, %v1559
    %v1562 = vmul.f32 %v1552, %v1560
    %v1564 = vsel %vm211, %v1561, 0
    %1566 = vmatpush.msra.mxu0 0.0
    %1567 = vmatpush.msra.mxu0 0.0
    %1568 = vmatpush.msra.mxu0 0.0
    %1569 = vmatpush.msra.mxu0 0.0
    %1570 = vmatpush.msra.mxu0 0.0
    %1571 = vmatpush.msra.mxu0 0.0
    %1572 = vmatpush.msra.mxu0 0.0
    %1573 = vmatpush.msra.mxu0 0.0
    %1574 = vmatpush.msra.mxu0 0.0
    %1575 = vmatpush.msra.mxu0 0.0
    %1576 = vmatpush.msra.mxu0 0.0
    %1577 = vmatpush.msra.mxu0 0.0
    %1578 = vmatpush.msra.mxu0 0.0
    %1579 = vmatpush.msra.mxu0 0.0
    %1580 = vmatpush.msra.mxu0 0.0
    %1581 = vmatpush.msra.mxu0 %v1481
    %1582 = vmatmul.f32.gmra.mxu0 %v1564
    %v1583 = vpop.f32.mrf.mxu0
    %v1584 = vadd.f32 0.0, %v1583
    %1585 = vdwg.mxu0
    %v1587 = vsel %vm211, %v1562, 0
    %1589 = vmatpush.msra.mxu0 0.0
    %1590 = vmatpush.msra.mxu0 0.0
    %1591 = vmatpush.msra.mxu0 0.0
    %1592 = vmatpush.msra.mxu0 0.0
    %1593 = vmatpush.msra.mxu0 0.0
    %1594 = vmatpush.msra.mxu0 0.0
    %1595 = vmatpush.msra.mxu0 0.0
    %1596 = vmatpush.msra.mxu0 0.0
    %1597 = vmatpush.msra.mxu0 0.0
    %1598 = vmatpush.msra.mxu0 0.0
    %1599 = vmatpush.msra.mxu0 0.0
    %1600 = vmatpush.msra.mxu0 0.0
    %1601 = vmatpush.msra.mxu0 0.0
    %1602 = vmatpush.msra.mxu0 0.0
    %1603 = vmatpush.msra.mxu0 0.0
    %1604 = vmatpush.msra.mxu0 %v1483
    %1605 = vmatmul.f32.gmra.mxu0 %v1587
    %v1606 = vpop.f32.mrf.mxu0
    %v1607 = vadd.f32 0.0, %v1606
    %1608 = vdwg.mxu0
    %v1609 = vpack.c.bf16 %v1607, %v1584
    %s1610 = scalar_lea.vmem %s3, 16
    %v1611 = vld [vmem:[%s1610] sm:$0xf]
    %s1612 = scalar_lea.vmem %s1, 208
    %v1613 = vld [vmem:[%s1612] sm:$0xf]
    %v1614 = vld [vmem:[%s1612 + $0x4] sm:$0xf]
    %v1615 = vld [vmem:[%s1612 + $0x8] sm:$0xf]
    %v1616 = vld [vmem:[%s1612 + $0xc] sm:$0xf]
    %s1617 = scalar_lea.vmem %s2, 13
    %v1618 = vld [vmem:[%s1617] sm:$0x1]
    %v1620 = vperm.slane %v1618, 0
    %v1626 = vunpack.c.l.b16 %v1613
    %v1627 = vunpack.c.l.b16 %v1614
    %v1628 = vunpack.c.l.b16 %v1615
    %v1629 = vunpack.c.l.b16 %v1616
    %v1630 = vpack.c.b16 %v1627, %v1626
    %v1631 = vpack.c.b16 %v1629, %v1628
    %1634 = vmatpush.bf16.msra.mxu0 0
    %1635 = vmatpush.bf16.msra.mxu0 0
    %1636 = vmatpush.bf16.msra.mxu0 0
    %1637 = vmatpush.bf16.msra.mxu0 0
    %1638 = vmatpush.bf16.msra.mxu0 0
    %1639 = vmatpush.bf16.msra.mxu0 0
    %1640 = vmatpush.bf16.msra.mxu0 %v1631
    %1641 = vmatpush.bf16.msra.mxu0 %v1630
    %1642 = vmatmul.bf16.gmra.mxu0 %v1397
    %v1643 = vpop.f32.mrf.mxu0
    %v1644 = vadd.f32 %v1620, %v1643
    %v1645 = vpop.f32.mrf.mxu0
    %v1646 = vadd.f32 %v1620, %v1645
    %1647 = vdwg.mxu0
    %s1648 = scalar_lea.vmem %s1, 272
    %v1649 = vld [vmem:[%s1648] sm:$0xf]
    %v1650 = vld [vmem:[%s1648 + $0x4] sm:$0xf]
    %v1651 = vld [vmem:[%s1648 + $0x8] sm:$0xf]
    %v1652 = vld [vmem:[%s1648 + $0xc] sm:$0xf]
    %s1653 = scalar_lea.vmem %s2, 17
    %v1654 = vld [vmem:[%s1653] sm:$0x1]
    %v1656 = vperm.slane %v1654, 0
    %v1662 = vunpack.c.l.b16 %v1649
    %v1663 = vunpack.c.l.b16 %v1650
    %v1664 = vunpack.c.l.b16 %v1651
    %v1665 = vunpack.c.l.b16 %v1652
    %v1666 = vpack.c.b16 %v1663, %v1662
    %v1667 = vpack.c.b16 %v1665, %v1664
    %1670 = vmatpush.bf16.msra.mxu0 0
    %1671 = vmatpush.bf16.msra.mxu0 0
    %1672 = vmatpush.bf16.msra.mxu0 0
    %1673 = vmatpush.bf16.msra.mxu0 0
    %1674 = vmatpush.bf16.msra.mxu0 0
    %1675 = vmatpush.bf16.msra.mxu0 0
    %1676 = vmatpush.bf16.msra.mxu0 %v1667
    %1677 = vmatpush.bf16.msra.mxu0 %v1666
    %1678 = vmatmul.bf16.gmra.mxu0 %v1397
    %v1679 = vpop.f32.mrf.mxu0
    %v1680 = vadd.f32 %v1656, %v1679
    %v1681 = vpop.f32.mrf.mxu0
    %v1682 = vadd.f32 %v1656, %v1681
    %1683 = vdwg.mxu0
    %s1684 = scalar_lea.vmem %s1, 336
    %v1685 = vld [vmem:[%s1684] sm:$0xf]
    %v1686 = vld [vmem:[%s1684 + $0x4] sm:$0xf]
    %v1687 = vld [vmem:[%s1684 + $0x8] sm:$0xf]
    %v1688 = vld [vmem:[%s1684 + $0xc] sm:$0xf]
    %s1689 = scalar_lea.vmem %s2, 21
    %v1690 = vld [vmem:[%s1689] sm:$0x1]
    %v1692 = vperm.slane %v1690, 0
    %v1698 = vunpack.c.l.b16 %v1685
    %v1699 = vunpack.c.l.b16 %v1686
    %v1700 = vunpack.c.l.b16 %v1687
    %v1701 = vunpack.c.l.b16 %v1688
    %v1702 = vpack.c.b16 %v1699, %v1698
    %v1703 = vpack.c.b16 %v1701, %v1700
    %1706 = vmatpush.bf16.msra.mxu0 0
    %1707 = vmatpush.bf16.msra.mxu0 0
    %1708 = vmatpush.bf16.msra.mxu0 0
    %1709 = vmatpush.bf16.msra.mxu0 0
    %1710 = vmatpush.bf16.msra.mxu0 0
    %1711 = vmatpush.bf16.msra.mxu0 0
    %1712 = vmatpush.bf16.msra.mxu0 %v1703
    %1713 = vmatpush.bf16.msra.mxu0 %v1702
    %1714 = vmatmul.bf16.gmra.mxu0 %v1397
    %v1715 = vpop.f32.mrf.mxu0
    %v1716 = vadd.f32 %v1692, %v1715
    %v1717 = vpop.f32.mrf.mxu0
    %v1718 = vadd.f32 %v1692, %v1717
    %1719 = vdwg.mxu0
    %v1721 = vsel %vm211, %v1644, 0
    %v1724 = vsel %vm211, %v1680, 0
    %1726 = vmatpush.xpose.msra.mxu0 0.0
    %1727 = vmatpush.xpose.msra.mxu0 0.0
    %1728 = vmatpush.xpose.msra.mxu0 0.0
    %1729 = vmatpush.xpose.msra.mxu0 0.0
    %1730 = vmatpush.xpose.msra.mxu0 0.0
    %1731 = vmatpush.xpose.msra.mxu0 0.0
    %1732 = vmatpush.xpose.msra.mxu0 0.0
    %1733 = vmatpush.xpose.msra.mxu0 0.0
    %1734 = vmatpush.xpose.msra.mxu0 0.0
    %1735 = vmatpush.xpose.msra.mxu0 0.0
    %1736 = vmatpush.xpose.msra.mxu0 0.0
    %1737 = vmatpush.xpose.msra.mxu0 0.0
    %1738 = vmatpush.xpose.msra.mxu0 0.0
    %1739 = vmatpush.xpose.msra.mxu0 0.0
    %1740 = vmatpush.xpose.msra.mxu0 0.0
    %1741 = vmatpush.xpose.msra.mxu0 %v1724
    %1742 = vmatmul.f32.gmra.mxu0 %v1721
    %v1743 = vpop.f32.mrf.mxu0
    %v1744 = vadd.f32 0.0, %v1743
    %1745 = vdwg.mxu0
    %v1747 = vsel %vm211, %v1646, 0
    %v1750 = vsel %vm211, %v1682, 0
    %1752 = vmatpush.xpose.msra.mxu0 0.0
    %1753 = vmatpush.xpose.msra.mxu0 0.0
    %1754 = vmatpush.xpose.msra.mxu0 0.0
    %1755 = vmatpush.xpose.msra.mxu0 0.0
    %1756 = vmatpush.xpose.msra.mxu0 0.0
    %1757 = vmatpush.xpose.msra.mxu0 0.0
    %1758 = vmatpush.xpose.msra.mxu0 0.0
    %1759 = vmatpush.xpose.msra.mxu0 0.0
    %1760 = vmatpush.xpose.msra.mxu0 0.0
    %1761 = vmatpush.xpose.msra.mxu0 0.0
    %1762 = vmatpush.xpose.msra.mxu0 0.0
    %1763 = vmatpush.xpose.msra.mxu0 0.0
    %1764 = vmatpush.xpose.msra.mxu0 0.0
    %1765 = vmatpush.xpose.msra.mxu0 0.0
    %1766 = vmatpush.xpose.msra.mxu0 0.0
    %1767 = vmatpush.xpose.msra.mxu0 %v1750
    %1768 = vmatmul.f32.gmra.mxu0 %v1747
    %v1769 = vpop.f32.mrf.mxu0
    %v1770 = vadd.f32 0.0, %v1769
    %1771 = vdwg.mxu0
    %v1772 = vmul.f32 %v1744, 0.35355338
    %v1773 = vmul.f32 %v1770, 0.35355338
    %v1774 = vadd.f32 %v1772, %v41
    %v1775 = vadd.f32 %v1773, %v41
    %v1776 = vsel %vm211, %v1774, -inf
    %1777 = vmax.xlane.f32.xlu0 %v1776
    %v1778 = vpop.xlane.xlu0 %1777
    %v1779 = vsel %vm211, %v1775, -inf
    %1780 = vmax.xlane.f32.xlu0 %v1779
    %v1781 = vpop.xlane.xlu0 %1780
    %v1782 = vsub.f32 %v1774, %v1778
    %v1783 = vsub.f32 %v1775, %v1781
    %v1784 = vmul.f32 %v1782, 1.442695
    %v1785 = vpow.pop %v1784
    %v1786 = vmul.f32 %v1783, 1.442695
    %v1787 = vpow.pop %v1786
    %v1788 = vsel %vm211, %v1785, 0.0
    %1789 = vadd.xlane.f32.xlu0 %v1788
    %v1790 = vpop.xlane.xlu0 %1789
    %v1791 = vsel %vm211, %v1787, 0.0
    %1792 = vadd.xlane.f32.xlu0 %v1791
    %v1793 = vpop.xlane.xlu0 %1792
    %v1794 = vrcp.pop %v1790
    %v1795 = vrcp.pop %v1793
    %v1796 = vmul.f32 %v1785, %v1794
    %v1797 = vmul.f32 %v1787, %v1795
    %v1799 = vsel %vm211, %v1796, 0
    %1801 = vmatpush.msra.mxu0 0.0
    %1802 = vmatpush.msra.mxu0 0.0
    %1803 = vmatpush.msra.mxu0 0.0
    %1804 = vmatpush.msra.mxu0 0.0
    %1805 = vmatpush.msra.mxu0 0.0
    %1806 = vmatpush.msra.mxu0 0.0
    %1807 = vmatpush.msra.mxu0 0.0
    %1808 = vmatpush.msra.mxu0 0.0
    %1809 = vmatpush.msra.mxu0 0.0
    %1810 = vmatpush.msra.mxu0 0.0
    %1811 = vmatpush.msra.mxu0 0.0
    %1812 = vmatpush.msra.mxu0 0.0
    %1813 = vmatpush.msra.mxu0 0.0
    %1814 = vmatpush.msra.mxu0 0.0
    %1815 = vmatpush.msra.mxu0 0.0
    %1816 = vmatpush.msra.mxu0 %v1716
    %1817 = vmatmul.f32.gmra.mxu0 %v1799
    %v1818 = vpop.f32.mrf.mxu0
    %v1819 = vadd.f32 0.0, %v1818
    %1820 = vdwg.mxu0
    %v1822 = vsel %vm211, %v1797, 0
    %1824 = vmatpush.msra.mxu0 0.0
    %1825 = vmatpush.msra.mxu0 0.0
    %1826 = vmatpush.msra.mxu0 0.0
    %1827 = vmatpush.msra.mxu0 0.0
    %1828 = vmatpush.msra.mxu0 0.0
    %1829 = vmatpush.msra.mxu0 0.0
    %1830 = vmatpush.msra.mxu0 0.0
    %1831 = vmatpush.msra.mxu0 0.0
    %1832 = vmatpush.msra.mxu0 0.0
    %1833 = vmatpush.msra.mxu0 0.0
    %1834 = vmatpush.msra.mxu0 0.0
    %1835 = vmatpush.msra.mxu0 0.0
    %1836 = vmatpush.msra.mxu0 0.0
    %1837 = vmatpush.msra.mxu0 0.0
    %1838 = vmatpush.msra.mxu0 0.0
    %1839 = vmatpush.msra.mxu0 %v1718
    %1840 = vmatmul.f32.gmra.mxu0 %v1822
    %v1841 = vpop.f32.mrf.mxu0
    %v1842 = vadd.f32 0.0, %v1841
    %1843 = vdwg.mxu0
    %v1844 = vpack.c.bf16 %v1842, %v1819
    %s1845 = scalar_lea.vmem %s3, 20
    %v1846 = vld [vmem:[%s1845] sm:$0xf]
    %v1848 = vsel %vm211, %v1844, 0
    %v1851 = vsel %vm576, %v1846, 0
    %1853 = vmatpush.bf16.msra.mxu0 0
    %1854 = vmatpush.bf16.msra.mxu0 0
    %1855 = vmatpush.bf16.msra.mxu0 0
    %1856 = vmatpush.bf16.msra.mxu0 0
    %1857 = vmatpush.bf16.msra.mxu0 0
    %1858 = vmatpush.bf16.msra.mxu0 0
    %1859 = vmatpush.bf16.msra.mxu0 0
    %1860 = vmatpush.bf16.msra.mxu0 %v1851
    %1861 = vmatmul.bf16.gmra.mxu0 %v1848
    %v1862 = vpop.f32.mrf.mxu0
    %v1863 = vadd.f32 0.0, %v1862
    %v1864 = vpop.f32.mrf.mxu0
    %v1865 = vadd.f32 0.0, %v1864
    %1866 = vdwg.mxu0
    %v1868 = vsel %vm211, %v1609, 0
    %v1871 = vsel %vm576, %v1611, 0
    %1873 = vmatpush.bf16.msra.mxu0 0
    %1874 = vmatpush.bf16.msra.mxu0 0
    %1875 = vmatpush.bf16.msra.mxu0 0
    %1876 = vmatpush.bf16.msra.mxu0 0
    %1877 = vmatpush.bf16.msra.mxu0 0
    %1878 = vmatpush.bf16.msra.mxu0 0
    %1879 = vmatpush.bf16.msra.mxu0 0
    %1880 = vmatpush.bf16.msra.mxu0 %v1871
    %1881 = vmatmul.bf16.gmra.mxu0 %v1868
    %v1882 = vpop.f32.mrf.mxu0
    %v1883 = vadd.f32 %v1863, %v1882
    %v1884 = vpop.f32.mrf.mxu0
    %v1885 = vadd.f32 %v1865, %v1884
    %1886 = vdwg.mxu0
    %s1887 = scalar_lea.vmem %s1, 224
    %v1888 = vld [vmem:[%s1887] sm:$0xf]
    %v1889 = vld [vmem:[%s1887 + $0x4] sm:$0xf]
    %v1890 = vld [vmem:[%s1887 + $0x8] sm:$0xf]
    %v1891 = vld [vmem:[%s1887 + $0xc] sm:$0xf]
    %s1892 = scalar_lea.vmem %s2, 14
    %v1893 = vld [vmem:[%s1892] sm:$0x1]
    %v1895 = vperm.slane %v1893, 0
    %v1901 = vunpack.c.l.b16 %v1888
    %v1902 = vunpack.c.l.b16 %v1889
    %v1903 = vunpack.c.l.b16 %v1890
    %v1904 = vunpack.c.l.b16 %v1891
    %v1905 = vpack.c.b16 %v1902, %v1901
    %v1906 = vpack.c.b16 %v1904, %v1903
    %1909 = vmatpush.bf16.msra.mxu0 0
    %1910 = vmatpush.bf16.msra.mxu0 0
    %1911 = vmatpush.bf16.msra.mxu0 0
    %1912 = vmatpush.bf16.msra.mxu0 0
    %1913 = vmatpush.bf16.msra.mxu0 0
    %1914 = vmatpush.bf16.msra.mxu0 0
    %1915 = vmatpush.bf16.msra.mxu0 %v1906
    %1916 = vmatpush.bf16.msra.mxu0 %v1905
    %1917 = vmatmul.bf16.gmra.mxu0 %v1397
    %v1918 = vpop.f32.mrf.mxu0
    %v1919 = vadd.f32 %v1895, %v1918
    %v1920 = vpop.f32.mrf.mxu0
    %v1921 = vadd.f32 %v1895, %v1920
    %1922 = vdwg.mxu0
    %s1923 = scalar_lea.vmem %s1, 288
    %v1924 = vld [vmem:[%s1923] sm:$0xf]
    %v1925 = vld [vmem:[%s1923 + $0x4] sm:$0xf]
    %v1926 = vld [vmem:[%s1923 + $0x8] sm:$0xf]
    %v1927 = vld [vmem:[%s1923 + $0xc] sm:$0xf]
    %s1928 = scalar_lea.vmem %s2, 18
    %v1929 = vld [vmem:[%s1928] sm:$0x1]
    %v1931 = vperm.slane %v1929, 0
    %v1937 = vunpack.c.l.b16 %v1924
    %v1938 = vunpack.c.l.b16 %v1925
    %v1939 = vunpack.c.l.b16 %v1926
    %v1940 = vunpack.c.l.b16 %v1927
    %v1941 = vpack.c.b16 %v1938, %v1937
    %v1942 = vpack.c.b16 %v1940, %v1939
    %1945 = vmatpush.bf16.msra.mxu0 0
    %1946 = vmatpush.bf16.msra.mxu0 0
    %1947 = vmatpush.bf16.msra.mxu0 0
    %1948 = vmatpush.bf16.msra.mxu0 0
    %1949 = vmatpush.bf16.msra.mxu0 0
    %1950 = vmatpush.bf16.msra.mxu0 0
    %1951 = vmatpush.bf16.msra.mxu0 %v1942
    %1952 = vmatpush.bf16.msra.mxu0 %v1941
    %1953 = vmatmul.bf16.gmra.mxu0 %v1397
    %v1954 = vpop.f32.mrf.mxu0
    %v1955 = vadd.f32 %v1931, %v1954
    %v1956 = vpop.f32.mrf.mxu0
    %v1957 = vadd.f32 %v1931, %v1956
    %1958 = vdwg.mxu0
    %s1959 = scalar_lea.vmem %s1, 352
    %v1960 = vld [vmem:[%s1959] sm:$0xf]
    %v1961 = vld [vmem:[%s1959 + $0x4] sm:$0xf]
    %v1962 = vld [vmem:[%s1959 + $0x8] sm:$0xf]
    %v1963 = vld [vmem:[%s1959 + $0xc] sm:$0xf]
    %s1964 = scalar_lea.vmem %s2, 22
    %v1965 = vld [vmem:[%s1964] sm:$0x1]
    %v1967 = vperm.slane %v1965, 0
    %v1973 = vunpack.c.l.b16 %v1960
    %v1974 = vunpack.c.l.b16 %v1961
    %v1975 = vunpack.c.l.b16 %v1962
    %v1976 = vunpack.c.l.b16 %v1963
    %v1977 = vpack.c.b16 %v1974, %v1973
    %v1978 = vpack.c.b16 %v1976, %v1975
    %1981 = vmatpush.bf16.msra.mxu0 0
    %1982 = vmatpush.bf16.msra.mxu0 0
    %1983 = vmatpush.bf16.msra.mxu0 0
    %1984 = vmatpush.bf16.msra.mxu0 0
    %1985 = vmatpush.bf16.msra.mxu0 0
    %1986 = vmatpush.bf16.msra.mxu0 0
    %1987 = vmatpush.bf16.msra.mxu0 %v1978
    %1988 = vmatpush.bf16.msra.mxu0 %v1977
    %1989 = vmatmul.bf16.gmra.mxu0 %v1397
    %v1990 = vpop.f32.mrf.mxu0
    %v1991 = vadd.f32 %v1967, %v1990
    %v1992 = vpop.f32.mrf.mxu0
    %v1993 = vadd.f32 %v1967, %v1992
    %1994 = vdwg.mxu0
    %v1996 = vsel %vm211, %v1919, 0
    %v1999 = vsel %vm211, %v1955, 0
    %2001 = vmatpush.xpose.msra.mxu0 0.0
    %2002 = vmatpush.xpose.msra.mxu0 0.0
    %2003 = vmatpush.xpose.msra.mxu0 0.0
    %2004 = vmatpush.xpose.msra.mxu0 0.0
    %2005 = vmatpush.xpose.msra.mxu0 0.0
    %2006 = vmatpush.xpose.msra.mxu0 0.0
    %2007 = vmatpush.xpose.msra.mxu0 0.0
    %2008 = vmatpush.xpose.msra.mxu0 0.0
    %2009 = vmatpush.xpose.msra.mxu0 0.0
    %2010 = vmatpush.xpose.msra.mxu0 0.0
    %2011 = vmatpush.xpose.msra.mxu0 0.0
    %2012 = vmatpush.xpose.msra.mxu0 0.0
    %2013 = vmatpush.xpose.msra.mxu0 0.0
    %2014 = vmatpush.xpose.msra.mxu0 0.0
    %2015 = vmatpush.xpose.msra.mxu0 0.0
    %2016 = vmatpush.xpose.msra.mxu0 %v1999
    %2017 = vmatmul.f32.gmra.mxu0 %v1996
    %v2018 = vpop.f32.mrf.mxu0
    %v2019 = vadd.f32 0.0, %v2018
    %2020 = vdwg.mxu0
    %v2022 = vsel %vm211, %v1921, 0
    %v2025 = vsel %vm211, %v1957, 0
    %2027 = vmatpush.xpose.msra.mxu0 0.0
    %2028 = vmatpush.xpose.msra.mxu0 0.0
    %2029 = vmatpush.xpose.msra.mxu0 0.0
    %2030 = vmatpush.xpose.msra.mxu0 0.0
    %2031 = vmatpush.xpose.msra.mxu0 0.0
    %2032 = vmatpush.xpose.msra.mxu0 0.0
    %2033 = vmatpush.xpose.msra.mxu0 0.0
    %2034 = vmatpush.xpose.msra.mxu0 0.0
    %2035 = vmatpush.xpose.msra.mxu0 0.0
    %2036 = vmatpush.xpose.msra.mxu0 0.0
    %2037 = vmatpush.xpose.msra.mxu0 0.0
    %2038 = vmatpush.xpose.msra.mxu0 0.0
    %2039 = vmatpush.xpose.msra.mxu0 0.0
    %2040 = vmatpush.xpose.msra.mxu0 0.0
    %2041 = vmatpush.xpose.msra.mxu0 0.0
    %2042 = vmatpush.xpose.msra.mxu0 %v2025
    %2043 = vmatmul.f32.gmra.mxu0 %v2022
    %v2044 = vpop.f32.mrf.mxu0
    %v2045 = vadd.f32 0.0, %v2044
    %2046 = vdwg.mxu0
    %v2047 = vmul.f32 %v2019, 0.35355338
    %v2048 = vmul.f32 %v2045, 0.35355338
    %v2049 = vadd.f32 %v2047, %v41
    %v2050 = vadd.f32 %v2048, %v41
    %v2051 = vsel %vm211, %v2049, -inf
    %2052 = vmax.xlane.f32.xlu0 %v2051
    %v2053 = vpop.xlane.xlu0 %2052
    %v2054 = vsel %vm211, %v2050, -inf
    %2055 = vmax.xlane.f32.xlu0 %v2054
    %v2056 = vpop.xlane.xlu0 %2055
    %v2057 = vsub.f32 %v2049, %v2053
    %v2058 = vsub.f32 %v2050, %v2056
    %v2059 = vmul.f32 %v2057, 1.442695
    %v2060 = vpow.pop %v2059
    %v2061 = vmul.f32 %v2058, 1.442695
    %v2062 = vpow.pop %v2061
    %v2063 = vsel %vm211, %v2060, 0.0
    %2064 = vadd.xlane.f32.xlu0 %v2063
    %v2065 = vpop.xlane.xlu0 %2064
    %v2066 = vsel %vm211, %v2062, 0.0
    %2067 = vadd.xlane.f32.xlu0 %v2066
    %v2068 = vpop.xlane.xlu0 %2067
    %v2069 = vrcp.pop %v2065
    %v2070 = vrcp.pop %v2068
    %v2071 = vmul.f32 %v2060, %v2069
    %v2072 = vmul.f32 %v2062, %v2070
    %v2074 = vsel %vm211, %v2071, 0
    %2076 = vmatpush.msra.mxu0 0.0
    %2077 = vmatpush.msra.mxu0 0.0
    %2078 = vmatpush.msra.mxu0 0.0
    %2079 = vmatpush.msra.mxu0 0.0
    %2080 = vmatpush.msra.mxu0 0.0
    %2081 = vmatpush.msra.mxu0 0.0
    %2082 = vmatpush.msra.mxu0 0.0
    %2083 = vmatpush.msra.mxu0 0.0
    %2084 = vmatpush.msra.mxu0 0.0
    %2085 = vmatpush.msra.mxu0 0.0
    %2086 = vmatpush.msra.mxu0 0.0
    %2087 = vmatpush.msra.mxu0 0.0
    %2088 = vmatpush.msra.mxu0 0.0
    %2089 = vmatpush.msra.mxu0 0.0
    %2090 = vmatpush.msra.mxu0 0.0
    %2091 = vmatpush.msra.mxu0 %v1991
    %2092 = vmatmul.f32.gmra.mxu0 %v2074
    %v2093 = vpop.f32.mrf.mxu0
    %v2094 = vadd.f32 0.0, %v2093
    %2095 = vdwg.mxu0
    %v2097 = vsel %vm211, %v2072, 0
    %2099 = vmatpush.msra.mxu0 0.0
    %2100 = vmatpush.msra.mxu0 0.0
    %2101 = vmatpush.msra.mxu0 0.0
    %2102 = vmatpush.msra.mxu0 0.0
    %2103 = vmatpush.msra.mxu0 0.0
    %2104 = vmatpush.msra.mxu0 0.0
    %2105 = vmatpush.msra.mxu0 0.0
    %2106 = vmatpush.msra.mxu0 0.0
    %2107 = vmatpush.msra.mxu0 0.0
    %2108 = vmatpush.msra.mxu0 0.0
    %2109 = vmatpush.msra.mxu0 0.0
    %2110 = vmatpush.msra.mxu0 0.0
    %2111 = vmatpush.msra.mxu0 0.0
    %2112 = vmatpush.msra.mxu0 0.0
    %2113 = vmatpush.msra.mxu0 0.0
    %2114 = vmatpush.msra.mxu0 %v1993
    %2115 = vmatmul.f32.gmra.mxu0 %v2097
    %v2116 = vpop.f32.mrf.mxu0
    %v2117 = vadd.f32 0.0, %v2116
    %2118 = vdwg.mxu0
    %v2119 = vpack.c.bf16 %v2117, %v2094
    %s2120 = scalar_lea.vmem %s3, 24
    %v2121 = vld [vmem:[%s2120] sm:$0xf]
    %v2123 = vsel %vm211, %v2119, 0
    %v2126 = vsel %vm576, %v2121, 0
    %2128 = vmatpush.bf16.msra.mxu0 0
    %2129 = vmatpush.bf16.msra.mxu0 0
    %2130 = vmatpush.bf16.msra.mxu0 0
    %2131 = vmatpush.bf16.msra.mxu0 0
    %2132 = vmatpush.bf16.msra.mxu0 0
    %2133 = vmatpush.bf16.msra.mxu0 0
    %2134 = vmatpush.bf16.msra.mxu0 0
    %2135 = vmatpush.bf16.msra.mxu0 %v2126
    %2136 = vmatmul.bf16.gmra.mxu0 %v2123
    %v2137 = vpop.f32.mrf.mxu0
    %v2138 = vadd.f32 0.0, %v2137
    %v2139 = vpop.f32.mrf.mxu0
    %v2140 = vadd.f32 0.0, %v2139
    %2141 = vdwg.mxu0
    %v2142 = vadd.f32 %v1883, %v2138
    %v2143 = vadd.f32 %v1885, %v2140
    %s2144 = scalar_lea.vmem %s1, 240
    %v2145 = vld [vmem:[%s2144] sm:$0xf]
    %v2146 = vld [vmem:[%s2144 + $0x4] sm:$0xf]
    %v2147 = vld [vmem:[%s2144 + $0x8] sm:$0xf]
    %v2148 = vld [vmem:[%s2144 + $0xc] sm:$0xf]
    %s2149 = scalar_lea.vmem %s2, 15
    %v2150 = vld [vmem:[%s2149] sm:$0x1]
    %v2152 = vperm.slane %v2150, 0
    %v2158 = vunpack.c.l.b16 %v2145
    %v2159 = vunpack.c.l.b16 %v2146
    %v2160 = vunpack.c.l.b16 %v2147
    %v2161 = vunpack.c.l.b16 %v2148
    %v2162 = vpack.c.b16 %v2159, %v2158
    %v2163 = vpack.c.b16 %v2161, %v2160
    %2166 = vmatpush.bf16.msra.mxu0 0
    %2167 = vmatpush.bf16.msra.mxu0 0
    %2168 = vmatpush.bf16.msra.mxu0 0
    %2169 = vmatpush.bf16.msra.mxu0 0
    %2170 = vmatpush.bf16.msra.mxu0 0
    %2171 = vmatpush.bf16.msra.mxu0 0
    %2172 = vmatpush.bf16.msra.mxu0 %v2163
    %2173 = vmatpush.bf16.msra.mxu0 %v2162
    %2174 = vmatmul.bf16.gmra.mxu0 %v1397
    %v2175 = vpop.f32.mrf.mxu0
    %v2176 = vadd.f32 %v2152, %v2175
    %v2177 = vpop.f32.mrf.mxu0
    %v2178 = vadd.f32 %v2152, %v2177
    %2179 = vdwg.mxu0
    %s2180 = scalar_lea.vmem %s1, 304
    %v2181 = vld [vmem:[%s2180] sm:$0xf]
    %v2182 = vld [vmem:[%s2180 + $0x4] sm:$0xf]
    %v2183 = vld [vmem:[%s2180 + $0x8] sm:$0xf]
    %v2184 = vld [vmem:[%s2180 + $0xc] sm:$0xf]
    %s2185 = scalar_lea.vmem %s2, 19
    %v2186 = vld [vmem:[%s2185] sm:$0x1]
    %v2188 = vperm.slane %v2186, 0
    %v2194 = vunpack.c.l.b16 %v2181
    %v2195 = vunpack.c.l.b16 %v2182
    %v2196 = vunpack.c.l.b16 %v2183
    %v2197 = vunpack.c.l.b16 %v2184
    %v2198 = vpack.c.b16 %v2195, %v2194
    %v2199 = vpack.c.b16 %v2197, %v2196
    %2202 = vmatpush.bf16.msra.mxu0 0
    %2203 = vmatpush.bf16.msra.mxu0 0
    %2204 = vmatpush.bf16.msra.mxu0 0
    %2205 = vmatpush.bf16.msra.mxu0 0
    %2206 = vmatpush.bf16.msra.mxu0 0
    %2207 = vmatpush.bf16.msra.mxu0 0
    %2208 = vmatpush.bf16.msra.mxu0 %v2199
    %2209 = vmatpush.bf16.msra.mxu0 %v2198
    %2210 = vmatmul.bf16.gmra.mxu0 %v1397
    %v2211 = vpop.f32.mrf.mxu0
    %v2212 = vadd.f32 %v2188, %v2211
    %v2213 = vpop.f32.mrf.mxu0
    %v2214 = vadd.f32 %v2188, %v2213
    %2215 = vdwg.mxu0
    %s2216 = scalar_lea.vmem %s1, 368
    %v2217 = vld [vmem:[%s2216] sm:$0xf]
    %v2218 = vld [vmem:[%s2216 + $0x4] sm:$0xf]
    %v2219 = vld [vmem:[%s2216 + $0x8] sm:$0xf]
    %v2220 = vld [vmem:[%s2216 + $0xc] sm:$0xf]
    %s2221 = scalar_lea.vmem %s2, 23
    %v2222 = vld [vmem:[%s2221] sm:$0x1]
    %v2224 = vperm.slane %v2222, 0
    %v2230 = vunpack.c.l.b16 %v2217
    %v2231 = vunpack.c.l.b16 %v2218
    %v2232 = vunpack.c.l.b16 %v2219
    %v2233 = vunpack.c.l.b16 %v2220
    %v2234 = vpack.c.b16 %v2231, %v2230
    %v2235 = vpack.c.b16 %v2233, %v2232
    %2238 = vmatpush.bf16.msra.mxu0 0
    %2239 = vmatpush.bf16.msra.mxu0 0
    %2240 = vmatpush.bf16.msra.mxu0 0
    %2241 = vmatpush.bf16.msra.mxu0 0
    %2242 = vmatpush.bf16.msra.mxu0 0
    %2243 = vmatpush.bf16.msra.mxu0 0
    %2244 = vmatpush.bf16.msra.mxu0 %v2235
    %2245 = vmatpush.bf16.msra.mxu0 %v2234
    %2246 = vmatmul.bf16.gmra.mxu0 %v1397
    %v2247 = vpop.f32.mrf.mxu0
    %v2248 = vadd.f32 %v2224, %v2247
    %v2249 = vpop.f32.mrf.mxu0
    %v2250 = vadd.f32 %v2224, %v2249
    %2251 = vdwg.mxu0
    %v2253 = vsel %vm211, %v2176, 0
    %v2256 = vsel %vm211, %v2212, 0
    %2258 = vmatpush.xpose.msra.mxu0 0.0
    %2259 = vmatpush.xpose.msra.mxu0 0.0
    %2260 = vmatpush.xpose.msra.mxu0 0.0
    %2261 = vmatpush.xpose.msra.mxu0 0.0
    %2262 = vmatpush.xpose.msra.mxu0 0.0
    %2263 = vmatpush.xpose.msra.mxu0 0.0
    %2264 = vmatpush.xpose.msra.mxu0 0.0
    %2265 = vmatpush.xpose.msra.mxu0 0.0
    %2266 = vmatpush.xpose.msra.mxu0 0.0
    %2267 = vmatpush.xpose.msra.mxu0 0.0
    %2268 = vmatpush.xpose.msra.mxu0 0.0
    %2269 = vmatpush.xpose.msra.mxu0 0.0
    %2270 = vmatpush.xpose.msra.mxu0 0.0
    %2271 = vmatpush.xpose.msra.mxu0 0.0
    %2272 = vmatpush.xpose.msra.mxu0 0.0
    %2273 = vmatpush.xpose.msra.mxu0 %v2256
    %2274 = vmatmul.f32.gmra.mxu0 %v2253
    %v2275 = vpop.f32.mrf.mxu0
    %v2276 = vadd.f32 0.0, %v2275
    %2277 = vdwg.mxu0
    %v2279 = vsel %vm211, %v2178, 0
    %v2282 = vsel %vm211, %v2214, 0
    %2284 = vmatpush.xpose.msra.mxu0 0.0
    %2285 = vmatpush.xpose.msra.mxu0 0.0
    %2286 = vmatpush.xpose.msra.mxu0 0.0
    %2287 = vmatpush.xpose.msra.mxu0 0.0
    %2288 = vmatpush.xpose.msra.mxu0 0.0
    %2289 = vmatpush.xpose.msra.mxu0 0.0
    %2290 = vmatpush.xpose.msra.mxu0 0.0
    %2291 = vmatpush.xpose.msra.mxu0 0.0
    %2292 = vmatpush.xpose.msra.mxu0 0.0
    %2293 = vmatpush.xpose.msra.mxu0 0.0
    %2294 = vmatpush.xpose.msra.mxu0 0.0
    %2295 = vmatpush.xpose.msra.mxu0 0.0
    %2296 = vmatpush.xpose.msra.mxu0 0.0
    %2297 = vmatpush.xpose.msra.mxu0 0.0
    %2298 = vmatpush.xpose.msra.mxu0 0.0
    %2299 = vmatpush.xpose.msra.mxu0 %v2282
    %2300 = vmatmul.f32.gmra.mxu0 %v2279
    %v2301 = vpop.f32.mrf.mxu0
    %v2302 = vadd.f32 0.0, %v2301
    %2303 = vdwg.mxu0
    %v2304 = vmul.f32 %v2276, 0.35355338
    %v2305 = vmul.f32 %v2302, 0.35355338
    %v2306 = vadd.f32 %v2304, %v41
    %v2307 = vadd.f32 %v2305, %v41
    %v2308 = vsel %vm211, %v2306, -inf
    %2309 = vmax.xlane.f32.xlu0 %v2308
    %v2310 = vpop.xlane.xlu0 %2309
    %v2311 = vsel %vm211, %v2307, -inf
    %2312 = vmax.xlane.f32.xlu0 %v2311
    %v2313 = vpop.xlane.xlu0 %2312
    %v2314 = vsub.f32 %v2306, %v2310
    %v2315 = vsub.f32 %v2307, %v2313
    %v2316 = vmul.f32 %v2314, 1.442695
    %v2317 = vpow.pop %v2316
    %v2318 = vmul.f32 %v2315, 1.442695
    %v2319 = vpow.pop %v2318
    %v2320 = vsel %vm211, %v2317, 0.0
    %2321 = vadd.xlane.f32.xlu0 %v2320
    %v2322 = vpop.xlane.xlu0 %2321
    %v2323 = vsel %vm211, %v2319, 0.0
    %2324 = vadd.xlane.f32.xlu0 %v2323
    %v2325 = vpop.xlane.xlu0 %2324
    %v2326 = vrcp.pop %v2322
    %v2327 = vrcp.pop %v2325
    %v2328 = vmul.f32 %v2317, %v2326
    %v2329 = vmul.f32 %v2319, %v2327
    %v2331 = vsel %vm211, %v2328, 0
    %2333 = vmatpush.msra.mxu0 0.0
    %2334 = vmatpush.msra.mxu0 0.0
    %2335 = vmatpush.msra.mxu0 0.0
    %2336 = vmatpush.msra.mxu0 0.0
    %2337 = vmatpush.msra.mxu0 0.0
    %2338 = vmatpush.msra.mxu0 0.0
    %2339 = vmatpush.msra.mxu0 0.0
    %2340 = vmatpush.msra.mxu0 0.0
    %2341 = vmatpush.msra.mxu0 0.0
    %2342 = vmatpush.msra.mxu0 0.0
    %2343 = vmatpush.msra.mxu0 0.0
    %2344 = vmatpush.msra.mxu0 0.0
    %2345 = vmatpush.msra.mxu0 0.0
    %2346 = vmatpush.msra.mxu0 0.0
    %2347 = vmatpush.msra.mxu0 0.0
    %2348 = vmatpush.msra.mxu0 %v2248
    %2349 = vmatmul.f32.gmra.mxu0 %v2331
    %v2350 = vpop.f32.mrf.mxu0
    %v2351 = vadd.f32 0.0, %v2350
    %2352 = vdwg.mxu0
    %v2354 = vsel %vm211, %v2329, 0
    %2356 = vmatpush.msra.mxu0 0.0
    %2357 = vmatpush.msra.mxu0 0.0
    %2358 = vmatpush.msra.mxu0 0.0
    %2359 = vmatpush.msra.mxu0 0.0
    %2360 = vmatpush.msra.mxu0 0.0
    %2361 = vmatpush.msra.mxu0 0.0
    %2362 = vmatpush.msra.mxu0 0.0
    %2363 = vmatpush.msra.mxu0 0.0
    %2364 = vmatpush.msra.mxu0 0.0
    %2365 = vmatpush.msra.mxu0 0.0
    %2366 = vmatpush.msra.mxu0 0.0
    %2367 = vmatpush.msra.mxu0 0.0
    %2368 = vmatpush.msra.mxu0 0.0
    %2369 = vmatpush.msra.mxu0 0.0
    %2370 = vmatpush.msra.mxu0 0.0
    %2371 = vmatpush.msra.mxu0 %v2250
    %2372 = vmatmul.f32.gmra.mxu0 %v2354
    %v2373 = vpop.f32.mrf.mxu0
    %v2374 = vadd.f32 0.0, %v2373
    %2375 = vdwg.mxu0
    %v2376 = vpack.c.bf16 %v2374, %v2351
    %s2377 = scalar_lea.vmem %s3, 28
    %v2378 = vld [vmem:[%s2377] sm:$0xf]
    %v2380 = vsel %vm211, %v2376, 0
    %v2383 = vsel %vm576, %v2378, 0
    %2385 = vmatpush.bf16.msra.mxu0 0
    %2386 = vmatpush.bf16.msra.mxu0 0
    %2387 = vmatpush.bf16.msra.mxu0 0
    %2388 = vmatpush.bf16.msra.mxu0 0
    %2389 = vmatpush.bf16.msra.mxu0 0
    %2390 = vmatpush.bf16.msra.mxu0 0
    %2391 = vmatpush.bf16.msra.mxu0 0
    %2392 = vmatpush.bf16.msra.mxu0 %v2383
    %2393 = vmatmul.bf16.gmra.mxu0 %v2380
    %v2394 = vpop.f32.mrf.mxu0
    %v2395 = vadd.f32 0.0, %v2394
    %v2396 = vpop.f32.mrf.mxu0
    %v2397 = vadd.f32 0.0, %v2396
    %2398 = vdwg.mxu0
    %v2399 = vadd.f32 %v2142, %v2395
    %v2400 = vadd.f32 %v2143, %v2397
    %v2401 = vadd.f32 %v1319, %v2399
    %v2402 = vadd.f32 %v1320, %v2400
    %v2403 = vperm.slane %v1322, 0
    %v2404 = vadd.f32 %v2401, %v2403
    %v2405 = vadd.f32 %v2402, %v2403
    %v2406 = vsel %vm43, %v2404, 0.0
    %2407 = vadd.xlane.f32.xlu0 %v2406
    %v2408 = vpop.xlane.xlu0 %2407
    %v2409 = vsel %vm43, %v2405, 0.0
    %2410 = vadd.xlane.f32.xlu0 %v2409
    %v2411 = vpop.xlane.xlu0 %2410
    %v2412 = vmul.f32 %v2408, %v56
    %v2413 = vmul.f32 %v2411, %v56
    %v2414 = vsub.f32 %v2404, %v2412
    %v2415 = vsub.f32 %v2405, %v2413
    %v2416 = vmul.f32 %v2414, %v2414
    %v2417 = vmul.f32 %v2415, %v2415
    %v2418 = vsel %vm43, %v2416, 0.0
    %2419 = vadd.xlane.f32.xlu0 %v2418
    %v2420 = vpop.xlane.xlu0 %2419
    %v2421 = vsel %vm43, %v2417, 0.0
    %2422 = vadd.xlane.f32.xlu0 %v2421
    %v2423 = vpop.xlane.xlu0 %2422
    %v2424 = vmul.f32 %v2420, %v56
    %v2425 = vmul.f32 %v2423, %v56
    %v2426 = vadd.f32 %v2424, 1e-05
    %v2427 = vadd.f32 %v2425, 1e-05
    %v2428 = vrsqrt.pop %v2426
    %v2429 = vmul.f32 %v2428, %v2426
    %v2430 = vmul.f32 %v2429, %v2428
    %v2431 = vmul.f32 0.5, %v2430
    %v2432 = vsub.f32 1.5, %v2431
    %v2433 = vmul.f32 %v2428, %v2432
    %vm2434 = vweird.f32 %v2426
    %vm2435 = vweird.f32 %v2428
    %vm2436 = vmor %vm2434, %vm2435
    %v2437 = vsel %vm2436, %v2428, %v2433
    %v2438 = vrsqrt.pop %v2427
    %v2439 = vmul.f32 %v2438, %v2427
    %v2440 = vmul.f32 %v2439, %v2438
    %v2441 = vmul.f32 0.5, %v2440
    %v2442 = vsub.f32 1.5, %v2441
    %v2443 = vmul.f32 %v2438, %v2442
    %vm2444 = vweird.f32 %v2427
    %vm2445 = vweird.f32 %v2438
    %vm2446 = vmor %vm2444, %vm2445
    %v2447 = vsel %vm2446, %v2438, %v2443
    %v2448 = vmul.f32 %v2414, %v2437
    %v2449 = vmul.f32 %v2415, %v2447
    %v2450 = vperm.slane %v1322, 3
    %v2451 = vmul.f32 %v2448, %v2450
    %v2452 = vmul.f32 %v2449, %v2450
    %v2453 = vperm.slane %v1322, 4
    %v2454 = vadd.f32 %v2451, %v2453
    %v2455 = vadd.f32 %v2452, %v2453
    %v2456 = vpack.c.bf16 %v2455, %v2454
    %s2457 = scalar_lea.vmem %s4, 16
    %v2458 = vld [vmem:[%s2457] sm:$0xf]
    %v2459 = vld [vmem:[%s2457 + $0x4] sm:$0xf]
    %v2460 = vld [vmem:[%s2457 + $0x8] sm:$0xf]
    %v2461 = vld [vmem:[%s2457 + $0xc] sm:$0xf]
    %s2462 = scalar_lea.vmem %s6, 1
    %v2463 = vld [vmem:[%s2462] sm:$0x1]
    %v2465 = vperm.slane %v2463, 0
    %v2471 = vunpack.c.l.b16 %v2458
    %v2472 = vunpack.c.l.b16 %v2459
    %v2473 = vunpack.c.l.b16 %v2460
    %v2474 = vunpack.c.l.b16 %v2461
    %v2475 = vpack.c.b16 %v2472, %v2471
    %v2476 = vpack.c.b16 %v2474, %v2473
    %v2480 = vsel %vm43, %v2456, 0
    %2482 = vmatpush.bf16.msra.mxu0 0
    %2483 = vmatpush.bf16.msra.mxu0 0
    %2484 = vmatpush.bf16.msra.mxu0 0
    %2485 = vmatpush.bf16.msra.mxu0 0
    %2486 = vmatpush.bf16.msra.mxu0 0
    %2487 = vmatpush.bf16.msra.mxu0 0
    %2488 = vmatpush.bf16.msra.mxu0 %v2476
    %2489 = vmatpush.bf16.msra.mxu0 %v2475
    %2490 = vmatmul.bf16.gmra.mxu0 %v2480
    %v2491 = vpop.f32.mrf.mxu0
    %v2492 = vadd.f32 %v2465, %v2491
    %v2493 = vpop.f32.mrf.mxu0
    %v2494 = vadd.f32 %v2465, %v2493
    %2495 = vdwg.mxu0
    %v2496 = vmul.f32 %v2492, 0.5
    %v2497 = vmul.f32 %v2494, 0.5
    %v2498 = vmul.f32 %v2492, 0.044715
    %v2499 = vmul.f32 %v2494, 0.044715
    %v2500 = vmul.f32 %v2498, %v2492
    %v2501 = vmul.f32 %v2499, %v2494
    %v2502 = vmul.f32 %v2500, %v2492
    %v2503 = vmul.f32 %v2501, %v2494
    %v2504 = vadd.f32 %v2492, %v2502
    %v2505 = vadd.f32 %v2494, %v2503
    %v2506 = vmul.f32 %v2504, 0.7978846
    %v2507 = vmul.f32 %v2505, 0.7978846
    %v2508 = vtanh.pop %v2506
    %v2509 = vtanh.pop %v2507
    %v2510 = vadd.f32 %v2508, 1.0
    %v2511 = vadd.f32 %v2509, 1.0
    %v2512 = vmul.f32 %v2496, %v2510
    %v2513 = vmul.f32 %v2497, %v2511
    %v2514 = vpack.c.bf16 %v2513, %v2512
    %s2515 = scalar_lea.vmem %s5, 64
    %v2516 = vld [vmem:[%s2515] sm:$0xf]
    %v2517 = vld [vmem:[%s2515 + $0x4] sm:$0xf]
    %v2518 = vld [vmem:[%s2515 + $0x8] sm:$0xf]
    %v2519 = vld [vmem:[%s2515 + $0xc] sm:$0xf]
    %v2520 = vld [vmem:[%s2515 + $0x10] sm:$0xf]
    %v2521 = vld [vmem:[%s2515 + $0x14] sm:$0xf]
    %v2522 = vld [vmem:[%s2515 + $0x18] sm:$0xf]
    %v2523 = vld [vmem:[%s2515 + $0x1c] sm:$0xf]
    %v2524 = vld [vmem:[%s2515 + $0x20] sm:$0xf]
    %v2525 = vld [vmem:[%s2515 + $0x24] sm:$0xf]
    %v2526 = vld [vmem:[%s2515 + $0x28] sm:$0xf]
    %v2527 = vld [vmem:[%s2515 + $0x2c] sm:$0xf]
    %v2528 = vld [vmem:[%s2515 + $0x30] sm:$0xf]
    %v2529 = vld [vmem:[%s2515 + $0x34] sm:$0xf]
    %v2530 = vld [vmem:[%s2515 + $0x38] sm:$0xf]
    %v2531 = vld [vmem:[%s2515 + $0x3c] sm:$0xf]
    %v2532 = vperm.slane %v1322, 5
    %v2549 = vunpack.c.l.b16 %v2516
    %v2550 = vunpack.c.l.b16 %v2517
    %v2551 = vunpack.c.l.b16 %v2518
    %v2552 = vunpack.c.l.b16 %v2519
    %v2553 = vunpack.c.l.b16 %v2520
    %v2554 = vunpack.c.l.b16 %v2521
    %v2555 = vunpack.c.l.b16 %v2522
    %v2556 = vunpack.c.l.b16 %v2523
    %v2557 = vunpack.c.l.b16 %v2524
    %v2558 = vunpack.c.l.b16 %v2525
    %v2559 = vunpack.c.l.b16 %v2526
    %v2560 = vunpack.c.l.b16 %v2527
    %v2561 = vunpack.c.l.b16 %v2528
    %v2562 = vunpack.c.l.b16 %v2529
    %v2563 = vunpack.c.l.b16 %v2530
    %v2564 = vunpack.c.l.b16 %v2531
    %v2565 = vpack.c.b16 %v2550, %v2549
    %v2566 = vpack.c.b16 %v2552, %v2551
    %v2567 = vpack.c.b16 %v2554, %v2553
    %v2568 = vpack.c.b16 %v2556, %v2555
    %v2569 = vpack.c.b16 %v2558, %v2557
    %v2570 = vpack.c.b16 %v2560, %v2559
    %v2571 = vpack.c.b16 %v2562, %v2561
    %v2572 = vpack.c.b16 %v2564, %v2563
    %2581 = vmatpush.bf16.msra.mxu0 %v2572
    %2582 = vmatpush.bf16.msra.mxu0 %v2571
    %2583 = vmatpush.bf16.msra.mxu0 %v2570
    %2584 = vmatpush.bf16.msra.mxu0 %v2569
    %2585 = vmatpush.bf16.msra.mxu0 %v2568
    %2586 = vmatpush.bf16.msra.mxu0 %v2567
    %2587 = vmatpush.bf16.msra.mxu0 %v2566
    %2588 = vmatpush.bf16.msra.mxu0 %v2565
    %2589 = vmatmul.bf16.gmra.mxu0 %v2514
    %v2590 = vpop.f32.mrf.mxu0
    %v2591 = vadd.f32 %v2532, %v2590
    %v2592 = vpop.f32.mrf.mxu0
    %v2593 = vadd.f32 %v2532, %v2592
    %2594 = vdwg.mxu0
    %v2595 = vadd.f32 %v2404, %v2591
    %v2596 = vadd.f32 %v2405, %v2593
    %v2597 = vld [vmem:[%s8] sm:$0x3]
    %v2598 = vsel %vm43, %v2595, 0.0
    %2599 = vadd.xlane.f32.xlu0 %v2598
    %v2600 = vpop.xlane.xlu0 %2599
    %v2601 = vsel %vm43, %v2596, 0.0
    %2602 = vadd.xlane.f32.xlu0 %v2601
    %v2603 = vpop.xlane.xlu0 %2602
    %v2604 = vmul.f32 %v2600, %v56
    %v2605 = vmul.f32 %v2603, %v56
    %v2606 = vsub.f32 %v2595, %v2604
    %v2607 = vsub.f32 %v2596, %v2605
    %v2608 = vmul.f32 %v2606, %v2606
    %v2609 = vmul.f32 %v2607, %v2607
    %v2610 = vsel %vm43, %v2608, 0.0
    %2611 = vadd.xlane.f32.xlu0 %v2610
    %v2612 = vpop.xlane.xlu0 %2611
    %v2613 = vsel %vm43, %v2609, 0.0
    %2614 = vadd.xlane.f32.xlu0 %v2613
    %v2615 = vpop.xlane.xlu0 %2614
    %v2616 = vmul.f32 %v2612, %v56
    %v2617 = vmul.f32 %v2615, %v56
    %v2618 = vadd.f32 %v2616, 1e-05
    %v2619 = vadd.f32 %v2617, 1e-05
    %v2620 = vrsqrt.pop %v2618
    %v2621 = vmul.f32 %v2620, %v2618
    %v2622 = vmul.f32 %v2621, %v2620
    %v2623 = vmul.f32 0.5, %v2622
    %v2624 = vsub.f32 1.5, %v2623
    %v2625 = vmul.f32 %v2620, %v2624
    %vm2626 = vweird.f32 %v2618
    %vm2627 = vweird.f32 %v2620
    %vm2628 = vmor %vm2626, %vm2627
    %v2629 = vsel %vm2628, %v2620, %v2625
    %v2630 = vrsqrt.pop %v2619
    %v2631 = vmul.f32 %v2630, %v2619
    %v2632 = vmul.f32 %v2631, %v2630
    %v2633 = vmul.f32 0.5, %v2632
    %v2634 = vsub.f32 1.5, %v2633
    %v2635 = vmul.f32 %v2630, %v2634
    %vm2636 = vweird.f32 %v2619
    %vm2637 = vweird.f32 %v2630
    %vm2638 = vmor %vm2636, %vm2637
    %v2639 = vsel %vm2638, %v2630, %v2635
    %v2640 = vmul.f32 %v2606, %v2629
    %v2641 = vmul.f32 %v2607, %v2639
    %v2642 = vperm.slane %v2597, 0
    %v2643 = vmul.f32 %v2640, %v2642
    %v2644 = vmul.f32 %v2641, %v2642
    %v2645 = vperm.slane %v2597, 1
    %v2646 = vadd.f32 %v2643, %v2645
    %v2647 = vadd.f32 %v2644, %v2645
    %2648 = vst.msk [vmem:[#allocation2] sm:$0xff] %vm43, %v2646
    %2649 = vst.msk [vmem:[#allocation2 + $0x8] sm:$0xff] %vm43, %v2647
    // Predicated region
    $region38: #{tpu_custom_call.1} parent=1 // pred_check
      _
    $region39: #{tpu_custom_call.1} parent=1 // pred_check_branch
      %2651 = sbr.rel (0) target = $region41
    $region40: #{tpu_custom_call.1} parent=1 // pred_region
      %2653 = vsyncadd [#allocation3], 0
      %s2654 = sshll.u32 [#allocation2], 4
      %s2655 = int_to_ptr.vmem [resolvable:$true] %s2654
      %s2656 = sshll.u32 %s9, 4
      %s2657 = int_to_ptr.hbm [resolvable:$true] %s2656
      %2662 = dma.vmem_to_hbm [thread:$0]  %s2655, 256, %s2657, [#allocation3], 128, 128, 8
    $region41: #{tpu_custom_call.1} parent=1 // pred_fallthru
      _
    // Predicated region
    $region42: #{tpu_custom_call.1} parent=1 // pred_check
      _
    $region43: #{tpu_custom_call.1} parent=1 // pred_check_branch
      %2664 = sbr.rel (0) target = $region45
    $region44: #{tpu_custom_call.1} parent=1 // pred_region
      %2666 = dma.done [#allocation3], 256
    $region45: #{tpu_custom_call.1} parent=1 // pred_fallthru
      _
    %2667 = vsyncpa [#allocation3], 1

</llo_original>
